<compile_context>
chip_gen: v6e
topology: v6e:2x2x1
jax: 0.10.0
libtpu: 0.0.40
codegen_flags: <defaults>
</compile_context>

<pallas_src>
import numpy as np
import jax
import jax.numpy as jnp
from jax.experimental import pallas as pl
from jax.experimental.pallas import tpu as pltpu


# ------------------------------ fused Pallas kernel ------------------------------

def _mnistnet_fused_kernel(xp_ref, w1b_ref, b1v_ref, w2b_ref, b2v_ref,
                           w1r_ref, b1f_ref, w2r_ref, b2f_ref, w3r_ref,
                           b3f_ref, o_ref):
    f32 = jnp.float32
    bb = xp_ref.shape[2]                        # batch rows in this block (mult of 8)

    # ---- conv1 + bias + ReLU + pool1 ---------------------------------------------
    # xp[p, r, b, w] = image[b, 2r+p, w].  Matmul rows are (spatial, batch) with
    # batch minor, so every row fold / row slice below is sublane-tile aligned.
    # The banded weight folds the kw loop into a K=28(->32) contraction; its N
    # axis is ordered n = wi*128 + wo*8 + oc, so pool1-over-wi is a max of two
    # aligned 128-lane groups and pool1-over-hi a max of the two hi accumulators.
    b1 = b1v_ref[...]
    r1 = None
    for hi in range(2):
        acc = None
        for kh in range(5):
            hh = hi + kh
            p, d = hh & 1, hh >> 1
            a = xp_ref[p, d:d + 12, :, :].reshape(12 * bb, 32)    # rows = (ho, b)
            c = jnp.dot(a, w1b_ref[kh], preferred_element_type=f32)
            acc = c if acc is None else acc + c
        a1 = jnp.maximum(acc + b1, 0.0)                            # (12*bb, 256)
        v = jnp.maximum(a1[:, 0:128], a1[:, 128:256])              # pool over wi
        r1 = v if r1 is None else jnp.maximum(r1, v)               # pool over hi
    # r1: (12*bb, 128), rows = ho*bb + b, lanes = wo*8 + ic (lanes 96.. are 0)

    # ---- conv2 + bias + ReLU (pool2-over-j folded into the banded weight) --------
    acc2 = None
    for kh in range(5):
        a = r1[kh * bb:(kh + 8) * bb, :]                           # rows = (i, b)
        c = jnp.dot(a, w2b_ref[kh], preferred_element_type=f32)
        acc2 = c if acc2 is None else acc2 + c
    a2 = jnp.maximum(acc2 + b2v_ref[...], 0.0)                     # (8*bb, 256)
    a2 = jnp.maximum(a2[:, 0:128], a2[:, 128:256])                 # pool over ji
    # a2: (8*bb, 128), rows = i*bb + b, lanes = jo*16 + oc2 (lanes 64.. are 0)

    # ---- pool2 over i + NCHW flatten + fc1 (4 dots, one per pooled row io) -------
    h1 = None
    for io in range(4):
        v = jnp.maximum(a2[(2 * io) * bb:(2 * io + 1) * bb, :],
                        a2[(2 * io + 1) * bb:(2 * io + 2) * bb, :])   # (bb, 128)
        c = jnp.dot(v, w1r_ref[io], preferred_element_type=f32)
        h1 = c if h1 is None else h1 + c
    h1 = jnp.maximum(h1 + b1f_ref[...], 0.0)                       # (bb, 128)

    # ---- fc2 -> ReLU -> fc3 --------------------------------------------------------
    h2 = jnp.dot(h1, w2r_ref[...], preferred_element_type=f32)
    h2 = jnp.maximum(h2 + b2f_ref[...], 0.0)
    o_ref[...] = jnp.dot(h2, w3r_ref[...],
                         preferred_element_type=f32) + b3f_ref[...]   # (bb, 128)


# ------------------------------ parameter repacking ------------------------------

def prepare_params(params):
    """One-time repack of PyTorch-layout parameters for the fused kernel."""
    (w_c1, b_c1, w_c2, b_c2, w_f1, b_f1, w_f2, b_f2, w_f3, b_f3) = [
        np.asarray(p, np.float32) for p in params]

    # conv1 banded weight: K = image column w (28 -> 32),
    # N = wi*128 + wo*8 + oc  (pool1-over-wi = max of two lane groups).
    w1t = np.transpose(w_c1.reshape(8, 5, 5), (1, 2, 0))          # (kh, kw, oc)
    w1b = np.zeros((5, 32, 256), np.float32)
    b1v = np.zeros((1, 256), np.float32)
    for wi in range(2):
        for wo in range(12):
            w = 2 * wo + wi
            col = wi * 128 + wo * 8
            w1b[:, w:w + 5, col:col + 8] = w1t
            b1v[0, col:col + 8] = b_c1

    # conv2 banded weight: K = wo*8 + ic (96 -> 128),
    # N = ji*128 + jo*16 + oc2 (pool2-over-j = max of two lane groups).
    w2t = np.transpose(w_c2, (2, 3, 1, 0))                        # (kh, kw, ic, oc2)
    w2b = np.zeros((5, 128, 256), np.float32)
    b2v = np.zeros((1, 256), np.float32)
    for ji in range(2):
        for jo in range(4):
            j = 2 * jo + ji
            col = ji * 128 + jo * 16
            for kw in range(5):
                w = j + kw
                w2b[:, w * 8:w * 8 + 8, col:col + 16] = w2t[:, kw]
            b2v[0, col:col + 16] = b_c2

    # fc1: fold PyTorch's NCHW flatten (idx = oc2*16 + io*4 + jo) into four
    # (K=128, N=128) blocks, one per pooled row io; K lanes = jo*16 + oc2.
    w1r = np.zeros((4, 128, 128), np.float32)
    t = w_f1.reshape(120, 16, 4, 4).transpose(2, 3, 1, 0)          # (io, jo, oc2, n)
    w1r[:, :64, :120] = t.reshape(4, 64, 120)
    b1f = np.zeros((1, 128), np.float32)
    b1f[0, :120] = b_f1

    # fc2 / fc3, zero-padded to 128 lanes.
    w2r = np.zeros((128, 128), np.float32); w2r[:120, :84] = w_f2.T
    b2f = np.zeros((1, 128), np.float32);   b2f[0, :84] = b_f2
    w3r = np.zeros((128, 128), np.float32); w3r[:84, :10] = w_f3.T
    b3f = np.zeros((1, 128), np.float32);   b3f[0, :10] = b_f3

    return tuple(jnp.asarray(a) for a in
                 (w1b, b1v, w2b, b2v, w1r, b1f, w2r, b2f, w3r, b3f))


# ------------------------------ batch-block selection -----------------------------

def _choose_blocks(B):
    """(bb, bp, nblk): batch rows per grid step, padded batch, #grid steps.

    Live in-kernel footprint is ~40 KiB / batch row (conv1/conv2 accumulators)
    plus ~2.5 MiB of double-buffered repacked weights, so bb=128 stays far
    below the explicit 48 MiB VMEM limit on every generation (v7x: 64 MiB
    physical, v6e/v5e: 128 MiB).  For multi-block batches the block count is
    kept even so dimension_semantics=("parallel",) can shard the grid across
    v7x's two TensorCores.
    """
    BB_MAX = 128
    bp = ((B + 7) // 8) * 8
    if bp < 16:
        return bp, bp, 1
    nblk = max(2, -(-bp // BB_MAX))
    if nblk % 2:
        nblk += 1
    bb = ((-(-bp // nblk)) + 7) // 8 * 8
    return bb, bb * nblk, nblk


# ------------------------------ forward wrapper -----------------------------------

def mnistnet_forward(x, prep):
    """Full MnistNet.forward(start=0, end=10).  x: (B, 1, 28, 28) float32."""
    (w1b, b1v, w2b, b2v, w1r, b1f, w2r, b2f, w3r, b3f) = prep
    B = x.shape[0]
    bb, bp, nblk = _choose_blocks(B)

    # Ship raw pixels only (~3.5 KiB/image).  Rows are split by parity so the
    # kernel's stride-2 pool-1 windows become unit-stride row slices; batch is
    # placed minor (sublane dim) so in-kernel row folds are tile aligned.
    xs = x.reshape(B, 28, 28).astype(jnp.float32)
    xp = jnp.transpose(xs.reshape(B, 14, 2, 28), (2, 1, 0, 3))     # (p, r, b, w)
    xp = jnp.pad(xp, ((0, 0), (0, 0), (0, bp - B), (0, 4)))        # (2, 14, bp, 32)

    def wspec(shape):
        return pl.BlockSpec(shape, lambda g: (0,) * len(shape))

    out = pl.pallas_call(
        _mnistnet_fused_kernel,
        out_shape=jax.ShapeDtypeStruct((bp, 128), jnp.float32),
        grid=(nblk,),
        in_specs=[
            pl.BlockSpec((2, 14, bb, 32), lambda g: (0, 0, g, 0)),   # raw pixels
            wspec((5, 32, 256)), wspec((1, 256)),                    # conv1 band
            wspec((5, 128, 256)), wspec((1, 256)),                   # conv2 band
            wspec((4, 128, 128)), wspec((1, 128)),                   # fc1 blocks
            wspec((128, 128)), wspec((1, 128)),                      # fc2
            wspec((128, 128)), wspec((1, 128)),                      # fc3
        ],
        out_specs=pl.BlockSpec((bb, 128), lambda g: (g, 0)),
        compiler_params=pltpu.CompilerParams(
            dimension_semantics=("parallel",),
            vmem_limit_bytes=48 * 1024 * 1024),
    )(xp, w1b, b1v, w2b, b2v, w1r, b1f, w2r, b2f, w3r, b3f)

    return out[:B, :10]


# ------------------------------ reference & params -------------------------------

def mnistnet_reference(x, params):
    """Independent pure-XLA reference of the same forward pass."""
    (w_c1, b_c1, w_c2, b_c2, w_f1, b_f1, w_f2, b_f2, w_f3, b_f3) = params
    hi = jax.lax.Precision.HIGHEST
    y = jax.lax.conv_general_dilated(
        x, w_c1, (1, 1), 'VALID',
        dimension_numbers=('NCHW', 'OIHW', 'NCHW'), precision=hi)
    y = jnp.maximum(y + b_c1.reshape(1, -1, 1, 1), 0.0)
    y = jax.lax.reduce_window(y, -jnp.inf, jax.lax.max,
                              (1, 1, 2, 2), (1, 1, 2, 2), 'VALID')
    y = jax.lax.conv_general_dilated(
        y, w_c2, (1, 1), 'VALID',
        dimension_numbers=('NCHW', 'OIHW', 'NCHW'), precision=hi)
    y = jnp.maximum(y + b_c2.reshape(1, -1, 1, 1), 0.0)
    y = jax.lax.reduce_window(y, -jnp.inf, jax.lax.max,
                              (1, 1, 2, 2), (1, 1, 2, 2), 'VALID')
    y = y.reshape(y.shape[0], -1)
    y = jnp.maximum(jnp.dot(y, w_f1.T, precision=hi) + b_f1, 0.0)
    y = jnp.maximum(jnp.dot(y, w_f2.T, precision=hi) + b_f2, 0.0)
    return jnp.dot(y, w_f3.T, precision=hi) + b_f3


def init_params(key):
    """Deterministic synthetic parameters with MnistNet's shapes."""
    ks = jax.random.split(key, 10)

    def u(k, shape, fan_in):
        bound = 1.0 / jnp.sqrt(fan_in)
        return jax.random.uniform(k, shape, jnp.float32, -bound, bound)

    w_c1 = u(ks[0], (8, 1, 5, 5), 1 * 5 * 5)
    b_c1 = u(ks[1], (8,), 1 * 5 * 5)
    w_c2 = u(ks[2], (16, 8, 5, 5), 8 * 5 * 5)
    b_c2 = u(ks[3], (16,), 8 * 5 * 5)
    w_f1 = u(ks[4], (120, 256), 256)
    b_f1 = u(ks[5], (120,), 256)
    w_f2 = u(ks[6], (84, 120), 120)
    b_f2 = u(ks[7], (84,), 120)
    w_f3 = u(ks[8], (10, 84), 84)
    b_f3 = u(ks[9], (10,), 84)
    return (w_c1, b_c1, w_c2, b_c2, w_f1, b_f1, w_f2, b_f2, w_f3, b_f3)


if __name__ == "__main__":
    key = jax.random.PRNGKey(0)
    k_x, k_p = jax.random.split(key)

    # MNIST-shaped input (feature_dims = 16*4*4 forces 28x28, 1 channel); batch=2.
    x = jax.random.normal(k_x, (2, 1, 28, 28), dtype=jnp.float32)
    params = init_params(k_p)
    prep = prepare_params(params)          # one-time weight repack (host-side)

    out = jax.block_until_ready(jax.jit(mnistnet_forward)(x, prep))
    assert out.shape == (2, 10)

    ref = jax.block_until_ready(jax.jit(mnistnet_reference)(x, params))
    max_err = float(jnp.max(jnp.abs(out - ref)))
    assert jnp.allclose(out, ref, atol=1e-3, rtol=1e-3), max_err

    print("KERNEL_OK")
</pallas_src>

<mosaic_0001>
module attributes {stable_mosaic.version = 11 : i64} {
  func.func @_mnistnet_fused_kernel(%arg0: i32, %arg1: memref<2x14x8x32xf32, #tpu.memory_space<vmem>>, %arg2: memref<5x32x256xf32, #tpu.memory_space<vmem>>, %arg3: memref<1x256xf32, #tpu.memory_space<vmem>>, %arg4: memref<5x128x256xf32, #tpu.memory_space<vmem>>, %arg5: memref<1x256xf32, #tpu.memory_space<vmem>>, %arg6: memref<4x128x128xf32, #tpu.memory_space<vmem>>, %arg7: memref<1x128xf32, #tpu.memory_space<vmem>>, %arg8: memref<128x128xf32, #tpu.memory_space<vmem>>, %arg9: memref<1x128xf32, #tpu.memory_space<vmem>>, %arg10: memref<128x128xf32, #tpu.memory_space<vmem>>, %arg11: memref<1x128xf32, #tpu.memory_space<vmem>>, %arg12: memref<8x128xf32, #tpu.memory_space<vmem>>) attributes {dimension_semantics = [#tpu.dimension_semantics<parallel>], iteration_bounds = array<i64: 1>, scalar_prefetch = 0 : i64, scratch_operands = 0 : i64, tpu.core_type = #tpu.core_type<tc>, window_params = [{transform_indices = @transform_0, window_bounds = array<i64: 2, 14, 8, 32>}, {pipeline_mode = #tpu.pipeline_mode<synchronous>, transform_indices = @transform_1, window_bounds = array<i64: 5, 32, 256>}, {pipeline_mode = #tpu.pipeline_mode<synchronous>, transform_indices = @transform_2, window_bounds = array<i64: 1, 256>}, {pipeline_mode = #tpu.pipeline_mode<synchronous>, transform_indices = @transform_3, window_bounds = array<i64: 5, 128, 256>}, {pipeline_mode = #tpu.pipeline_mode<synchronous>, transform_indices = @transform_4, window_bounds = array<i64: 1, 256>}, {pipeline_mode = #tpu.pipeline_mode<synchronous>, transform_indices = @transform_5, window_bounds = array<i64: 4, 128, 128>}, {pipeline_mode = #tpu.pipeline_mode<synchronous>, transform_indices = @transform_6, window_bounds = array<i64: 1, 128>}, {pipeline_mode = #tpu.pipeline_mode<synchronous>, transform_indices = @transform_7, window_bounds = array<i64: 128, 128>}, {pipeline_mode = #tpu.pipeline_mode<synchronous>, transform_indices = @transform_8, window_bounds = array<i64: 1, 128>}, {pipeline_mode = #tpu.pipeline_mode<synchronous>, transform_indices = @transform_9, window_bounds = array<i64: 128, 128>}, {pipeline_mode = #tpu.pipeline_mode<synchronous>, transform_indices = @transform_10, window_bounds = array<i64: 1, 128>}, {transform_indices = @transform_11, window_bounds = array<i64: 8, 128>}]} {
    %c0 = arith.constant 0 : index
    %c0_0 = arith.constant 0 : index
    %0 = vector.load %arg3[%c0, %c0_0] : memref<1x256xf32, #tpu.memory_space<vmem>>, vector<1x256xf32>
    %c0_1 = arith.constant 0 : index
    %c0_2 = arith.constant 0 : index
    %c0_3 = arith.constant 0 : index
    %c0_4 = arith.constant 0 : index
    %1 = vector.load %arg1[%c0_1, %c0_2, %c0_3, %c0_4] : memref<2x14x8x32xf32, #tpu.memory_space<vmem>>, vector<1x12x8x32xf32>
    %2 = vector.shape_cast %1 : vector<1x12x8x32xf32> to vector<12x8x32xf32>
    %3 = vector.shape_cast %2 : vector<12x8x32xf32> to vector<96x32xf32>
    %c0_5 = arith.constant 0 : index
    %c0_6 = arith.constant 0 : index
    %c0_7 = arith.constant 0 : index
    %4 = vector.load %arg2[%c0_5, %c0_6, %c0_7] : memref<5x32x256xf32, #tpu.memory_space<vmem>>, vector<1x32x256xf32>
    %5 = vector.shape_cast %4 : vector<1x32x256xf32> to vector<32x256xf32>
    %cst = arith.constant dense<0.000000e+00> : vector<96x256xf32>
    %6 = tpu.matmul %3, %5, %cst {dimension_numbers = #tpu.dot_dimension_numbers<[1], [0], [0], [1], [0, 0, 1, 1], [], []>} : vector<96x32xf32>, vector<32x256xf32>, vector<96x256xf32> -> vector<96x256xf32>
    %c1 = arith.constant 1 : index
    %c0_8 = arith.constant 0 : index
    %c0_9 = arith.constant 0 : index
    %c0_10 = arith.constant 0 : index
    %7 = vector.load %arg1[%c1, %c0_8, %c0_9, %c0_10] : memref<2x14x8x32xf32, #tpu.memory_space<vmem>>, vector<1x12x8x32xf32>
    %8 = vector.shape_cast %7 : vector<1x12x8x32xf32> to vector<12x8x32xf32>
    %9 = vector.shape_cast %8 : vector<12x8x32xf32> to vector<96x32xf32>
    %c1_11 = arith.constant 1 : index
    %c0_12 = arith.constant 0 : index
    %c0_13 = arith.constant 0 : index
    %10 = vector.load %arg2[%c1_11, %c0_12, %c0_13] : memref<5x32x256xf32, #tpu.memory_space<vmem>>, vector<1x32x256xf32>
    %11 = vector.shape_cast %10 : vector<1x32x256xf32> to vector<32x256xf32>
    %cst_14 = arith.constant dense<0.000000e+00> : vector<96x256xf32>
    %12 = tpu.matmul %9, %11, %cst_14 {dimension_numbers = #tpu.dot_dimension_numbers<[1], [0], [0], [1], [0, 0, 1, 1], [], []>} : vector<96x32xf32>, vector<32x256xf32>, vector<96x256xf32> -> vector<96x256xf32>
    %13 = arith.addf %6, %12 : vector<96x256xf32>
    %c0_15 = arith.constant 0 : index
    %c1_16 = arith.constant 1 : index
    %c0_17 = arith.constant 0 : index
    %c0_18 = arith.constant 0 : index
    %14 = vector.load %arg1[%c0_15, %c1_16, %c0_17, %c0_18] : memref<2x14x8x32xf32, #tpu.memory_space<vmem>>, vector<1x12x8x32xf32>
    %15 = vector.shape_cast %14 : vector<1x12x8x32xf32> to vector<12x8x32xf32>
    %16 = vector.shape_cast %15 : vector<12x8x32xf32> to vector<96x32xf32>
    %c2 = arith.constant 2 : index
    %c0_19 = arith.constant 0 : index
    %c0_20 = arith.constant 0 : index
    %17 = vector.load %arg2[%c2, %c0_19, %c0_20] : memref<5x32x256xf32, #tpu.memory_space<vmem>>, vector<1x32x256xf32>
    %18 = vector.shape_cast %17 : vector<1x32x256xf32> to vector<32x256xf32>
    %cst_21 = arith.constant dense<0.000000e+00> : vector<96x256xf32>
    %19 = tpu.matmul %16, %18, %cst_21 {dimension_numbers = #tpu.dot_dimension_numbers<[1], [0], [0], [1], [0, 0, 1, 1], [], []>} : vector<96x32xf32>, vector<32x256xf32>, vector<96x256xf32> -> vector<96x256xf32>
    %20 = arith.addf %13, %19 : vector<96x256xf32>
    %c1_22 = arith.constant 1 : index
    %c1_23 = arith.constant 1 : index
    %c0_24 = arith.constant 0 : index
    %c0_25 = arith.constant 0 : index
    %21 = vector.load %arg1[%c1_22, %c1_23, %c0_24, %c0_25] : memref<2x14x8x32xf32, #tpu.memory_space<vmem>>, vector<1x12x8x32xf32>
    %22 = vector.shape_cast %21 : vector<1x12x8x32xf32> to vector<12x8x32xf32>
    %23 = vector.shape_cast %22 : vector<12x8x32xf32> to vector<96x32xf32>
    %c3 = arith.constant 3 : index
    %c0_26 = arith.constant 0 : index
    %c0_27 = arith.constant 0 : index
    %24 = vector.load %arg2[%c3, %c0_26, %c0_27] : memref<5x32x256xf32, #tpu.memory_space<vmem>>, vector<1x32x256xf32>
    %25 = vector.shape_cast %24 : vector<1x32x256xf32> to vector<32x256xf32>
    %cst_28 = arith.constant dense<0.000000e+00> : vector<96x256xf32>
    %26 = tpu.matmul %23, %25, %cst_28 {dimension_numbers = #tpu.dot_dimension_numbers<[1], [0], [0], [1], [0, 0, 1, 1], [], []>} : vector<96x32xf32>, vector<32x256xf32>, vector<96x256xf32> -> vector<96x256xf32>
    %27 = arith.addf %20, %26 : vector<96x256xf32>
    %c0_29 = arith.constant 0 : index
    %c2_30 = arith.constant 2 : index
    %c0_31 = arith.constant 0 : index
    %c0_32 = arith.constant 0 : index
    %28 = vector.load %arg1[%c0_29, %c2_30, %c0_31, %c0_32] : memref<2x14x8x32xf32, #tpu.memory_space<vmem>>, vector<1x12x8x32xf32>
    %29 = vector.shape_cast %28 : vector<1x12x8x32xf32> to vector<12x8x32xf32>
    %30 = vector.shape_cast %29 : vector<12x8x32xf32> to vector<96x32xf32>
    %c4 = arith.constant 4 : index
    %c0_33 = arith.constant 0 : index
    %c0_34 = arith.constant 0 : index
    %31 = vector.load %arg2[%c4, %c0_33, %c0_34] : memref<5x32x256xf32, #tpu.memory_space<vmem>>, vector<1x32x256xf32>
    %32 = vector.shape_cast %31 : vector<1x32x256xf32> to vector<32x256xf32>
    %cst_35 = arith.constant dense<0.000000e+00> : vector<96x256xf32>
    %33 = tpu.matmul %30, %32, %cst_35 {dimension_numbers = #tpu.dot_dimension_numbers<[1], [0], [0], [1], [0, 0, 1, 1], [], []>} : vector<96x32xf32>, vector<32x256xf32>, vector<96x256xf32> -> vector<96x256xf32>
    %34 = arith.addf %27, %33 : vector<96x256xf32>
    %35 = vector.broadcast %0 : vector<1x256xf32> to vector<96x256xf32>
    %36 = arith.addf %34, %35 : vector<96x256xf32>
    %cst_36 = arith.constant 0.000000e+00 : f32
    %37 = vector.broadcast %cst_36 : f32 to vector<96x256xf32>
    %38 = arith.maximumf %36, %37 : vector<96x256xf32>
    %39 = vector.extract_strided_slice %38 {offsets = [0, 0], sizes = [96, 128], strides = [1, 1]} : vector<96x256xf32> to vector<96x128xf32>
    %40 = vector.extract_strided_slice %38 {offsets = [0, 128], sizes = [96, 128], strides = [1, 1]} : vector<96x256xf32> to vector<96x128xf32>
    %41 = arith.maximumf %39, %40 : vector<96x128xf32>
    %c1_37 = arith.constant 1 : index
    %c0_38 = arith.constant 0 : index
    %c0_39 = arith.constant 0 : index
    %c0_40 = arith.constant 0 : index
    %42 = vector.load %arg1[%c1_37, %c0_38, %c0_39, %c0_40] : memref<2x14x8x32xf32, #tpu.memory_space<vmem>>, vector<1x12x8x32xf32>
    %43 = vector.shape_cast %42 : vector<1x12x8x32xf32> to vector<12x8x32xf32>
    %44 = vector.shape_cast %43 : vector<12x8x32xf32> to vector<96x32xf32>
    %c0_41 = arith.constant 0 : index
    %c0_42 = arith.constant 0 : index
    %c0_43 = arith.constant 0 : index
    %45 = vector.load %arg2[%c0_41, %c0_42, %c0_43] : memref<5x32x256xf32, #tpu.memory_space<vmem>>, vector<1x32x256xf32>
    %46 = vector.shape_cast %45 : vector<1x32x256xf32> to vector<32x256xf32>
    %cst_44 = arith.constant dense<0.000000e+00> : vector<96x256xf32>
    %47 = tpu.matmul %44, %46, %cst_44 {dimension_numbers = #tpu.dot_dimension_numbers<[1], [0], [0], [1], [0, 0, 1, 1], [], []>} : vector<96x32xf32>, vector<32x256xf32>, vector<96x256xf32> -> vector<96x256xf32>
    %c0_45 = arith.constant 0 : index
    %c1_46 = arith.constant 1 : index
    %c0_47 = arith.constant 0 : index
    %c0_48 = arith.constant 0 : index
    %48 = vector.load %arg1[%c0_45, %c1_46, %c0_47, %c0_48] : memref<2x14x8x32xf32, #tpu.memory_space<vmem>>, vector<1x12x8x32xf32>
    %49 = vector.shape_cast %48 : vector<1x12x8x32xf32> to vector<12x8x32xf32>
    %50 = vector.shape_cast %49 : vector<12x8x32xf32> to vector<96x32xf32>
    %c1_49 = arith.constant 1 : index
    %c0_50 = arith.constant 0 : index
    %c0_51 = arith.constant 0 : index
    %51 = vector.load %arg2[%c1_49, %c0_50, %c0_51] : memref<5x32x256xf32, #tpu.memory_space<vmem>>, vector<1x32x256xf32>
    %52 = vector.shape_cast %51 : vector<1x32x256xf32> to vector<32x256xf32>
    %cst_52 = arith.constant dense<0.000000e+00> : vector<96x256xf32>
    %53 = tpu.matmul %50, %52, %cst_52 {dimension_numbers = #tpu.dot_dimension_numbers<[1], [0], [0], [1], [0, 0, 1, 1], [], []>} : vector<96x32xf32>, vector<32x256xf32>, vector<96x256xf32> -> vector<96x256xf32>
    %54 = arith.addf %47, %53 : vector<96x256xf32>
    %c1_53 = arith.constant 1 : index
    %c1_54 = arith.constant 1 : index
    %c0_55 = arith.constant 0 : index
    %c0_56 = arith.constant 0 : index
    %55 = vector.load %arg1[%c1_53, %c1_54, %c0_55, %c0_56] : memref<2x14x8x32xf32, #tpu.memory_space<vmem>>, vector<1x12x8x32xf32>
    %56 = vector.shape_cast %55 : vector<1x12x8x32xf32> to vector<12x8x32xf32>
    %57 = vector.shape_cast %56 : vector<12x8x32xf32> to vector<96x32xf32>
    %c2_57 = arith.constant 2 : index
    %c0_58 = arith.constant 0 : index
    %c0_59 = arith.constant 0 : index
    %58 = vector.load %arg2[%c2_57, %c0_58, %c0_59] : memref<5x32x256xf32, #tpu.memory_space<vmem>>, vector<1x32x256xf32>
    %59 = vector.shape_cast %58 : vector<1x32x256xf32> to vector<32x256xf32>
    %cst_60 = arith.constant dense<0.000000e+00> : vector<96x256xf32>
    %60 = tpu.matmul %57, %59, %cst_60 {dimension_numbers = #tpu.dot_dimension_numbers<[1], [0], [0], [1], [0, 0, 1, 1], [], []>} : vector<96x32xf32>, vector<32x256xf32>, vector<96x256xf32> -> vector<96x256xf32>
    %61 = arith.addf %54, %60 : vector<96x256xf32>
    %c0_61 = arith.constant 0 : index
    %c2_62 = arith.constant 2 : index
    %c0_63 = arith.constant 0 : index
    %c0_64 = arith.constant 0 : index
    %62 = vector.load %arg1[%c0_61, %c2_62, %c0_63, %c0_64] : memref<2x14x8x32xf32, #tpu.memory_space<vmem>>, vector<1x12x8x32xf32>
    %63 = vector.shape_cast %62 : vector<1x12x8x32xf32> to vector<12x8x32xf32>
    %64 = vector.shape_cast %63 : vector<12x8x32xf32> to vector<96x32xf32>
    %c3_65 = arith.constant 3 : index
    %c0_66 = arith.constant 0 : index
    %c0_67 = arith.constant 0 : index
    %65 = vector.load %arg2[%c3_65, %c0_66, %c0_67] : memref<5x32x256xf32, #tpu.memory_space<vmem>>, vector<1x32x256xf32>
    %66 = vector.shape_cast %65 : vector<1x32x256xf32> to vector<32x256xf32>
    %cst_68 = arith.constant dense<0.000000e+00> : vector<96x256xf32>
    %67 = tpu.matmul %64, %66, %cst_68 {dimension_numbers = #tpu.dot_dimension_numbers<[1], [0], [0], [1], [0, 0, 1, 1], [], []>} : vector<96x32xf32>, vector<32x256xf32>, vector<96x256xf32> -> vector<96x256xf32>
    %68 = arith.addf %61, %67 : vector<96x256xf32>
    %c1_69 = arith.constant 1 : index
    %c2_70 = arith.constant 2 : index
    %c0_71 = arith.constant 0 : index
    %c0_72 = arith.constant 0 : index
    %69 = vector.load %arg1[%c1_69, %c2_70, %c0_71, %c0_72] : memref<2x14x8x32xf32, #tpu.memory_space<vmem>>, vector<1x12x8x32xf32>
    %70 = vector.shape_cast %69 : vector<1x12x8x32xf32> to vector<12x8x32xf32>
    %71 = vector.shape_cast %70 : vector<12x8x32xf32> to vector<96x32xf32>
    %c4_73 = arith.constant 4 : index
    %c0_74 = arith.constant 0 : index
    %c0_75 = arith.constant 0 : index
    %72 = vector.load %arg2[%c4_73, %c0_74, %c0_75] : memref<5x32x256xf32, #tpu.memory_space<vmem>>, vector<1x32x256xf32>
    %73 = vector.shape_cast %72 : vector<1x32x256xf32> to vector<32x256xf32>
    %cst_76 = arith.constant dense<0.000000e+00> : vector<96x256xf32>
    %74 = tpu.matmul %71, %73, %cst_76 {dimension_numbers = #tpu.dot_dimension_numbers<[1], [0], [0], [1], [0, 0, 1, 1], [], []>} : vector<96x32xf32>, vector<32x256xf32>, vector<96x256xf32> -> vector<96x256xf32>
    %75 = arith.addf %68, %74 : vector<96x256xf32>
    %76 = vector.broadcast %0 : vector<1x256xf32> to vector<96x256xf32>
    %77 = arith.addf %75, %76 : vector<96x256xf32>
    %cst_77 = arith.constant 0.000000e+00 : f32
    %78 = vector.broadcast %cst_77 : f32 to vector<96x256xf32>
    %79 = arith.maximumf %77, %78 : vector<96x256xf32>
    %80 = vector.extract_strided_slice %79 {offsets = [0, 0], sizes = [96, 128], strides = [1, 1]} : vector<96x256xf32> to vector<96x128xf32>
    %81 = vector.extract_strided_slice %79 {offsets = [0, 128], sizes = [96, 128], strides = [1, 1]} : vector<96x256xf32> to vector<96x128xf32>
    %82 = arith.maximumf %80, %81 : vector<96x128xf32>
    %83 = arith.maximumf %41, %82 : vector<96x128xf32>
    %84 = vector.extract_strided_slice %83 {offsets = [0, 0], sizes = [64, 128], strides = [1, 1]} : vector<96x128xf32> to vector<64x128xf32>
    %c0_78 = arith.constant 0 : index
    %c0_79 = arith.constant 0 : index
    %c0_80 = arith.constant 0 : index
    %85 = vector.load %arg4[%c0_78, %c0_79, %c0_80] : memref<5x128x256xf32, #tpu.memory_space<vmem>>, vector<1x128x256xf32>
    %86 = vector.shape_cast %85 : vector<1x128x256xf32> to vector<128x256xf32>
    %cst_81 = arith.constant dense<0.000000e+00> : vector<64x256xf32>
    %87 = tpu.matmul %84, %86, %cst_81 {dimension_numbers = #tpu.dot_dimension_numbers<[1], [0], [0], [1], [0, 0, 1, 1], [], []>} : vector<64x128xf32>, vector<128x256xf32>, vector<64x256xf32> -> vector<64x256xf32>
    %88 = vector.extract_strided_slice %83 {offsets = [8, 0], sizes = [64, 128], strides = [1, 1]} : vector<96x128xf32> to vector<64x128xf32>
    %c1_82 = arith.constant 1 : index
    %c0_83 = arith.constant 0 : index
    %c0_84 = arith.constant 0 : index
    %89 = vector.load %arg4[%c1_82, %c0_83, %c0_84] : memref<5x128x256xf32, #tpu.memory_space<vmem>>, vector<1x128x256xf32>
    %90 = vector.shape_cast %89 : vector<1x128x256xf32> to vector<128x256xf32>
    %cst_85 = arith.constant dense<0.000000e+00> : vector<64x256xf32>
    %91 = tpu.matmul %88, %90, %cst_85 {dimension_numbers = #tpu.dot_dimension_numbers<[1], [0], [0], [1], [0, 0, 1, 1], [], []>} : vector<64x128xf32>, vector<128x256xf32>, vector<64x256xf32> -> vector<64x256xf32>
    %92 = arith.addf %87, %91 : vector<64x256xf32>
    %93 = vector.extract_strided_slice %83 {offsets = [16, 0], sizes = [64, 128], strides = [1, 1]} : vector<96x128xf32> to vector<64x128xf32>
    %c2_86 = arith.constant 2 : index
    %c0_87 = arith.constant 0 : index
    %c0_88 = arith.constant 0 : index
    %94 = vector.load %arg4[%c2_86, %c0_87, %c0_88] : memref<5x128x256xf32, #tpu.memory_space<vmem>>, vector<1x128x256xf32>
    %95 = vector.shape_cast %94 : vector<1x128x256xf32> to vector<128x256xf32>
    %cst_89 = arith.constant dense<0.000000e+00> : vector<64x256xf32>
    %96 = tpu.matmul %93, %95, %cst_89 {dimension_numbers = #tpu.dot_dimension_numbers<[1], [0], [0], [1], [0, 0, 1, 1], [], []>} : vector<64x128xf32>, vector<128x256xf32>, vector<64x256xf32> -> vector<64x256xf32>
    %97 = arith.addf %92, %96 : vector<64x256xf32>
    %98 = vector.extract_strided_slice %83 {offsets = [24, 0], sizes = [64, 128], strides = [1, 1]} : vector<96x128xf32> to vector<64x128xf32>
    %c3_90 = arith.constant 3 : index
    %c0_91 = arith.constant 0 : index
    %c0_92 = arith.constant 0 : index
    %99 = vector.load %arg4[%c3_90, %c0_91, %c0_92] : memref<5x128x256xf32, #tpu.memory_space<vmem>>, vector<1x128x256xf32>
    %100 = vector.shape_cast %99 : vector<1x128x256xf32> to vector<128x256xf32>
    %cst_93 = arith.constant dense<0.000000e+00> : vector<64x256xf32>
    %101 = tpu.matmul %98, %100, %cst_93 {dimension_numbers = #tpu.dot_dimension_numbers<[1], [0], [0], [1], [0, 0, 1, 1], [], []>} : vector<64x128xf32>, vector<128x256xf32>, vector<64x256xf32> -> vector<64x256xf32>
    %102 = arith.addf %97, %101 : vector<64x256xf32>
    %103 = vector.extract_strided_slice %83 {offsets = [32, 0], sizes = [64, 128], strides = [1, 1]} : vector<96x128xf32> to vector<64x128xf32>
    %c4_94 = arith.constant 4 : index
    %c0_95 = arith.constant 0 : index
    %c0_96 = arith.constant 0 : index
    %104 = vector.load %arg4[%c4_94, %c0_95, %c0_96] : memref<5x128x256xf32, #tpu.memory_space<vmem>>, vector<1x128x256xf32>
    %105 = vector.shape_cast %104 : vector<1x128x256xf32> to vector<128x256xf32>
    %cst_97 = arith.constant dense<0.000000e+00> : vector<64x256xf32>
    %106 = tpu.matmul %103, %105, %cst_97 {dimension_numbers = #tpu.dot_dimension_numbers<[1], [0], [0], [1], [0, 0, 1, 1], [], []>} : vector<64x128xf32>, vector<128x256xf32>, vector<64x256xf32> -> vector<64x256xf32>
    %107 = arith.addf %102, %106 : vector<64x256xf32>
    %c0_98 = arith.constant 0 : index
    %c0_99 = arith.constant 0 : index
    %108 = vector.load %arg5[%c0_98, %c0_99] : memref<1x256xf32, #tpu.memory_space<vmem>>, vector<1x256xf32>
    %109 = vector.broadcast %108 : vector<1x256xf32> to vector<64x256xf32>
    %110 = arith.addf %107, %109 : vector<64x256xf32>
    %cst_100 = arith.constant 0.000000e+00 : f32
    %111 = vector.broadcast %cst_100 : f32 to vector<64x256xf32>
    %112 = arith.maximumf %110, %111 : vector<64x256xf32>
    %113 = vector.extract_strided_slice %112 {offsets = [0, 0], sizes = [64, 128], strides = [1, 1]} : vector<64x256xf32> to vector<64x128xf32>
    %114 = vector.extract_strided_slice %112 {offsets = [0, 128], sizes = [64, 128], strides = [1, 1]} : vector<64x256xf32> to vector<64x128xf32>
    %115 = arith.maximumf %113, %114 : vector<64x128xf32>
    %116 = vector.extract_strided_slice %115 {offsets = [0, 0], sizes = [8, 128], strides = [1, 1]} : vector<64x128xf32> to vector<8x128xf32>
    %117 = vector.extract_strided_slice %115 {offsets = [8, 0], sizes = [8, 128], strides = [1, 1]} : vector<64x128xf32> to vector<8x128xf32>
    %118 = arith.maximumf %116, %117 : vector<8x128xf32>
    %c0_101 = arith.constant 0 : index
    %c0_102 = arith.constant 0 : index
    %c0_103 = arith.constant 0 : index
    %119 = vector.load %arg6[%c0_101, %c0_102, %c0_103] : memref<4x128x128xf32, #tpu.memory_space<vmem>>, vector<1x128x128xf32>
    %120 = vector.shape_cast %119 : vector<1x128x128xf32> to vector<128x128xf32>
    %cst_104 = arith.constant dense<0.000000e+00> : vector<8x128xf32>
    %121 = tpu.matmul %118, %120, %cst_104 {dimension_numbers = #tpu.dot_dimension_numbers<[1], [0], [0], [1], [0, 0, 1, 1], [], []>} : vector<8x128xf32>, vector<128x128xf32>, vector<8x128xf32> -> vector<8x128xf32>
    %122 = vector.extract_strided_slice %115 {offsets = [16, 0], sizes = [8, 128], strides = [1, 1]} : vector<64x128xf32> to vector<8x128xf32>
    %123 = vector.extract_strided_slice %115 {offsets = [24, 0], sizes = [8, 128], strides = [1, 1]} : vector<64x128xf32> to vector<8x128xf32>
    %124 = arith.maximumf %122, %123 : vector<8x128xf32>
    %c1_105 = arith.constant 1 : index
    %c0_106 = arith.constant 0 : index
    %c0_107 = arith.constant 0 : index
    %125 = vector.load %arg6[%c1_105, %c0_106, %c0_107] : memref<4x128x128xf32, #tpu.memory_space<vmem>>, vector<1x128x128xf32>
    %126 = vector.shape_cast %125 : vector<1x128x128xf32> to vector<128x128xf32>
    %cst_108 = arith.constant dense<0.000000e+00> : vector<8x128xf32>
    %127 = tpu.matmul %124, %126, %cst_108 {dimension_numbers = #tpu.dot_dimension_numbers<[1], [0], [0], [1], [0, 0, 1, 1], [], []>} : vector<8x128xf32>, vector<128x128xf32>, vector<8x128xf32> -> vector<8x128xf32>
    %128 = arith.addf %121, %127 : vector<8x128xf32>
    %129 = vector.extract_strided_slice %115 {offsets = [32, 0], sizes = [8, 128], strides = [1, 1]} : vector<64x128xf32> to vector<8x128xf32>
    %130 = vector.extract_strided_slice %115 {offsets = [40, 0], sizes = [8, 128], strides = [1, 1]} : vector<64x128xf32> to vector<8x128xf32>
    %131 = arith.maximumf %129, %130 : vector<8x128xf32>
    %c2_109 = arith.constant 2 : index
    %c0_110 = arith.constant 0 : index
    %c0_111 = arith.constant 0 : index
    %132 = vector.load %arg6[%c2_109, %c0_110, %c0_111] : memref<4x128x128xf32, #tpu.memory_space<vmem>>, vector<1x128x128xf32>
    %133 = vector.shape_cast %132 : vector<1x128x128xf32> to vector<128x128xf32>
    %cst_112 = arith.constant dense<0.000000e+00> : vector<8x128xf32>
    %134 = tpu.matmul %131, %133, %cst_112 {dimension_numbers = #tpu.dot_dimension_numbers<[1], [0], [0], [1], [0, 0, 1, 1], [], []>} : vector<8x128xf32>, vector<128x128xf32>, vector<8x128xf32> -> vector<8x128xf32>
    %135 = arith.addf %128, %134 : vector<8x128xf32>
    %136 = vector.extract_strided_slice %115 {offsets = [48, 0], sizes = [8, 128], strides = [1, 1]} : vector<64x128xf32> to vector<8x128xf32>
    %137 = vector.extract_strided_slice %115 {offsets = [56, 0], sizes = [8, 128], strides = [1, 1]} : vector<64x128xf32> to vector<8x128xf32>
    %138 = arith.maximumf %136, %137 : vector<8x128xf32>
    %c3_113 = arith.constant 3 : index
    %c0_114 = arith.constant 0 : index
    %c0_115 = arith.constant 0 : index
    %139 = vector.load %arg6[%c3_113, %c0_114, %c0_115] : memref<4x128x128xf32, #tpu.memory_space<vmem>>, vector<1x128x128xf32>
    %140 = vector.shape_cast %139 : vector<1x128x128xf32> to vector<128x128xf32>
    %cst_116 = arith.constant dense<0.000000e+00> : vector<8x128xf32>
    %141 = tpu.matmul %138, %140, %cst_116 {dimension_numbers = #tpu.dot_dimension_numbers<[1], [0], [0], [1], [0, 0, 1, 1], [], []>} : vector<8x128xf32>, vector<128x128xf32>, vector<8x128xf32> -> vector<8x128xf32>
    %142 = arith.addf %135, %141 : vector<8x128xf32>
    %c0_117 = arith.constant 0 : index
    %c0_118 = arith.constant 0 : index
    %143 = vector.load %arg7[%c0_117, %c0_118] : memref<1x128xf32, #tpu.memory_space<vmem>>, vector<1x128xf32>
    %144 = vector.broadcast %143 : vector<1x128xf32> to vector<8x128xf32>
    %145 = arith.addf %142, %144 : vector<8x128xf32>
    %cst_119 = arith.constant 0.000000e+00 : f32
    %146 = vector.broadcast %cst_119 : f32 to vector<8x128xf32>
    %147 = arith.maximumf %145, %146 : vector<8x128xf32>
    %c0_120 = arith.constant 0 : index
    %c0_121 = arith.constant 0 : index
    %148 = vector.load %arg8[%c0_120, %c0_121] : memref<128x128xf32, #tpu.memory_space<vmem>>, vector<128x128xf32>
    %cst_122 = arith.constant dense<0.000000e+00> : vector<8x128xf32>
    %149 = tpu.matmul %147, %148, %cst_122 {dimension_numbers = #tpu.dot_dimension_numbers<[1], [0], [0], [1], [0, 0, 1, 1], [], []>} : vector<8x128xf32>, vector<128x128xf32>, vector<8x128xf32> -> vector<8x128xf32>
    %c0_123 = arith.constant 0 : index
    %c0_124 = arith.constant 0 : index
    %150 = vector.load %arg9[%c0_123, %c0_124] : memref<1x128xf32, #tpu.memory_space<vmem>>, vector<1x128xf32>
    %151 = vector.broadcast %150 : vector<1x128xf32> to vector<8x128xf32>
    %152 = arith.addf %149, %151 : vector<8x128xf32>
    %cst_125 = arith.constant 0.000000e+00 : f32
    %153 = vector.broadcast %cst_125 : f32 to vector<8x128xf32>
    %154 = arith.maximumf %152, %153 : vector<8x128xf32>
    %c0_126 = arith.constant 0 : index
    %c0_127 = arith.constant 0 : index
    %155 = vector.load %arg10[%c0_126, %c0_127] : memref<128x128xf32, #tpu.memory_space<vmem>>, vector<128x128xf32>
    %cst_128 = arith.constant dense<0.000000e+00> : vector<8x128xf32>
    %156 = tpu.matmul %154, %155, %cst_128 {dimension_numbers = #tpu.dot_dimension_numbers<[1], [0], [0], [1], [0, 0, 1, 1], [], []>} : vector<8x128xf32>, vector<128x128xf32>, vector<8x128xf32> -> vector<8x128xf32>
    %c0_129 = arith.constant 0 : index
    %c0_130 = arith.constant 0 : index
    %157 = vector.load %arg11[%c0_129, %c0_130] : memref<1x128xf32, #tpu.memory_space<vmem>>, vector<1x128xf32>
    %158 = vector.broadcast %157 : vector<1x128xf32> to vector<8x128xf32>
    %159 = arith.addf %156, %158 : vector<8x128xf32>
    %c0_131 = arith.constant 0 : index
    %c0_132 = arith.constant 0 : index
    %160 = vector.load %arg12[%c0_131, %c0_132] : memref<8x128xf32, #tpu.memory_space<vmem>>, vector<8x128xf32>
    tpu.vector_store %arg12[%c0_131, %c0_132], %159 {strides = array<i32>} : memref<8x128xf32, #tpu.memory_space<vmem>>, vector<8x128xf32>,
    return
  }
  func.func @transform_0(%arg0: i32) -> (i32, i32, i32, i32) {
    %c0_i32 = arith.constant 0 : i32
    %c0_i32_0 = arith.constant 0 : i32
    %c0_i32_1 = arith.constant 0 : i32
    %c0_i32_2 = arith.constant 0 : i32
    return %c0_i32, %c0_i32_0, %arg0, %c0_i32_1 : i32, i32, i32, i32
  }
  func.func @transform_1(%arg0: i32) -> (i32, i32, i32) {
    %c0_i32 = arith.constant 0 : i32
    %c0_i32_0 = arith.constant 0 : i32
    %c0_i32_1 = arith.constant 0 : i32
    %c0_i32_2 = arith.constant 0 : i32
    return %c0_i32, %c0_i32_0, %c0_i32_1 : i32, i32, i32
  }
  func.func @transform_2(%arg0: i32) -> (i32, i32) {
    %c0_i32 = arith.constant 0 : i32
    %c0_i32_0 = arith.constant 0 : i32
    %c0_i32_1 = arith.constant 0 : i32
    return %c0_i32, %c0_i32_0 : i32, i32
  }
  func.func @transform_3(%arg0: i32) -> (i32, i32, i32) {
    %c0_i32 = arith.constant 0 : i32
    %c0_i32_0 = arith.constant 0 : i32
    %c0_i32_1 = arith.constant 0 : i32
    %c0_i32_2 = arith.constant 0 : i32
    return %c0_i32, %c0_i32_0, %c0_i32_1 : i32, i32, i32
  }
  func.func @transform_4(%arg0: i32) -> (i32, i32) {
    %c0_i32 = arith.constant 0 : i32
    %c0_i32_0 = arith.constant 0 : i32
    %c0_i32_1 = arith.constant 0 : i32
    return %c0_i32, %c0_i32_0 : i32, i32
  }
  func.func @transform_5(%arg0: i32) -> (i32, i32, i32) {
    %c0_i32 = arith.constant 0 : i32
    %c0_i32_0 = arith.constant 0 : i32
    %c0_i32_1 = arith.constant 0 : i32
    %c0_i32_2 = arith.constant 0 : i32
    return %c0_i32, %c0_i32_0, %c0_i32_1 : i32, i32, i32
  }
  func.func @transform_6(%arg0: i32) -> (i32, i32) {
    %c0_i32 = arith.constant 0 : i32
    %c0_i32_0 = arith.constant 0 : i32
    %c0_i32_1 = arith.constant 0 : i32
    return %c0_i32, %c0_i32_0 : i32, i32
  }
  func.func @transform_7(%arg0: i32) -> (i32, i32) {
    %c0_i32 = arith.constant 0 : i32
    %c0_i32_0 = arith.constant 0 : i32
    %c0_i32_1 = arith.constant 0 : i32
    return %c0_i32, %c0_i32_0 : i32, i32
  }
  func.func @transform_8(%arg0: i32) -> (i32, i32) {
    %c0_i32 = arith.constant 0 : i32
    %c0_i32_0 = arith.constant 0 : i32
    %c0_i32_1 = arith.constant 0 : i32
    return %c0_i32, %c0_i32_0 : i32, i32
  }
  func.func @transform_9(%arg0: i32) -> (i32, i32) {
    %c0_i32 = arith.constant 0 : i32
    %c0_i32_0 = arith.constant 0 : i32
    %c0_i32_1 = arith.constant 0 : i32
    return %c0_i32, %c0_i32_0 : i32, i32
  }
  func.func @transform_10(%arg0: i32) -> (i32, i32) {
    %c0_i32 = arith.constant 0 : i32
    %c0_i32_0 = arith.constant 0 : i32
    %c0_i32_1 = arith.constant 0 : i32
    return %c0_i32, %c0_i32_0 : i32, i32
  }
  func.func @transform_11(%arg0: i32) -> (i32, i32) {
    %c0_i32 = arith.constant 0 : i32
    %c0_i32_0 = arith.constant 0 : i32
    return %arg0, %c0_i32 : i32, i32
  }
}

</mosaic_0001>

<llo_original>
// kernel: mnistnet_forward.1
$region0: #{mnistnet_forward.1}
  #allocation0 [shape = 'u32[]', space=smem, size = 0x4, offset = 0x4, fixed_abs, tag = 'smem constant byte address 0x4 - core index']
  #allocation1 [shape = 'u32[144,128]{1,0:T(1,128)}', space=vmem, size = 0x12000, scoped, tag = 'internal scratch']
  %s0 = inlined_call_operand.vmem [shape: f32[2,14,8,32], index: 0, kind: input, shape index: {}]
  %s1 = inlined_call_operand.vmem [shape: f32[5,32,256], index: 1, kind: input, shape index: {}]
  %s2 = inlined_call_operand.vmem [shape: f32[1,256], index: 2, kind: input, shape index: {}]
  %s3 = inlined_call_operand.hbm [shape: f32[5,128,256], index: 3, kind: input, shape index: {}]
  %s4 = inlined_call_operand.vmem [shape: f32[1,256], index: 4, kind: input, shape index: {}]
  %s5 = inlined_call_operand.hbm [shape: f32[4,128,128], index: 5, kind: input, shape index: {}]
  %s6 = inlined_call_operand.vmem [shape: f32[1,128], index: 6, kind: input, shape index: {}]
  %s7 = inlined_call_operand.hbm [shape: f32[128,128], index: 7, kind: input, shape index: {}]
  %s8 = inlined_call_operand.vmem [shape: f32[1,128], index: 8, kind: input, shape index: {}]
  %s9 = inlined_call_operand.hbm [shape: f32[128,128], index: 9, kind: input, shape index: {}]
  %s10 = inlined_call_operand.vmem [shape: f32[1,128], index: 10, kind: input, shape index: {}]
  %s11 = inlined_call_operand.vmem [shape: f32[8,128], index: 11, kind: output, shape index: {}]
  %s12 = sld [smem:[#allocation0]]
  $region70: #{mnistnet_forward.1} parent=0
    _
  %s14 = ssub.s32 1, %s12
  %s15 = scalar_select 0, %s14, %s12
  $region1: #{mnistnet_forward.1} parent=0
    #allocation2 [shape = 'u8[655360]{0}', space=vmem, size = 0xa0000, scoped, tag = 'input window, operand 3, single buffered']
    #allocation3 [shape = 's32[1]{0}', space=sflag, size = 0x4, scoped, tag = 'scoped memory for mnistnet_forward.1']
    #allocation4 [shape = 'u8[262144]{0}', space=vmem, size = 0x40000, scoped, tag = 'input window, operand 5, single buffered']
    #allocation5 [shape = 's32[1]{0}', space=sflag, size = 0x4, scoped, tag = 'scoped memory for mnistnet_forward.1']
    #allocation6 [shape = 'u8[65536]{0}', space=vmem, size = 0x10000, scoped, tag = 'input window, operand 7, single buffered']
    #allocation7 [shape = 'u8[65536]{0}', space=vmem, size = 0x10000, scoped, tag = 'input window, operand 9, single buffered']
    #allocation8 [shape = 's32[1]{0}', space=sflag, size = 0x4, scoped, tag = 'scoped memory for mnistnet_forward.1']
    %16 = vsyncpa [#allocation3], 0
    %17 = vsyncpa [#allocation5], 0
    %18 = vsyncpa [#allocation8], 0
    // Predicated region
    $region2: #{mnistnet_forward.1} parent=1 // pred_check
      _
    $region3: #{mnistnet_forward.1} parent=1 // pred_check_branch
      %20 = sbr.rel (0) target = $region5
    $region4: #{mnistnet_forward.1} parent=1 // pred_region
      _
    $region5: #{mnistnet_forward.1} parent=1 // pred_fallthru
      _
    // Predicated region
    $region6: #{mnistnet_forward.1} parent=1 // pred_check
      _
    $region7: #{mnistnet_forward.1} parent=1 // pred_check_branch
      %22 = sbr.rel (0) target = $region9
    $region8: #{mnistnet_forward.1} parent=1 // pred_region
      _
    $region9: #{mnistnet_forward.1} parent=1 // pred_fallthru
      _
    // Predicated region
    $region10: #{mnistnet_forward.1} parent=1 // pred_check
      _
    $region11: #{mnistnet_forward.1} parent=1 // pred_check_branch
      %24 = sbr.rel (0) target = $region13
    $region12: #{mnistnet_forward.1} parent=1 // pred_region
      _
    $region13: #{mnistnet_forward.1} parent=1 // pred_fallthru
      _
    // Predicated region
    $region14: #{mnistnet_forward.1} parent=1 // pred_check
      _
    $region15: #{mnistnet_forward.1} parent=1 // pred_check_branch
      %26 = sbr.rel (0) target = $region17
    $region16: #{mnistnet_forward.1} parent=1 // pred_region
      %s28 = ssub.s32 20480, 20480
      %29 = vsyncadd [#allocation3], %s28
      %s30 = sshll.u32 [#allocation2], 4
      %s31 = int_to_ptr.vmem [resolvable:$true] %s30
      %36 = dma.hbm_to_vmem [thread:$0]  %s3, 20480, %s31, [#allocation3], 256, 256, 16
    $region17: #{mnistnet_forward.1} parent=1 // pred_fallthru
      _
    // Predicated region
    $region18: #{mnistnet_forward.1} parent=1 // pred_check
      _
    $region19: #{mnistnet_forward.1} parent=1 // pred_check_branch
      %38 = sbr.rel (0) target = $region21
    $region20: #{mnistnet_forward.1} parent=1 // pred_region
      _
    $region21: #{mnistnet_forward.1} parent=1 // pred_fallthru
      _
    // Predicated region
    $region22: #{mnistnet_forward.1} parent=1 // pred_check
      _
    $region23: #{mnistnet_forward.1} parent=1 // pred_check_branch
      %40 = sbr.rel (0) target = $region25
    $region24: #{mnistnet_forward.1} parent=1 // pred_region
      %s42 = ssub.s32 8192, 8192
      %43 = vsyncadd [#allocation5], %s42
      %s44 = sshll.u32 [#allocation4], 4
      %s45 = int_to_ptr.vmem [resolvable:$true] %s44
      %50 = dma.hbm_to_vmem [thread:$0]  %s5, 8192, %s45, [#allocation5], 128, 128, 8
    $region25: #{mnistnet_forward.1} parent=1 // pred_fallthru
      _
    // Predicated region
    $region26: #{mnistnet_forward.1} parent=1 // pred_check
      _
    $region27: #{mnistnet_forward.1} parent=1 // pred_check_branch
      %52 = sbr.rel (0) target = $region29
    $region28: #{mnistnet_forward.1} parent=1 // pred_region
      _
    $region29: #{mnistnet_forward.1} parent=1 // pred_fallthru
      _
    // Predicated region
    $region30: #{mnistnet_forward.1} parent=1 // pred_check
      _
    $region31: #{mnistnet_forward.1} parent=1 // pred_check_branch
      %54 = sbr.rel (0) target = $region33
    $region32: #{mnistnet_forward.1} parent=1 // pred_region
      %s56 = ssub.s32 2048, 2048
      %57 = vsyncadd [#allocation5], %s56
      %s58 = sshll.u32 [#allocation6], 4
      %s59 = int_to_ptr.vmem [resolvable:$true] %s58
      %64 = dma.hbm_to_vmem [thread:$0]  %s7, 2048, %s59, [#allocation5], 128, 128, 8
    $region33: #{mnistnet_forward.1} parent=1 // pred_fallthru
      _
    // Predicated region
    $region34: #{mnistnet_forward.1} parent=1 // pred_check
      _
    $region35: #{mnistnet_forward.1} parent=1 // pred_check_branch
      %66 = sbr.rel (0) target = $region37
    $region36: #{mnistnet_forward.1} parent=1 // pred_region
      _
    $region37: #{mnistnet_forward.1} parent=1 // pred_fallthru
      _
    // Predicated region
    $region38: #{mnistnet_forward.1} parent=1 // pred_check
      _
    $region39: #{mnistnet_forward.1} parent=1 // pred_check_branch
      %68 = sbr.rel (0) target = $region41
    $region40: #{mnistnet_forward.1} parent=1 // pred_region
      %s70 = ssub.s32 2048, 2048
      %71 = vsyncadd [#allocation8], %s70
      %s72 = sshll.u32 [#allocation7], 4
      %s73 = int_to_ptr.vmem [resolvable:$true] %s72
      %78 = dma.hbm_to_vmem [thread:$0]  %s9, 2048, %s73, [#allocation8], 128, 128, 8
    $region41: #{mnistnet_forward.1} parent=1 // pred_fallthru
      _
    // Predicated region
    $region42: #{mnistnet_forward.1} parent=1 // pred_check
      _
    $region43: #{mnistnet_forward.1} parent=1 // pred_check_branch
      %80 = sbr.rel (0) target = $region45
    $region44: #{mnistnet_forward.1} parent=1 // pred_region
      _
    $region45: #{mnistnet_forward.1} parent=1 // pred_fallthru
      _
    // Predicated region
    $region46: #{mnistnet_forward.1} parent=1 // pred_check
      _
    $region47: #{mnistnet_forward.1} parent=1 // pred_check_branch
      %82 = sbr.rel (0) target = $region49
    $region48: #{mnistnet_forward.1} parent=1 // pred_region
      %83 = dma.done [#allocation3], 20480
    $region49: #{mnistnet_forward.1} parent=1 // pred_fallthru
      _
    // Predicated region
    $region50: #{mnistnet_forward.1} parent=1 // pred_check
      _
    $region51: #{mnistnet_forward.1} parent=1 // pred_check_branch
      %85 = sbr.rel (0) target = $region53
    $region52: #{mnistnet_forward.1} parent=1 // pred_region
      %86 = dma.done [#allocation5], 8192
    $region53: #{mnistnet_forward.1} parent=1 // pred_fallthru
      _
    // Predicated region
    $region54: #{mnistnet_forward.1} parent=1 // pred_check
      _
    $region55: #{mnistnet_forward.1} parent=1 // pred_check_branch
      %88 = sbr.rel (0) target = $region57
    $region56: #{mnistnet_forward.1} parent=1 // pred_region
      %89 = dma.done [#allocation5], 2048
    $region57: #{mnistnet_forward.1} parent=1 // pred_fallthru
      _
    // Predicated region
    $region58: #{mnistnet_forward.1} parent=1 // pred_check
      _
    $region59: #{mnistnet_forward.1} parent=1 // pred_check_branch
      %91 = sbr.rel (0) target = $region61
    $region60: #{mnistnet_forward.1} parent=1 // pred_region
      %92 = dma.done [#allocation8], 2048
    $region61: #{mnistnet_forward.1} parent=1 // pred_fallthru
      _
    %v93 = vld [vmem:[%s2] sm:$0x3]
    %v94 = vld [vmem:[%s0] sm:$0xff]
    %v95 = vld [vmem:[%s0 + $0x8] sm:$0xff]
    %v96 = vld [vmem:[%s0 + $0x10] sm:$0xff]
    %v97 = vld [vmem:[%s0 + $0x18] sm:$0xff]
    %v98 = vld [vmem:[%s0 + $0x20] sm:$0xff]
    %v99 = vld [vmem:[%s0 + $0x28] sm:$0xff]
    %v100 = vld [vmem:[%s0 + $0x30] sm:$0xff]
    %v101 = vld [vmem:[%s0 + $0x38] sm:$0xff]
    %v102 = vld [vmem:[%s0 + $0x40] sm:$0xff]
    %v103 = vld [vmem:[%s0 + $0x48] sm:$0xff]
    %v104 = vld [vmem:[%s0 + $0x50] sm:$0xff]
    %v105 = vld [vmem:[%s0 + $0x58] sm:$0xff]
    %v106 = vld [vmem:[%s1] sm:$0xff]
    %v107 = vld [vmem:[%s1 + $0x8] sm:$0xff]
    %v108 = vld [vmem:[%s1 + $0x10] sm:$0xff]
    %v109 = vld [vmem:[%s1 + $0x18] sm:$0xff]
    %v110 = vld [vmem:[%s1 + $0x20] sm:$0xff]
    %v111 = vld [vmem:[%s1 + $0x28] sm:$0xff]
    %v112 = vld [vmem:[%s1 + $0x30] sm:$0xff]
    %v113 = vld [vmem:[%s1 + $0x38] sm:$0xff]
    %s114 = scalar_lea.vmem %s0, 112
    %v115 = vld [vmem:[%s114] sm:$0xff]
    %v116 = vld [vmem:[%s114 + $0x8] sm:$0xff]
    %v117 = vld [vmem:[%s114 + $0x10] sm:$0xff]
    %v118 = vld [vmem:[%s114 + $0x18] sm:$0xff]
    %v119 = vld [vmem:[%s114 + $0x20] sm:$0xff]
    %v120 = vld [vmem:[%s114 + $0x28] sm:$0xff]
    %v121 = vld [vmem:[%s114 + $0x30] sm:$0xff]
    %v122 = vld [vmem:[%s114 + $0x38] sm:$0xff]
    %v123 = vld [vmem:[%s114 + $0x40] sm:$0xff]
    %v124 = vld [vmem:[%s114 + $0x48] sm:$0xff]
    %v125 = vld [vmem:[%s114 + $0x50] sm:$0xff]
    %v126 = vld [vmem:[%s114 + $0x58] sm:$0xff]
    %s127 = scalar_lea.vmem %s1, 64
    %v128 = vld [vmem:[%s127] sm:$0xff]
    %v129 = vld [vmem:[%s127 + $0x8] sm:$0xff]
    %v130 = vld [vmem:[%s127 + $0x10] sm:$0xff]
    %v131 = vld [vmem:[%s127 + $0x18] sm:$0xff]
    %v132 = vld [vmem:[%s127 + $0x20] sm:$0xff]
    %v133 = vld [vmem:[%s127 + $0x28] sm:$0xff]
    %v134 = vld [vmem:[%s127 + $0x30] sm:$0xff]
    %v135 = vld [vmem:[%s127 + $0x38] sm:$0xff]
    %vm136 = vcmask 261120
    %v138 = vsel %vm136, %v115, 0
    %v141 = vsel %vm136, %v116, 0
    %v144 = vsel %vm136, %v117, 0
    %v147 = vsel %vm136, %v118, 0
    %v150 = vsel %vm136, %v119, 0
    %v153 = vsel %vm136, %v120, 0
    %v156 = vsel %vm136, %v121, 0
    %v159 = vsel %vm136, %v122, 0
    %v162 = vsel %vm136, %v123, 0
    %v165 = vsel %vm136, %v124, 0
    %v168 = vsel %vm136, %v125, 0
    %v171 = vsel %vm136, %v126, 0
    %173 = vmatprep.subr.mxu0 0.0
    %174 = vmatpush1.msra.mxu0 0.0
    %175 = vmatprep.subr.mxu0 0.0
    %176 = vmatpush1.msra.mxu0 0.0
    %177 = vmatprep.subr.mxu0 0.0
    %178 = vmatpush1.msra.mxu0 0.0
    %179 = vmatprep.subr.mxu0 0.0
    %180 = vmatpush1.msra.mxu0 0.0
    %181 = vmatprep.subr.mxu0 0.0
    %182 = vmatpush1.msra.mxu0 0.0
    %183 = vmatprep.subr.mxu0 0.0
    %184 = vmatpush1.msra.mxu0 0.0
    %185 = vmatprep.subr.mxu0 0.0
    %186 = vmatpush1.msra.mxu0 0.0
    %187 = vmatprep.subr.mxu0 0.0
    %188 = vmatpush1.msra.mxu0 0.0
    %189 = vmatprep.subr.mxu0 0.0
    %190 = vmatpush1.msra.mxu0 0.0
    %191 = vmatprep.subr.mxu0 0.0
    %192 = vmatpush1.msra.mxu0 0.0
    %193 = vmatprep.subr.mxu0 0.0
    %194 = vmatpush1.msra.mxu0 0.0
    %195 = vmatprep.subr.mxu0 0.0
    %196 = vmatpush1.msra.mxu0 0.0
    %197 = vmatprep.subr.mxu0 %v135
    %198 = vmatpush1.msra.mxu0 %v134
    %199 = vmatprep.subr.mxu0 %v133
    %200 = vmatpush1.msra.mxu0 %v132
    %201 = vmatprep.subr.mxu0 %v131
    %202 = vmatpush1.msra.mxu0 %v130
    %203 = vmatprep.subr.mxu0 %v129
    %204 = vmatpush1.msra.mxu0 %v128
    %205 = vmatprep.subr.mxu0 0.0
    %206 = vmatpush2.msra.mxu0 0.0
    %207 = vmatprep.subr.mxu0 0.0
    %208 = vmatpush2.msra.mxu0 0.0
    %209 = vmatprep.subr.mxu0 0.0
    %210 = vmatpush2.msra.mxu0 0.0
    %211 = vmatprep.subr.mxu0 0.0
    %212 = vmatpush2.msra.mxu0 0.0
    %213 = vmatprep.subr.mxu0 0.0
    %214 = vmatpush2.msra.mxu0 0.0
    %215 = vmatprep.subr.mxu0 0.0
    %216 = vmatpush2.msra.mxu0 0.0
    %217 = vmatprep.subr.mxu0 0.0
    %218 = vmatpush2.msra.mxu0 0.0
    %219 = vmatprep.subr.mxu0 0.0
    %220 = vmatpush2.msra.mxu0 0.0
    %221 = vmatprep.subr.mxu0 0.0
    %222 = vmatpush2.msra.mxu0 0.0
    %223 = vmatprep.subr.mxu0 0.0
    %224 = vmatpush2.msra.mxu0 0.0
    %225 = vmatprep.subr.mxu0 0.0
    %226 = vmatpush2.msra.mxu0 0.0
    %227 = vmatprep.subr.mxu0 0.0
    %228 = vmatpush2.msra.mxu0 0.0
    %229 = vmatprep.subr.mxu0 0.0
    %230 = vmatpush2.msra.mxu0 0.0
    %231 = vmatprep.subr.mxu0 0.0
    %232 = vmatpush2.msra.mxu0 0.0
    %233 = vmatprep.subr.mxu0 0.0
    %234 = vmatpush2.msra.mxu0 0.0
    %235 = vmatprep.subr.mxu0 0.0
    %236 = vmatpush2.msra.mxu0 0.0
    %237 = vmatprep.mubr.f32.mxu0 0.0
    %238 = vmatmul.mubr.f32.gmra.mxu0 %v138
    %v239 = vpop.f32.mrf.mxu0
    %v240 = vadd.f32 0.0, %v239
    %v241 = vpop.f32.mrf.mxu0
    %v242 = vadd.f32 0.0, %v241
    %243 = vmatprep.mubr.f32.mxu0 0.0
    %244 = vmatmul.mubr.f32.gmra.mxu0 %v141
    %v245 = vpop.f32.mrf.mxu0
    %v246 = vadd.f32 0.0, %v245
    %v247 = vpop.f32.mrf.mxu0
    %v248 = vadd.f32 0.0, %v247
    %249 = vmatprep.mubr.f32.mxu0 0.0
    %250 = vmatmul.mubr.f32.gmra.mxu0 %v144
    %v251 = vpop.f32.mrf.mxu0
    %v252 = vadd.f32 0.0, %v251
    %v253 = vpop.f32.mrf.mxu0
    %v254 = vadd.f32 0.0, %v253
    %255 = vmatprep.mubr.f32.mxu0 0.0
    %256 = vmatmul.mubr.f32.gmra.mxu0 %v147
    %v257 = vpop.f32.mrf.mxu0
    %v258 = vadd.f32 0.0, %v257
    %v259 = vpop.f32.mrf.mxu0
    %v260 = vadd.f32 0.0, %v259
    %261 = vmatprep.mubr.f32.mxu0 0.0
    %262 = vmatmul.mubr.f32.gmra.mxu0 %v150
    %v263 = vpop.f32.mrf.mxu0
    %v264 = vadd.f32 0.0, %v263
    %v265 = vpop.f32.mrf.mxu0
    %v266 = vadd.f32 0.0, %v265
    %267 = vmatprep.mubr.f32.mxu0 0.0
    %268 = vmatmul.mubr.f32.gmra.mxu0 %v153
    %v269 = vpop.f32.mrf.mxu0
    %v270 = vadd.f32 0.0, %v269
    %v271 = vpop.f32.mrf.mxu0
    %v272 = vadd.f32 0.0, %v271
    %273 = vmatprep.mubr.f32.mxu0 0.0
    %274 = vmatmul.mubr.f32.gmra.mxu0 %v156
    %v275 = vpop.f32.mrf.mxu0
    %v276 = vadd.f32 0.0, %v275
    %v277 = vpop.f32.mrf.mxu0
    %v278 = vadd.f32 0.0, %v277
    %279 = vmatprep.mubr.f32.mxu0 0.0
    %280 = vmatmul.mubr.f32.gmra.mxu0 %v159
    %v281 = vpop.f32.mrf.mxu0
    %v282 = vadd.f32 0.0, %v281
    %v283 = vpop.f32.mrf.mxu0
    %v284 = vadd.f32 0.0, %v283
    %285 = vmatprep.mubr.f32.mxu0 0.0
    %286 = vmatmul.mubr.f32.gmra.mxu0 %v162
    %v287 = vpop.f32.mrf.mxu0
    %v288 = vadd.f32 0.0, %v287
    %v289 = vpop.f32.mrf.mxu0
    %v290 = vadd.f32 0.0, %v289
    %291 = vmatprep.mubr.f32.mxu0 0.0
    %292 = vmatmul.mubr.f32.gmra.mxu0 %v165
    %v293 = vpop.f32.mrf.mxu0
    %v294 = vadd.f32 0.0, %v293
    %v295 = vpop.f32.mrf.mxu0
    %v296 = vadd.f32 0.0, %v295
    %297 = vmatprep.mubr.f32.mxu0 0.0
    %298 = vmatmul.mubr.f32.gmra.mxu0 %v168
    %v299 = vpop.f32.mrf.mxu0
    %v300 = vadd.f32 0.0, %v299
    %v301 = vpop.f32.mrf.mxu0
    %v302 = vadd.f32 0.0, %v301
    %303 = vmatprep.mubr.f32.mxu0 0.0
    %304 = vmatmul.mubr.f32.gmra.mxu0 %v171
    %v305 = vpop.f32.mrf.mxu0
    %v306 = vadd.f32 0.0, %v305
    %v307 = vpop.f32.mrf.mxu0
    %v308 = vadd.f32 0.0, %v307
    %309 = vdwg.mxu0
    %v311 = vsel %vm136, %v94, 0
    %v314 = vsel %vm136, %v95, 0
    %v317 = vsel %vm136, %v96, 0
    %v320 = vsel %vm136, %v97, 0
    %v323 = vsel %vm136, %v98, 0
    %v326 = vsel %vm136, %v99, 0
    %v329 = vsel %vm136, %v100, 0
    %v332 = vsel %vm136, %v101, 0
    %v335 = vsel %vm136, %v102, 0
    %v338 = vsel %vm136, %v103, 0
    %v341 = vsel %vm136, %v104, 0
    %v344 = vsel %vm136, %v105, 0
    %346 = vmatprep.subr.mxu0 0.0
    %347 = vmatpush1.msra.mxu0 0.0
    %348 = vmatprep.subr.mxu0 0.0
    %349 = vmatpush1.msra.mxu0 0.0
    %350 = vmatprep.subr.mxu0 0.0
    %351 = vmatpush1.msra.mxu0 0.0
    %352 = vmatprep.subr.mxu0 0.0
    %353 = vmatpush1.msra.mxu0 0.0
    %354 = vmatprep.subr.mxu0 0.0
    %355 = vmatpush1.msra.mxu0 0.0
    %356 = vmatprep.subr.mxu0 0.0
    %357 = vmatpush1.msra.mxu0 0.0
    %358 = vmatprep.subr.mxu0 0.0
    %359 = vmatpush1.msra.mxu0 0.0
    %360 = vmatprep.subr.mxu0 0.0
    %361 = vmatpush1.msra.mxu0 0.0
    %362 = vmatprep.subr.mxu0 0.0
    %363 = vmatpush1.msra.mxu0 0.0
    %364 = vmatprep.subr.mxu0 0.0
    %365 = vmatpush1.msra.mxu0 0.0
    %366 = vmatprep.subr.mxu0 0.0
    %367 = vmatpush1.msra.mxu0 0.0
    %368 = vmatprep.subr.mxu0 0.0
    %369 = vmatpush1.msra.mxu0 0.0
    %370 = vmatprep.subr.mxu0 %v113
    %371 = vmatpush1.msra.mxu0 %v112
    %372 = vmatprep.subr.mxu0 %v111
    %373 = vmatpush1.msra.mxu0 %v110
    %374 = vmatprep.subr.mxu0 %v109
    %375 = vmatpush1.msra.mxu0 %v108
    %376 = vmatprep.subr.mxu0 %v107
    %377 = vmatpush1.msra.mxu0 %v106
    %378 = vmatprep.subr.mxu0 0.0
    %379 = vmatpush2.msra.mxu0 0.0
    %380 = vmatprep.subr.mxu0 0.0
    %381 = vmatpush2.msra.mxu0 0.0
    %382 = vmatprep.subr.mxu0 0.0
    %383 = vmatpush2.msra.mxu0 0.0
    %384 = vmatprep.subr.mxu0 0.0
    %385 = vmatpush2.msra.mxu0 0.0
    %386 = vmatprep.subr.mxu0 0.0
    %387 = vmatpush2.msra.mxu0 0.0
    %388 = vmatprep.subr.mxu0 0.0
    %389 = vmatpush2.msra.mxu0 0.0
    %390 = vmatprep.subr.mxu0 0.0
    %391 = vmatpush2.msra.mxu0 0.0
    %392 = vmatprep.subr.mxu0 0.0
    %393 = vmatpush2.msra.mxu0 0.0
    %394 = vmatprep.subr.mxu0 0.0
    %395 = vmatpush2.msra.mxu0 0.0
    %396 = vmatprep.subr.mxu0 0.0
    %397 = vmatpush2.msra.mxu0 0.0
    %398 = vmatprep.subr.mxu0 0.0
    %399 = vmatpush2.msra.mxu0 0.0
    %400 = vmatprep.subr.mxu0 0.0
    %401 = vmatpush2.msra.mxu0 0.0
    %402 = vmatprep.subr.mxu0 0.0
    %403 = vmatpush2.msra.mxu0 0.0
    %404 = vmatprep.subr.mxu0 0.0
    %405 = vmatpush2.msra.mxu0 0.0
    %406 = vmatprep.subr.mxu0 0.0
    %407 = vmatpush2.msra.mxu0 0.0
    %408 = vmatprep.subr.mxu0 0.0
    %409 = vmatpush2.msra.mxu0 0.0
    %410 = vmatprep.mubr.f32.mxu0 0.0
    %411 = vmatmul.mubr.f32.gmra.mxu0 %v311
    %v412 = vpop.f32.mrf.mxu0
    %v413 = vadd.f32 %v240, %v412
    %v414 = vpop.f32.mrf.mxu0
    %v415 = vadd.f32 %v242, %v414
    %416 = vmatprep.mubr.f32.mxu0 0.0
    %417 = vmatmul.mubr.f32.gmra.mxu0 %v314
    %v418 = vpop.f32.mrf.mxu0
    %v419 = vadd.f32 %v246, %v418
    %v420 = vpop.f32.mrf.mxu0
    %v421 = vadd.f32 %v248, %v420
    %422 = vmatprep.mubr.f32.mxu0 0.0
    %423 = vmatmul.mubr.f32.gmra.mxu0 %v317
    %v424 = vpop.f32.mrf.mxu0
    %v425 = vadd.f32 %v252, %v424
    %v426 = vpop.f32.mrf.mxu0
    %v427 = vadd.f32 %v254, %v426
    %428 = vmatprep.mubr.f32.mxu0 0.0
    %429 = vmatmul.mubr.f32.gmra.mxu0 %v320
    %v430 = vpop.f32.mrf.mxu0
    %v431 = vadd.f32 %v258, %v430
    %v432 = vpop.f32.mrf.mxu0
    %v433 = vadd.f32 %v260, %v432
    %434 = vmatprep.mubr.f32.mxu0 0.0
    %435 = vmatmul.mubr.f32.gmra.mxu0 %v323
    %v436 = vpop.f32.mrf.mxu0
    %v437 = vadd.f32 %v264, %v436
    %v438 = vpop.f32.mrf.mxu0
    %v439 = vadd.f32 %v266, %v438
    %440 = vmatprep.mubr.f32.mxu0 0.0
    %441 = vmatmul.mubr.f32.gmra.mxu0 %v326
    %v442 = vpop.f32.mrf.mxu0
    %v443 = vadd.f32 %v270, %v442
    %v444 = vpop.f32.mrf.mxu0
    %v445 = vadd.f32 %v272, %v444
    %446 = vmatprep.mubr.f32.mxu0 0.0
    %447 = vmatmul.mubr.f32.gmra.mxu0 %v329
    %v448 = vpop.f32.mrf.mxu0
    %v449 = vadd.f32 %v276, %v448
    %v450 = vpop.f32.mrf.mxu0
    %v451 = vadd.f32 %v278, %v450
    %452 = vmatprep.mubr.f32.mxu0 0.0
    %453 = vmatmul.mubr.f32.gmra.mxu0 %v332
    %v454 = vpop.f32.mrf.mxu0
    %v455 = vadd.f32 %v282, %v454
    %v456 = vpop.f32.mrf.mxu0
    %v457 = vadd.f32 %v284, %v456
    %458 = vmatprep.mubr.f32.mxu0 0.0
    %459 = vmatmul.mubr.f32.gmra.mxu0 %v335
    %v460 = vpop.f32.mrf.mxu0
    %v461 = vadd.f32 %v288, %v460
    %v462 = vpop.f32.mrf.mxu0
    %v463 = vadd.f32 %v290, %v462
    %464 = vmatprep.mubr.f32.mxu0 0.0
    %465 = vmatmul.mubr.f32.gmra.mxu0 %v338
    %v466 = vpop.f32.mrf.mxu0
    %v467 = vadd.f32 %v294, %v466
    %v468 = vpop.f32.mrf.mxu0
    %v469 = vadd.f32 %v296, %v468
    %470 = vmatprep.mubr.f32.mxu0 0.0
    %471 = vmatmul.mubr.f32.gmra.mxu0 %v341
    %v472 = vpop.f32.mrf.mxu0
    %v473 = vadd.f32 %v300, %v472
    %v474 = vpop.f32.mrf.mxu0
    %v475 = vadd.f32 %v302, %v474
    %476 = vmatprep.mubr.f32.mxu0 0.0
    %477 = vmatmul.mubr.f32.gmra.mxu0 %v344
    %v478 = vpop.f32.mrf.mxu0
    %v479 = vadd.f32 %v306, %v478
    %v480 = vpop.f32.mrf.mxu0
    %v481 = vadd.f32 %v308, %v480
    %482 = vdwg.mxu0
    %s483 = scalar_lea.vmem %s0, 8
    %v484 = vld [vmem:[%s483] sm:$0xff]
    %v485 = vld [vmem:[%s483 + $0x8] sm:$0xff]
    %v486 = vld [vmem:[%s483 + $0x10] sm:$0xff]
    %v487 = vld [vmem:[%s483 + $0x18] sm:$0xff]
    %v488 = vld [vmem:[%s483 + $0x20] sm:$0xff]
    %v489 = vld [vmem:[%s483 + $0x28] sm:$0xff]
    %v490 = vld [vmem:[%s483 + $0x30] sm:$0xff]
    %v491 = vld [vmem:[%s483 + $0x38] sm:$0xff]
    %v492 = vld [vmem:[%s483 + $0x40] sm:$0xff]
    %v493 = vld [vmem:[%s483 + $0x48] sm:$0xff]
    %v494 = vld [vmem:[%s483 + $0x50] sm:$0xff]
    %v495 = vld [vmem:[%s483 + $0x58] sm:$0xff]
    %s496 = scalar_lea.vmem %s1, 128
    %v497 = vld [vmem:[%s496] sm:$0xff]
    %v498 = vld [vmem:[%s496 + $0x8] sm:$0xff]
    %v499 = vld [vmem:[%s496 + $0x10] sm:$0xff]
    %v500 = vld [vmem:[%s496 + $0x18] sm:$0xff]
    %v501 = vld [vmem:[%s496 + $0x20] sm:$0xff]
    %v502 = vld [vmem:[%s496 + $0x28] sm:$0xff]
    %v503 = vld [vmem:[%s496 + $0x30] sm:$0xff]
    %v504 = vld [vmem:[%s496 + $0x38] sm:$0xff]
    %v506 = vsel %vm136, %v484, 0
    %v509 = vsel %vm136, %v485, 0
    %v512 = vsel %vm136, %v486, 0
    %v515 = vsel %vm136, %v487, 0
    %v518 = vsel %vm136, %v488, 0
    %v521 = vsel %vm136, %v489, 0
    %v524 = vsel %vm136, %v490, 0
    %v527 = vsel %vm136, %v491, 0
    %v530 = vsel %vm136, %v492, 0
    %v533 = vsel %vm136, %v493, 0
    %v536 = vsel %vm136, %v494, 0
    %v539 = vsel %vm136, %v495, 0
    %541 = vmatprep.subr.mxu0 0.0
    %542 = vmatpush1.msra.mxu0 0.0
    %543 = vmatprep.subr.mxu0 0.0
    %544 = vmatpush1.msra.mxu0 0.0
    %545 = vmatprep.subr.mxu0 0.0
    %546 = vmatpush1.msra.mxu0 0.0
    %547 = vmatprep.subr.mxu0 0.0
    %548 = vmatpush1.msra.mxu0 0.0
    %549 = vmatprep.subr.mxu0 0.0
    %550 = vmatpush1.msra.mxu0 0.0
    %551 = vmatprep.subr.mxu0 0.0
    %552 = vmatpush1.msra.mxu0 0.0
    %553 = vmatprep.subr.mxu0 0.0
    %554 = vmatpush1.msra.mxu0 0.0
    %555 = vmatprep.subr.mxu0 0.0
    %556 = vmatpush1.msra.mxu0 0.0
    %557 = vmatprep.subr.mxu0 0.0
    %558 = vmatpush1.msra.mxu0 0.0
    %559 = vmatprep.subr.mxu0 0.0
    %560 = vmatpush1.msra.mxu0 0.0
    %561 = vmatprep.subr.mxu0 0.0
    %562 = vmatpush1.msra.mxu0 0.0
    %563 = vmatprep.subr.mxu0 0.0
    %564 = vmatpush1.msra.mxu0 0.0
    %565 = vmatprep.subr.mxu0 %v504
    %566 = vmatpush1.msra.mxu0 %v503
    %567 = vmatprep.subr.mxu0 %v502
    %568 = vmatpush1.msra.mxu0 %v501
    %569 = vmatprep.subr.mxu0 %v500
    %570 = vmatpush1.msra.mxu0 %v499
    %571 = vmatprep.subr.mxu0 %v498
    %572 = vmatpush1.msra.mxu0 %v497
    %573 = vmatprep.subr.mxu0 0.0
    %574 = vmatpush2.msra.mxu0 0.0
    %575 = vmatprep.subr.mxu0 0.0
    %576 = vmatpush2.msra.mxu0 0.0
    %577 = vmatprep.subr.mxu0 0.0
    %578 = vmatpush2.msra.mxu0 0.0
    %579 = vmatprep.subr.mxu0 0.0
    %580 = vmatpush2.msra.mxu0 0.0
    %581 = vmatprep.subr.mxu0 0.0
    %582 = vmatpush2.msra.mxu0 0.0
    %583 = vmatprep.subr.mxu0 0.0
    %584 = vmatpush2.msra.mxu0 0.0
    %585 = vmatprep.subr.mxu0 0.0
    %586 = vmatpush2.msra.mxu0 0.0
    %587 = vmatprep.subr.mxu0 0.0
    %588 = vmatpush2.msra.mxu0 0.0
    %589 = vmatprep.subr.mxu0 0.0
    %590 = vmatpush2.msra.mxu0 0.0
    %591 = vmatprep.subr.mxu0 0.0
    %592 = vmatpush2.msra.mxu0 0.0
    %593 = vmatprep.subr.mxu0 0.0
    %594 = vmatpush2.msra.mxu0 0.0
    %595 = vmatprep.subr.mxu0 0.0
    %596 = vmatpush2.msra.mxu0 0.0
    %597 = vmatprep.subr.mxu0 0.0
    %598 = vmatpush2.msra.mxu0 0.0
    %599 = vmatprep.subr.mxu0 0.0
    %600 = vmatpush2.msra.mxu0 0.0
    %601 = vmatprep.subr.mxu0 0.0
    %602 = vmatpush2.msra.mxu0 0.0
    %603 = vmatprep.subr.mxu0 0.0
    %604 = vmatpush2.msra.mxu0 0.0
    %605 = vmatprep.mubr.f32.mxu0 0.0
    %606 = vmatmul.mubr.f32.gmra.mxu0 %v506
    %v607 = vpop.f32.mrf.mxu0
    %v608 = vadd.f32 0.0, %v607
    %v609 = vpop.f32.mrf.mxu0
    %v610 = vadd.f32 0.0, %v609
    %611 = vmatprep.mubr.f32.mxu0 0.0
    %612 = vmatmul.mubr.f32.gmra.mxu0 %v509
    %v613 = vpop.f32.mrf.mxu0
    %v614 = vadd.f32 0.0, %v613
    %v615 = vpop.f32.mrf.mxu0
    %v616 = vadd.f32 0.0, %v615
    %617 = vmatprep.mubr.f32.mxu0 0.0
    %618 = vmatmul.mubr.f32.gmra.mxu0 %v512
    %v619 = vpop.f32.mrf.mxu0
    %v620 = vadd.f32 0.0, %v619
    %v621 = vpop.f32.mrf.mxu0
    %v622 = vadd.f32 0.0, %v621
    %623 = vmatprep.mubr.f32.mxu0 0.0
    %624 = vmatmul.mubr.f32.gmra.mxu0 %v515
    %v625 = vpop.f32.mrf.mxu0
    %v626 = vadd.f32 0.0, %v625
    %v627 = vpop.f32.mrf.mxu0
    %v628 = vadd.f32 0.0, %v627
    %629 = vmatprep.mubr.f32.mxu0 0.0
    %630 = vmatmul.mubr.f32.gmra.mxu0 %v518
    %v631 = vpop.f32.mrf.mxu0
    %v632 = vadd.f32 0.0, %v631
    %v633 = vpop.f32.mrf.mxu0
    %v634 = vadd.f32 0.0, %v633
    %635 = vmatprep.mubr.f32.mxu0 0.0
    %636 = vmatmul.mubr.f32.gmra.mxu0 %v521
    %v637 = vpop.f32.mrf.mxu0
    %v638 = vadd.f32 0.0, %v637
    %v639 = vpop.f32.mrf.mxu0
    %v640 = vadd.f32 0.0, %v639
    %641 = vmatprep.mubr.f32.mxu0 0.0
    %642 = vmatmul.mubr.f32.gmra.mxu0 %v524
    %v643 = vpop.f32.mrf.mxu0
    %v644 = vadd.f32 0.0, %v643
    %v645 = vpop.f32.mrf.mxu0
    %v646 = vadd.f32 0.0, %v645
    %647 = vmatprep.mubr.f32.mxu0 0.0
    %648 = vmatmul.mubr.f32.gmra.mxu0 %v527
    %v649 = vpop.f32.mrf.mxu0
    %v650 = vadd.f32 0.0, %v649
    %v651 = vpop.f32.mrf.mxu0
    %v652 = vadd.f32 0.0, %v651
    %653 = vmatprep.mubr.f32.mxu0 0.0
    %654 = vmatmul.mubr.f32.gmra.mxu0 %v530
    %v655 = vpop.f32.mrf.mxu0
    %v656 = vadd.f32 0.0, %v655
    %v657 = vpop.f32.mrf.mxu0
    %v658 = vadd.f32 0.0, %v657
    %659 = vmatprep.mubr.f32.mxu0 0.0
    %660 = vmatmul.mubr.f32.gmra.mxu0 %v533
    %v661 = vpop.f32.mrf.mxu0
    %v662 = vadd.f32 0.0, %v661
    %v663 = vpop.f32.mrf.mxu0
    %v664 = vadd.f32 0.0, %v663
    %665 = vmatprep.mubr.f32.mxu0 0.0
    %666 = vmatmul.mubr.f32.gmra.mxu0 %v536
    %v667 = vpop.f32.mrf.mxu0
    %v668 = vadd.f32 0.0, %v667
    %v669 = vpop.f32.mrf.mxu0
    %v670 = vadd.f32 0.0, %v669
    %671 = vmatprep.mubr.f32.mxu0 0.0
    %672 = vmatmul.mubr.f32.gmra.mxu0 %v539
    %v673 = vpop.f32.mrf.mxu0
    %v674 = vadd.f32 0.0, %v673
    %v675 = vpop.f32.mrf.mxu0
    %v676 = vadd.f32 0.0, %v675
    %677 = vdwg.mxu0
    %v678 = vadd.f32 %v413, %v608
    %v679 = vadd.f32 %v415, %v610
    %v680 = vadd.f32 %v419, %v614
    %v681 = vadd.f32 %v421, %v616
    %v682 = vadd.f32 %v425, %v620
    %v683 = vadd.f32 %v427, %v622
    %v684 = vadd.f32 %v431, %v626
    %v685 = vadd.f32 %v433, %v628
    %v686 = vadd.f32 %v437, %v632
    %v687 = vadd.f32 %v439, %v634
    %v688 = vadd.f32 %v443, %v638
    %v689 = vadd.f32 %v445, %v640
    %v690 = vadd.f32 %v449, %v644
    %v691 = vadd.f32 %v451, %v646
    %v692 = vadd.f32 %v455, %v650
    %v693 = vadd.f32 %v457, %v652
    %v694 = vadd.f32 %v461, %v656
    %v695 = vadd.f32 %v463, %v658
    %v696 = vadd.f32 %v467, %v662
    %v697 = vadd.f32 %v469, %v664
    %v698 = vadd.f32 %v473, %v668
    %v699 = vadd.f32 %v475, %v670
    %v700 = vadd.f32 %v479, %v674
    %v701 = vadd.f32 %v481, %v676
    %s702 = scalar_lea.vmem %s0, 120
    %v703 = vld [vmem:[%s702] sm:$0xff]
    %v704 = vld [vmem:[%s702 + $0x8] sm:$0xff]
    %v705 = vld [vmem:[%s702 + $0x10] sm:$0xff]
    %v706 = vld [vmem:[%s702 + $0x18] sm:$0xff]
    %v707 = vld [vmem:[%s702 + $0x20] sm:$0xff]
    %v708 = vld [vmem:[%s702 + $0x28] sm:$0xff]
    %v709 = vld [vmem:[%s702 + $0x30] sm:$0xff]
    %v710 = vld [vmem:[%s702 + $0x38] sm:$0xff]
    %v711 = vld [vmem:[%s702 + $0x40] sm:$0xff]
    %v712 = vld [vmem:[%s702 + $0x48] sm:$0xff]
    %v713 = vld [vmem:[%s702 + $0x50] sm:$0xff]
    %v714 = vld [vmem:[%s702 + $0x58] sm:$0xff]
    %s715 = scalar_lea.vmem %s1, 192
    %v716 = vld [vmem:[%s715] sm:$0xff]
    %v717 = vld [vmem:[%s715 + $0x8] sm:$0xff]
    %v718 = vld [vmem:[%s715 + $0x10] sm:$0xff]
    %v719 = vld [vmem:[%s715 + $0x18] sm:$0xff]
    %v720 = vld [vmem:[%s715 + $0x20] sm:$0xff]
    %v721 = vld [vmem:[%s715 + $0x28] sm:$0xff]
    %v722 = vld [vmem:[%s715 + $0x30] sm:$0xff]
    %v723 = vld [vmem:[%s715 + $0x38] sm:$0xff]
    %v725 = vsel %vm136, %v703, 0
    %v728 = vsel %vm136, %v704, 0
    %v731 = vsel %vm136, %v705, 0
    %v734 = vsel %vm136, %v706, 0
    %v737 = vsel %vm136, %v707, 0
    %v740 = vsel %vm136, %v708, 0
    %v743 = vsel %vm136, %v709, 0
    %v746 = vsel %vm136, %v710, 0
    %v749 = vsel %vm136, %v711, 0
    %v752 = vsel %vm136, %v712, 0
    %v755 = vsel %vm136, %v713, 0
    %v758 = vsel %vm136, %v714, 0
    %760 = vmatprep.subr.mxu0 0.0
    %761 = vmatpush1.msra.mxu0 0.0
    %762 = vmatprep.subr.mxu0 0.0
    %763 = vmatpush1.msra.mxu0 0.0
    %764 = vmatprep.subr.mxu0 0.0
    %765 = vmatpush1.msra.mxu0 0.0
    %766 = vmatprep.subr.mxu0 0.0
    %767 = vmatpush1.msra.mxu0 0.0
    %768 = vmatprep.subr.mxu0 0.0
    %769 = vmatpush1.msra.mxu0 0.0
    %770 = vmatprep.subr.mxu0 0.0
    %771 = vmatpush1.msra.mxu0 0.0
    %772 = vmatprep.subr.mxu0 0.0
    %773 = vmatpush1.msra.mxu0 0.0
    %774 = vmatprep.subr.mxu0 0.0
    %775 = vmatpush1.msra.mxu0 0.0
    %776 = vmatprep.subr.mxu0 0.0
    %777 = vmatpush1.msra.mxu0 0.0
    %778 = vmatprep.subr.mxu0 0.0
    %779 = vmatpush1.msra.mxu0 0.0
    %780 = vmatprep.subr.mxu0 0.0
    %781 = vmatpush1.msra.mxu0 0.0
    %782 = vmatprep.subr.mxu0 0.0
    %783 = vmatpush1.msra.mxu0 0.0
    %784 = vmatprep.subr.mxu0 %v723
    %785 = vmatpush1.msra.mxu0 %v722
    %786 = vmatprep.subr.mxu0 %v721
    %787 = vmatpush1.msra.mxu0 %v720
    %788 = vmatprep.subr.mxu0 %v719
    %789 = vmatpush1.msra.mxu0 %v718
    %790 = vmatprep.subr.mxu0 %v717
    %791 = vmatpush1.msra.mxu0 %v716
    %792 = vmatprep.subr.mxu0 0.0
    %793 = vmatpush2.msra.mxu0 0.0
    %794 = vmatprep.subr.mxu0 0.0
    %795 = vmatpush2.msra.mxu0 0.0
    %796 = vmatprep.subr.mxu0 0.0
    %797 = vmatpush2.msra.mxu0 0.0
    %798 = vmatprep.subr.mxu0 0.0
    %799 = vmatpush2.msra.mxu0 0.0
    %800 = vmatprep.subr.mxu0 0.0
    %801 = vmatpush2.msra.mxu0 0.0
    %802 = vmatprep.subr.mxu0 0.0
    %803 = vmatpush2.msra.mxu0 0.0
    %804 = vmatprep.subr.mxu0 0.0
    %805 = vmatpush2.msra.mxu0 0.0
    %806 = vmatprep.subr.mxu0 0.0
    %807 = vmatpush2.msra.mxu0 0.0
    %808 = vmatprep.subr.mxu0 0.0
    %809 = vmatpush2.msra.mxu0 0.0
    %810 = vmatprep.subr.mxu0 0.0
    %811 = vmatpush2.msra.mxu0 0.0
    %812 = vmatprep.subr.mxu0 0.0
    %813 = vmatpush2.msra.mxu0 0.0
    %814 = vmatprep.subr.mxu0 0.0
    %815 = vmatpush2.msra.mxu0 0.0
    %816 = vmatprep.subr.mxu0 0.0
    %817 = vmatpush2.msra.mxu0 0.0
    %818 = vmatprep.subr.mxu0 0.0
    %819 = vmatpush2.msra.mxu0 0.0
    %820 = vmatprep.subr.mxu0 0.0
    %821 = vmatpush2.msra.mxu0 0.0
    %822 = vmatprep.subr.mxu0 0.0
    %823 = vmatpush2.msra.mxu0 0.0
    %824 = vmatprep.mubr.f32.mxu0 0.0
    %825 = vmatmul.mubr.f32.gmra.mxu0 %v725
    %v826 = vpop.f32.mrf.mxu0
    %v827 = vadd.f32 0.0, %v826
    %v828 = vpop.f32.mrf.mxu0
    %v829 = vadd.f32 0.0, %v828
    %830 = vmatprep.mubr.f32.mxu0 0.0
    %831 = vmatmul.mubr.f32.gmra.mxu0 %v728
    %v832 = vpop.f32.mrf.mxu0
    %v833 = vadd.f32 0.0, %v832
    %v834 = vpop.f32.mrf.mxu0
    %v835 = vadd.f32 0.0, %v834
    %836 = vmatprep.mubr.f32.mxu0 0.0
    %837 = vmatmul.mubr.f32.gmra.mxu0 %v731
    %v838 = vpop.f32.mrf.mxu0
    %v839 = vadd.f32 0.0, %v838
    %v840 = vpop.f32.mrf.mxu0
    %v841 = vadd.f32 0.0, %v840
    %842 = vmatprep.mubr.f32.mxu0 0.0
    %843 = vmatmul.mubr.f32.gmra.mxu0 %v734
    %v844 = vpop.f32.mrf.mxu0
    %v845 = vadd.f32 0.0, %v844
    %v846 = vpop.f32.mrf.mxu0
    %v847 = vadd.f32 0.0, %v846
    %848 = vmatprep.mubr.f32.mxu0 0.0
    %849 = vmatmul.mubr.f32.gmra.mxu0 %v737
    %v850 = vpop.f32.mrf.mxu0
    %v851 = vadd.f32 0.0, %v850
    %v852 = vpop.f32.mrf.mxu0
    %v853 = vadd.f32 0.0, %v852
    %854 = vmatprep.mubr.f32.mxu0 0.0
    %855 = vmatmul.mubr.f32.gmra.mxu0 %v740
    %v856 = vpop.f32.mrf.mxu0
    %v857 = vadd.f32 0.0, %v856
    %v858 = vpop.f32.mrf.mxu0
    %v859 = vadd.f32 0.0, %v858
    %860 = vmatprep.mubr.f32.mxu0 0.0
    %861 = vmatmul.mubr.f32.gmra.mxu0 %v743
    %v862 = vpop.f32.mrf.mxu0
    %v863 = vadd.f32 0.0, %v862
    %v864 = vpop.f32.mrf.mxu0
    %v865 = vadd.f32 0.0, %v864
    %866 = vmatprep.mubr.f32.mxu0 0.0
    %867 = vmatmul.mubr.f32.gmra.mxu0 %v746
    %v868 = vpop.f32.mrf.mxu0
    %v869 = vadd.f32 0.0, %v868
    %v870 = vpop.f32.mrf.mxu0
    %v871 = vadd.f32 0.0, %v870
    %872 = vmatprep.mubr.f32.mxu0 0.0
    %873 = vmatmul.mubr.f32.gmra.mxu0 %v749
    %v874 = vpop.f32.mrf.mxu0
    %v875 = vadd.f32 0.0, %v874
    %v876 = vpop.f32.mrf.mxu0
    %v877 = vadd.f32 0.0, %v876
    %878 = vmatprep.mubr.f32.mxu0 0.0
    %879 = vmatmul.mubr.f32.gmra.mxu0 %v752
    %v880 = vpop.f32.mrf.mxu0
    %v881 = vadd.f32 0.0, %v880
    %v882 = vpop.f32.mrf.mxu0
    %v883 = vadd.f32 0.0, %v882
    %884 = vmatprep.mubr.f32.mxu0 0.0
    %885 = vmatmul.mubr.f32.gmra.mxu0 %v755
    %v886 = vpop.f32.mrf.mxu0
    %v887 = vadd.f32 0.0, %v886
    %v888 = vpop.f32.mrf.mxu0
    %v889 = vadd.f32 0.0, %v888
    %890 = vmatprep.mubr.f32.mxu0 0.0
    %891 = vmatmul.mubr.f32.gmra.mxu0 %v758
    %v892 = vpop.f32.mrf.mxu0
    %v893 = vadd.f32 0.0, %v892
    %v894 = vpop.f32.mrf.mxu0
    %v895 = vadd.f32 0.0, %v894
    %896 = vdwg.mxu0
    %v897 = vadd.f32 %v678, %v827
    %v898 = vadd.f32 %v679, %v829
    %v899 = vadd.f32 %v680, %v833
    %v900 = vadd.f32 %v681, %v835
    %v901 = vadd.f32 %v682, %v839
    %v902 = vadd.f32 %v683, %v841
    %v903 = vadd.f32 %v684, %v845
    %v904 = vadd.f32 %v685, %v847
    %v905 = vadd.f32 %v686, %v851
    %v906 = vadd.f32 %v687, %v853
    %v907 = vadd.f32 %v688, %v857
    %v908 = vadd.f32 %v689, %v859
    %v909 = vadd.f32 %v690, %v863
    %v910 = vadd.f32 %v691, %v865
    %v911 = vadd.f32 %v692, %v869
    %v912 = vadd.f32 %v693, %v871
    %v913 = vadd.f32 %v694, %v875
    %v914 = vadd.f32 %v695, %v877
    %v915 = vadd.f32 %v696, %v881
    %v916 = vadd.f32 %v697, %v883
    %v917 = vadd.f32 %v698, %v887
    %v918 = vadd.f32 %v699, %v889
    %v919 = vadd.f32 %v700, %v893
    %v920 = vadd.f32 %v701, %v895
    %s921 = scalar_lea.vmem %s0, 16
    %v922 = vld [vmem:[%s921] sm:$0xff]
    %v923 = vld [vmem:[%s921 + $0x8] sm:$0xff]
    %v924 = vld [vmem:[%s921 + $0x10] sm:$0xff]
    %v925 = vld [vmem:[%s921 + $0x18] sm:$0xff]
    %v926 = vld [vmem:[%s921 + $0x20] sm:$0xff]
    %v927 = vld [vmem:[%s921 + $0x28] sm:$0xff]
    %v928 = vld [vmem:[%s921 + $0x30] sm:$0xff]
    %v929 = vld [vmem:[%s921 + $0x38] sm:$0xff]
    %v930 = vld [vmem:[%s921 + $0x40] sm:$0xff]
    %v931 = vld [vmem:[%s921 + $0x48] sm:$0xff]
    %v932 = vld [vmem:[%s921 + $0x50] sm:$0xff]
    %v933 = vld [vmem:[%s921 + $0x58] sm:$0xff]
    %s934 = scalar_lea.vmem %s1, 256
    %v935 = vld [vmem:[%s934] sm:$0xff]
    %v936 = vld [vmem:[%s934 + $0x8] sm:$0xff]
    %v937 = vld [vmem:[%s934 + $0x10] sm:$0xff]
    %v938 = vld [vmem:[%s934 + $0x18] sm:$0xff]
    %v939 = vld [vmem:[%s934 + $0x20] sm:$0xff]
    %v940 = vld [vmem:[%s934 + $0x28] sm:$0xff]
    %v941 = vld [vmem:[%s934 + $0x30] sm:$0xff]
    %v942 = vld [vmem:[%s934 + $0x38] sm:$0xff]
    %v944 = vsel %vm136, %v922, 0
    %v947 = vsel %vm136, %v923, 0
    %v950 = vsel %vm136, %v924, 0
    %v953 = vsel %vm136, %v925, 0
    %v956 = vsel %vm136, %v926, 0
    %v959 = vsel %vm136, %v927, 0
    %v962 = vsel %vm136, %v928, 0
    %v965 = vsel %vm136, %v929, 0
    %v968 = vsel %vm136, %v930, 0
    %v971 = vsel %vm136, %v931, 0
    %v974 = vsel %vm136, %v932, 0
    %v977 = vsel %vm136, %v933, 0
    %979 = vmatprep.subr.mxu0 0.0
    %980 = vmatpush1.msra.mxu0 0.0
    %981 = vmatprep.subr.mxu0 0.0
    %982 = vmatpush1.msra.mxu0 0.0
    %983 = vmatprep.subr.mxu0 0.0
    %984 = vmatpush1.msra.mxu0 0.0
    %985 = vmatprep.subr.mxu0 0.0
    %986 = vmatpush1.msra.mxu0 0.0
    %987 = vmatprep.subr.mxu0 0.0
    %988 = vmatpush1.msra.mxu0 0.0
    %989 = vmatprep.subr.mxu0 0.0
    %990 = vmatpush1.msra.mxu0 0.0
    %991 = vmatprep.subr.mxu0 0.0
    %992 = vmatpush1.msra.mxu0 0.0
    %993 = vmatprep.subr.mxu0 0.0
    %994 = vmatpush1.msra.mxu0 0.0
    %995 = vmatprep.subr.mxu0 0.0
    %996 = vmatpush1.msra.mxu0 0.0
    %997 = vmatprep.subr.mxu0 0.0
    %998 = vmatpush1.msra.mxu0 0.0
    %999 = vmatprep.subr.mxu0 0.0
    %1000 = vmatpush1.msra.mxu0 0.0
    %1001 = vmatprep.subr.mxu0 0.0
    %1002 = vmatpush1.msra.mxu0 0.0
    %1003 = vmatprep.subr.mxu0 %v942
    %1004 = vmatpush1.msra.mxu0 %v941
    %1005 = vmatprep.subr.mxu0 %v940
    %1006 = vmatpush1.msra.mxu0 %v939
    %1007 = vmatprep.subr.mxu0 %v938
    %1008 = vmatpush1.msra.mxu0 %v937
    %1009 = vmatprep.subr.mxu0 %v936
    %1010 = vmatpush1.msra.mxu0 %v935
    %1011 = vmatprep.subr.mxu0 0.0
    %1012 = vmatpush2.msra.mxu0 0.0
    %1013 = vmatprep.subr.mxu0 0.0
    %1014 = vmatpush2.msra.mxu0 0.0
    %1015 = vmatprep.subr.mxu0 0.0
    %1016 = vmatpush2.msra.mxu0 0.0
    %1017 = vmatprep.subr.mxu0 0.0
    %1018 = vmatpush2.msra.mxu0 0.0
    %1019 = vmatprep.subr.mxu0 0.0
    %1020 = vmatpush2.msra.mxu0 0.0
    %1021 = vmatprep.subr.mxu0 0.0
    %1022 = vmatpush2.msra.mxu0 0.0
    %1023 = vmatprep.subr.mxu0 0.0
    %1024 = vmatpush2.msra.mxu0 0.0
    %1025 = vmatprep.subr.mxu0 0.0
    %1026 = vmatpush2.msra.mxu0 0.0
    %1027 = vmatprep.subr.mxu0 0.0
    %1028 = vmatpush2.msra.mxu0 0.0
    %1029 = vmatprep.subr.mxu0 0.0
    %1030 = vmatpush2.msra.mxu0 0.0
    %1031 = vmatprep.subr.mxu0 0.0
    %1032 = vmatpush2.msra.mxu0 0.0
    %1033 = vmatprep.subr.mxu0 0.0
    %1034 = vmatpush2.msra.mxu0 0.0
    %1035 = vmatprep.subr.mxu0 0.0
    %1036 = vmatpush2.msra.mxu0 0.0
    %1037 = vmatprep.subr.mxu0 0.0
    %1038 = vmatpush2.msra.mxu0 0.0
    %1039 = vmatprep.subr.mxu0 0.0
    %1040 = vmatpush2.msra.mxu0 0.0
    %1041 = vmatprep.subr.mxu0 0.0
    %1042 = vmatpush2.msra.mxu0 0.0
    %1043 = vmatprep.mubr.f32.mxu0 0.0
    %1044 = vmatmul.mubr.f32.gmra.mxu0 %v944
    %v1045 = vpop.f32.mrf.mxu0
    %v1046 = vadd.f32 0.0, %v1045
    %v1047 = vpop.f32.mrf.mxu0
    %v1048 = vadd.f32 0.0, %v1047
    %1049 = vmatprep.mubr.f32.mxu0 0.0
    %1050 = vmatmul.mubr.f32.gmra.mxu0 %v947
    %v1051 = vpop.f32.mrf.mxu0
    %v1052 = vadd.f32 0.0, %v1051
    %v1053 = vpop.f32.mrf.mxu0
    %v1054 = vadd.f32 0.0, %v1053
    %1055 = vmatprep.mubr.f32.mxu0 0.0
    %1056 = vmatmul.mubr.f32.gmra.mxu0 %v950
    %v1057 = vpop.f32.mrf.mxu0
    %v1058 = vadd.f32 0.0, %v1057
    %v1059 = vpop.f32.mrf.mxu0
    %v1060 = vadd.f32 0.0, %v1059
    %1061 = vmatprep.mubr.f32.mxu0 0.0
    %1062 = vmatmul.mubr.f32.gmra.mxu0 %v953
    %v1063 = vpop.f32.mrf.mxu0
    %v1064 = vadd.f32 0.0, %v1063
    %v1065 = vpop.f32.mrf.mxu0
    %v1066 = vadd.f32 0.0, %v1065
    %1067 = vmatprep.mubr.f32.mxu0 0.0
    %1068 = vmatmul.mubr.f32.gmra.mxu0 %v956
    %v1069 = vpop.f32.mrf.mxu0
    %v1070 = vadd.f32 0.0, %v1069
    %v1071 = vpop.f32.mrf.mxu0
    %v1072 = vadd.f32 0.0, %v1071
    %1073 = vmatprep.mubr.f32.mxu0 0.0
    %1074 = vmatmul.mubr.f32.gmra.mxu0 %v959
    %v1075 = vpop.f32.mrf.mxu0
    %v1076 = vadd.f32 0.0, %v1075
    %v1077 = vpop.f32.mrf.mxu0
    %v1078 = vadd.f32 0.0, %v1077
    %1079 = vmatprep.mubr.f32.mxu0 0.0
    %1080 = vmatmul.mubr.f32.gmra.mxu0 %v962
    %v1081 = vpop.f32.mrf.mxu0
    %v1082 = vadd.f32 0.0, %v1081
    %v1083 = vpop.f32.mrf.mxu0
    %v1084 = vadd.f32 0.0, %v1083
    %1085 = vmatprep.mubr.f32.mxu0 0.0
    %1086 = vmatmul.mubr.f32.gmra.mxu0 %v965
    %v1087 = vpop.f32.mrf.mxu0
    %v1088 = vadd.f32 0.0, %v1087
    %v1089 = vpop.f32.mrf.mxu0
    %v1090 = vadd.f32 0.0, %v1089
    %1091 = vmatprep.mubr.f32.mxu0 0.0
    %1092 = vmatmul.mubr.f32.gmra.mxu0 %v968
    %v1093 = vpop.f32.mrf.mxu0
    %v1094 = vadd.f32 0.0, %v1093
    %v1095 = vpop.f32.mrf.mxu0
    %v1096 = vadd.f32 0.0, %v1095
    %1097 = vmatprep.mubr.f32.mxu0 0.0
    %1098 = vmatmul.mubr.f32.gmra.mxu0 %v971
    %v1099 = vpop.f32.mrf.mxu0
    %v1100 = vadd.f32 0.0, %v1099
    %v1101 = vpop.f32.mrf.mxu0
    %v1102 = vadd.f32 0.0, %v1101
    %1103 = vmatprep.mubr.f32.mxu0 0.0
    %1104 = vmatmul.mubr.f32.gmra.mxu0 %v974
    %v1105 = vpop.f32.mrf.mxu0
    %v1106 = vadd.f32 0.0, %v1105
    %v1107 = vpop.f32.mrf.mxu0
    %v1108 = vadd.f32 0.0, %v1107
    %1109 = vmatprep.mubr.f32.mxu0 0.0
    %1110 = vmatmul.mubr.f32.gmra.mxu0 %v977
    %v1111 = vpop.f32.mrf.mxu0
    %v1112 = vadd.f32 0.0, %v1111
    %v1113 = vpop.f32.mrf.mxu0
    %v1114 = vadd.f32 0.0, %v1113
    %1115 = vdwg.mxu0
    %v1116 = vadd.f32 %v897, %v1046
    %v1117 = vadd.f32 %v898, %v1048
    %v1118 = vadd.f32 %v899, %v1052
    %v1119 = vadd.f32 %v900, %v1054
    %v1120 = vadd.f32 %v901, %v1058
    %v1121 = vadd.f32 %v902, %v1060
    %v1122 = vadd.f32 %v903, %v1064
    %v1123 = vadd.f32 %v904, %v1066
    %v1124 = vadd.f32 %v905, %v1070
    %v1125 = vadd.f32 %v906, %v1072
    %v1126 = vadd.f32 %v907, %v1076
    %v1127 = vadd.f32 %v908, %v1078
    %v1128 = vadd.f32 %v909, %v1082
    %v1129 = vadd.f32 %v910, %v1084
    %v1130 = vadd.f32 %v911, %v1088
    %v1131 = vadd.f32 %v912, %v1090
    %v1132 = vadd.f32 %v913, %v1094
    %v1133 = vadd.f32 %v914, %v1096
    %v1134 = vadd.f32 %v915, %v1100
    %v1135 = vadd.f32 %v916, %v1102
    %v1136 = vadd.f32 %v917, %v1106
    %v1137 = vadd.f32 %v918, %v1108
    %v1138 = vadd.f32 %v919, %v1112
    %v1139 = vadd.f32 %v920, %v1114
    %v1141 = vlaneseq
    %v1142 = vshrl.u32 %v1141, 7
    %v1143 = vsub.s32 0, %v1142
    %v1144 = vrot.slane %v93, %v1143
    %v1145 = vlaneseq
    %v1146 = vshrl.u32 %v1145, 7
    %v1147 = vsub.s32 1, %v1146
    %v1148 = vrot.slane %v93, %v1147
    %v1151 = vadd.f32 %v1116, %v1144
    %v1152 = vadd.f32 %v1117, %v1148
    %v1153 = vadd.f32 %v1118, %v1144
    %v1154 = vadd.f32 %v1119, %v1148
    %v1155 = vadd.f32 %v1120, %v1144
    %v1156 = vadd.f32 %v1121, %v1148
    %v1157 = vadd.f32 %v1122, %v1144
    %v1158 = vadd.f32 %v1123, %v1148
    %v1159 = vadd.f32 %v1124, %v1144
    %v1160 = vadd.f32 %v1125, %v1148
    %v1161 = vadd.f32 %v1126, %v1144
    %v1162 = vadd.f32 %v1127, %v1148
    %v1163 = vadd.f32 %v1128, %v1144
    %v1164 = vadd.f32 %v1129, %v1148
    %v1165 = vadd.f32 %v1130, %v1144
    %v1166 = vadd.f32 %v1131, %v1148
    %v1167 = vadd.f32 %v1132, %v1144
    %v1168 = vadd.f32 %v1133, %v1148
    %v1169 = vadd.f32 %v1134, %v1144
    %v1170 = vadd.f32 %v1135, %v1148
    %v1171 = vadd.f32 %v1136, %v1144
    %v1172 = vadd.f32 %v1137, %v1148
    %v1173 = vadd.f32 %v1138, %v1144
    %v1174 = vadd.f32 %v1139, %v1148
    %v1175 = vmax.f32 %v1151, 0.0
    %v1176 = vmax.f32 %v1152, 0.0
    %v1177 = vmax.f32 %v1153, 0.0
    %v1178 = vmax.f32 %v1154, 0.0
    %v1179 = vmax.f32 %v1155, 0.0
    %v1180 = vmax.f32 %v1156, 0.0
    %v1181 = vmax.f32 %v1157, 0.0
    %v1182 = vmax.f32 %v1158, 0.0
    %v1183 = vmax.f32 %v1159, 0.0
    %v1184 = vmax.f32 %v1160, 0.0
    %v1185 = vmax.f32 %v1161, 0.0
    %v1186 = vmax.f32 %v1162, 0.0
    %v1187 = vmax.f32 %v1163, 0.0
    %v1188 = vmax.f32 %v1164, 0.0
    %v1189 = vmax.f32 %v1165, 0.0
    %v1190 = vmax.f32 %v1166, 0.0
    %v1191 = vmax.f32 %v1167, 0.0
    %v1192 = vmax.f32 %v1168, 0.0
    %v1193 = vmax.f32 %v1169, 0.0
    %v1194 = vmax.f32 %v1170, 0.0
    %v1195 = vmax.f32 %v1171, 0.0
    %v1196 = vmax.f32 %v1172, 0.0
    %v1197 = vmax.f32 %v1173, 0.0
    %v1198 = vmax.f32 %v1174, 0.0
    %v1199 = vmax.f32 %v1175, %v1176
    %v1200 = vmax.f32 %v1177, %v1178
    %v1201 = vmax.f32 %v1179, %v1180
    %v1202 = vmax.f32 %v1181, %v1182
    %v1203 = vmax.f32 %v1183, %v1184
    %v1204 = vmax.f32 %v1185, %v1186
    %v1205 = vmax.f32 %v1187, %v1188
    %v1206 = vmax.f32 %v1189, %v1190
    %v1207 = vmax.f32 %v1191, %v1192
    %v1208 = vmax.f32 %v1193, %v1194
    %v1209 = vmax.f32 %v1195, %v1196
    %v1210 = vmax.f32 %v1197, %v1198
    %1211 = vmatprep.subr.mxu0 0.0
    %1212 = vmatpush1.msra.mxu0 0.0
    %1213 = vmatprep.subr.mxu0 0.0
    %1214 = vmatpush1.msra.mxu0 0.0
    %1215 = vmatprep.subr.mxu0 0.0
    %1216 = vmatpush1.msra.mxu0 0.0
    %1217 = vmatprep.subr.mxu0 0.0
    %1218 = vmatpush1.msra.mxu0 0.0
    %1219 = vmatprep.subr.mxu0 0.0
    %1220 = vmatpush1.msra.mxu0 0.0
    %1221 = vmatprep.subr.mxu0 0.0
    %1222 = vmatpush1.msra.mxu0 0.0
    %1223 = vmatprep.subr.mxu0 0.0
    %1224 = vmatpush1.msra.mxu0 0.0
    %1225 = vmatprep.subr.mxu0 0.0
    %1226 = vmatpush1.msra.mxu0 0.0
    %1227 = vmatprep.subr.mxu0 0.0
    %1228 = vmatpush1.msra.mxu0 0.0
    %1229 = vmatprep.subr.mxu0 0.0
    %1230 = vmatpush1.msra.mxu0 0.0
    %1231 = vmatprep.subr.mxu0 0.0
    %1232 = vmatpush1.msra.mxu0 0.0
    %1233 = vmatprep.subr.mxu0 0.0
    %1234 = vmatpush1.msra.mxu0 0.0
    %1235 = vmatprep.subr.mxu0 %v135
    %1236 = vmatpush1.msra.mxu0 %v134
    %1237 = vmatprep.subr.mxu0 %v133
    %1238 = vmatpush1.msra.mxu0 %v132
    %1239 = vmatprep.subr.mxu0 %v131
    %1240 = vmatpush1.msra.mxu0 %v130
    %1241 = vmatprep.subr.mxu0 %v129
    %1242 = vmatpush1.msra.mxu0 %v128
    %1243 = vmatprep.subr.mxu0 0.0
    %1244 = vmatpush2.msra.mxu0 0.0
    %1245 = vmatprep.subr.mxu0 0.0
    %1246 = vmatpush2.msra.mxu0 0.0
    %1247 = vmatprep.subr.mxu0 0.0
    %1248 = vmatpush2.msra.mxu0 0.0
    %1249 = vmatprep.subr.mxu0 0.0
    %1250 = vmatpush2.msra.mxu0 0.0
    %1251 = vmatprep.subr.mxu0 0.0
    %1252 = vmatpush2.msra.mxu0 0.0
    %1253 = vmatprep.subr.mxu0 0.0
    %1254 = vmatpush2.msra.mxu0 0.0
    %1255 = vmatprep.subr.mxu0 0.0
    %1256 = vmatpush2.msra.mxu0 0.0
    %1257 = vmatprep.subr.mxu0 0.0
    %1258 = vmatpush2.msra.mxu0 0.0
    %1259 = vmatprep.subr.mxu0 0.0
    %1260 = vmatpush2.msra.mxu0 0.0
    %1261 = vmatprep.subr.mxu0 0.0
    %1262 = vmatpush2.msra.mxu0 0.0
    %1263 = vmatprep.subr.mxu0 0.0
    %1264 = vmatpush2.msra.mxu0 0.0
    %1265 = vmatprep.subr.mxu0 0.0
    %1266 = vmatpush2.msra.mxu0 0.0
    %1267 = vmatprep.subr.mxu0 0.0
    %1268 = vmatpush2.msra.mxu0 0.0
    %1269 = vmatprep.subr.mxu0 0.0
    %1270 = vmatpush2.msra.mxu0 0.0
    %1271 = vmatprep.subr.mxu0 0.0
    %1272 = vmatpush2.msra.mxu0 0.0
    %1273 = vmatprep.subr.mxu0 0.0
    %1274 = vmatpush2.msra.mxu0 0.0
    %1275 = vmatprep.mubr.f32.mxu0 0.0
    %1276 = vmatmul.mubr.f32.gmra.mxu0 %v506
    %v1277 = vpop.f32.mrf.mxu0
    %v1278 = vadd.f32 0.0, %v1277
    %v1279 = vpop.f32.mrf.mxu0
    %v1280 = vadd.f32 0.0, %v1279
    %1281 = vmatprep.mubr.f32.mxu0 0.0
    %1282 = vmatmul.mubr.f32.gmra.mxu0 %v509
    %v1283 = vpop.f32.mrf.mxu0
    %v1284 = vadd.f32 0.0, %v1283
    %v1285 = vpop.f32.mrf.mxu0
    %v1286 = vadd.f32 0.0, %v1285
    %1287 = vmatprep.mubr.f32.mxu0 0.0
    %1288 = vmatmul.mubr.f32.gmra.mxu0 %v512
    %v1289 = vpop.f32.mrf.mxu0
    %v1290 = vadd.f32 0.0, %v1289
    %v1291 = vpop.f32.mrf.mxu0
    %v1292 = vadd.f32 0.0, %v1291
    %1293 = vmatprep.mubr.f32.mxu0 0.0
    %1294 = vmatmul.mubr.f32.gmra.mxu0 %v515
    %v1295 = vpop.f32.mrf.mxu0
    %v1296 = vadd.f32 0.0, %v1295
    %v1297 = vpop.f32.mrf.mxu0
    %v1298 = vadd.f32 0.0, %v1297
    %1299 = vmatprep.mubr.f32.mxu0 0.0
    %1300 = vmatmul.mubr.f32.gmra.mxu0 %v518
    %v1301 = vpop.f32.mrf.mxu0
    %v1302 = vadd.f32 0.0, %v1301
    %v1303 = vpop.f32.mrf.mxu0
    %v1304 = vadd.f32 0.0, %v1303
    %1305 = vmatprep.mubr.f32.mxu0 0.0
    %1306 = vmatmul.mubr.f32.gmra.mxu0 %v521
    %v1307 = vpop.f32.mrf.mxu0
    %v1308 = vadd.f32 0.0, %v1307
    %v1309 = vpop.f32.mrf.mxu0
    %v1310 = vadd.f32 0.0, %v1309
    %1311 = vmatprep.mubr.f32.mxu0 0.0
    %1312 = vmatmul.mubr.f32.gmra.mxu0 %v524
    %v1313 = vpop.f32.mrf.mxu0
    %v1314 = vadd.f32 0.0, %v1313
    %v1315 = vpop.f32.mrf.mxu0
    %v1316 = vadd.f32 0.0, %v1315
    %1317 = vmatprep.mubr.f32.mxu0 0.0
    %1318 = vmatmul.mubr.f32.gmra.mxu0 %v527
    %v1319 = vpop.f32.mrf.mxu0
    %v1320 = vadd.f32 0.0, %v1319
    %v1321 = vpop.f32.mrf.mxu0
    %v1322 = vadd.f32 0.0, %v1321
    %1323 = vmatprep.mubr.f32.mxu0 0.0
    %1324 = vmatmul.mubr.f32.gmra.mxu0 %v530
    %v1325 = vpop.f32.mrf.mxu0
    %v1326 = vadd.f32 0.0, %v1325
    %v1327 = vpop.f32.mrf.mxu0
    %v1328 = vadd.f32 0.0, %v1327
    %1329 = vmatprep.mubr.f32.mxu0 0.0
    %1330 = vmatmul.mubr.f32.gmra.mxu0 %v533
    %v1331 = vpop.f32.mrf.mxu0
    %v1332 = vadd.f32 0.0, %v1331
    %v1333 = vpop.f32.mrf.mxu0
    %v1334 = vadd.f32 0.0, %v1333
    %1335 = vmatprep.mubr.f32.mxu0 0.0
    %1336 = vmatmul.mubr.f32.gmra.mxu0 %v536
    %v1337 = vpop.f32.mrf.mxu0
    %v1338 = vadd.f32 0.0, %v1337
    %v1339 = vpop.f32.mrf.mxu0
    %v1340 = vadd.f32 0.0, %v1339
    %1341 = vmatprep.mubr.f32.mxu0 0.0
    %1342 = vmatmul.mubr.f32.gmra.mxu0 %v539
    %v1343 = vpop.f32.mrf.mxu0
    %v1344 = vadd.f32 0.0, %v1343
    %v1345 = vpop.f32.mrf.mxu0
    %v1346 = vadd.f32 0.0, %v1345
    %1347 = vdwg.mxu0
    %1348 = vmatprep.subr.mxu0 0.0
    %1349 = vmatpush1.msra.mxu0 0.0
    %1350 = vmatprep.subr.mxu0 0.0
    %1351 = vmatpush1.msra.mxu0 0.0
    %1352 = vmatprep.subr.mxu0 0.0
    %1353 = vmatpush1.msra.mxu0 0.0
    %1354 = vmatprep.subr.mxu0 0.0
    %1355 = vmatpush1.msra.mxu0 0.0
    %1356 = vmatprep.subr.mxu0 0.0
    %1357 = vmatpush1.msra.mxu0 0.0
    %1358 = vmatprep.subr.mxu0 0.0
    %1359 = vmatpush1.msra.mxu0 0.0
    %1360 = vmatprep.subr.mxu0 0.0
    %1361 = vmatpush1.msra.mxu0 0.0
    %1362 = vmatprep.subr.mxu0 0.0
    %1363 = vmatpush1.msra.mxu0 0.0
    %1364 = vmatprep.subr.mxu0 0.0
    %1365 = vmatpush1.msra.mxu0 0.0
    %1366 = vmatprep.subr.mxu0 0.0
    %1367 = vmatpush1.msra.mxu0 0.0
    %1368 = vmatprep.subr.mxu0 0.0
    %1369 = vmatpush1.msra.mxu0 0.0
    %1370 = vmatprep.subr.mxu0 0.0
    %1371 = vmatpush1.msra.mxu0 0.0
    %1372 = vmatprep.subr.mxu0 %v113
    %1373 = vmatpush1.msra.mxu0 %v112
    %1374 = vmatprep.subr.mxu0 %v111
    %1375 = vmatpush1.msra.mxu0 %v110
    %1376 = vmatprep.subr.mxu0 %v109
    %1377 = vmatpush1.msra.mxu0 %v108
    %1378 = vmatprep.subr.mxu0 %v107
    %1379 = vmatpush1.msra.mxu0 %v106
    %1380 = vmatprep.subr.mxu0 0.0
    %1381 = vmatpush2.msra.mxu0 0.0
    %1382 = vmatprep.subr.mxu0 0.0
    %1383 = vmatpush2.msra.mxu0 0.0
    %1384 = vmatprep.subr.mxu0 0.0
    %1385 = vmatpush2.msra.mxu0 0.0
    %1386 = vmatprep.subr.mxu0 0.0
    %1387 = vmatpush2.msra.mxu0 0.0
    %1388 = vmatprep.subr.mxu0 0.0
    %1389 = vmatpush2.msra.mxu0 0.0
    %1390 = vmatprep.subr.mxu0 0.0
    %1391 = vmatpush2.msra.mxu0 0.0
    %1392 = vmatprep.subr.mxu0 0.0
    %1393 = vmatpush2.msra.mxu0 0.0
    %1394 = vmatprep.subr.mxu0 0.0
    %1395 = vmatpush2.msra.mxu0 0.0
    %1396 = vmatprep.subr.mxu0 0.0
    %1397 = vmatpush2.msra.mxu0 0.0
    %1398 = vmatprep.subr.mxu0 0.0
    %1399 = vmatpush2.msra.mxu0 0.0
    %1400 = vmatprep.subr.mxu0 0.0
    %1401 = vmatpush2.msra.mxu0 0.0
    %1402 = vmatprep.subr.mxu0 0.0
    %1403 = vmatpush2.msra.mxu0 0.0
    %1404 = vmatprep.subr.mxu0 0.0
    %1405 = vmatpush2.msra.mxu0 0.0
    %1406 = vmatprep.subr.mxu0 0.0
    %1407 = vmatpush2.msra.mxu0 0.0
    %1408 = vmatprep.subr.mxu0 0.0
    %1409 = vmatpush2.msra.mxu0 0.0
    %1410 = vmatprep.subr.mxu0 0.0
    %1411 = vmatpush2.msra.mxu0 0.0
    %1412 = vmatprep.mubr.f32.mxu0 0.0
    %1413 = vmatmul.mubr.f32.gmra.mxu0 %v138
    %v1414 = vpop.f32.mrf.mxu0
    %v1415 = vadd.f32 %v1278, %v1414
    %v1416 = vpop.f32.mrf.mxu0
    %v1417 = vadd.f32 %v1280, %v1416
    %1418 = vmatprep.mubr.f32.mxu0 0.0
    %1419 = vmatmul.mubr.f32.gmra.mxu0 %v141
    %v1420 = vpop.f32.mrf.mxu0
    %v1421 = vadd.f32 %v1284, %v1420
    %v1422 = vpop.f32.mrf.mxu0
    %v1423 = vadd.f32 %v1286, %v1422
    %1424 = vmatprep.mubr.f32.mxu0 0.0
    %1425 = vmatmul.mubr.f32.gmra.mxu0 %v144
    %v1426 = vpop.f32.mrf.mxu0
    %v1427 = vadd.f32 %v1290, %v1426
    %v1428 = vpop.f32.mrf.mxu0
    %v1429 = vadd.f32 %v1292, %v1428
    %1430 = vmatprep.mubr.f32.mxu0 0.0
    %1431 = vmatmul.mubr.f32.gmra.mxu0 %v147
    %v1432 = vpop.f32.mrf.mxu0
    %v1433 = vadd.f32 %v1296, %v1432
    %v1434 = vpop.f32.mrf.mxu0
    %v1435 = vadd.f32 %v1298, %v1434
    %1436 = vmatprep.mubr.f32.mxu0 0.0
    %1437 = vmatmul.mubr.f32.gmra.mxu0 %v150
    %v1438 = vpop.f32.mrf.mxu0
    %v1439 = vadd.f32 %v1302, %v1438
    %v1440 = vpop.f32.mrf.mxu0
    %v1441 = vadd.f32 %v1304, %v1440
    %1442 = vmatprep.mubr.f32.mxu0 0.0
    %1443 = vmatmul.mubr.f32.gmra.mxu0 %v153
    %v1444 = vpop.f32.mrf.mxu0
    %v1445 = vadd.f32 %v1308, %v1444
    %v1446 = vpop.f32.mrf.mxu0
    %v1447 = vadd.f32 %v1310, %v1446
    %1448 = vmatprep.mubr.f32.mxu0 0.0
    %1449 = vmatmul.mubr.f32.gmra.mxu0 %v156
    %v1450 = vpop.f32.mrf.mxu0
    %v1451 = vadd.f32 %v1314, %v1450
    %v1452 = vpop.f32.mrf.mxu0
    %v1453 = vadd.f32 %v1316, %v1452
    %1454 = vmatprep.mubr.f32.mxu0 0.0
    %1455 = vmatmul.mubr.f32.gmra.mxu0 %v159
    %v1456 = vpop.f32.mrf.mxu0
    %v1457 = vadd.f32 %v1320, %v1456
    %v1458 = vpop.f32.mrf.mxu0
    %v1459 = vadd.f32 %v1322, %v1458
    %1460 = vmatprep.mubr.f32.mxu0 0.0
    %1461 = vmatmul.mubr.f32.gmra.mxu0 %v162
    %v1462 = vpop.f32.mrf.mxu0
    %v1463 = vadd.f32 %v1326, %v1462
    %v1464 = vpop.f32.mrf.mxu0
    %v1465 = vadd.f32 %v1328, %v1464
    %1466 = vmatprep.mubr.f32.mxu0 0.0
    %1467 = vmatmul.mubr.f32.gmra.mxu0 %v165
    %v1468 = vpop.f32.mrf.mxu0
    %v1469 = vadd.f32 %v1332, %v1468
    %v1470 = vpop.f32.mrf.mxu0
    %v1471 = vadd.f32 %v1334, %v1470
    %1472 = vmatprep.mubr.f32.mxu0 0.0
    %1473 = vmatmul.mubr.f32.gmra.mxu0 %v168
    %v1474 = vpop.f32.mrf.mxu0
    %v1475 = vadd.f32 %v1338, %v1474
    %v1476 = vpop.f32.mrf.mxu0
    %v1477 = vadd.f32 %v1340, %v1476
    %1478 = vmatprep.mubr.f32.mxu0 0.0
    %1479 = vmatmul.mubr.f32.gmra.mxu0 %v171
    %v1480 = vpop.f32.mrf.mxu0
    %v1481 = vadd.f32 %v1344, %v1480
    %v1482 = vpop.f32.mrf.mxu0
    %v1483 = vadd.f32 %v1346, %v1482
    %1484 = vdwg.mxu0
    %1485 = vmatprep.subr.mxu0 0.0
    %1486 = vmatpush1.msra.mxu0 0.0
    %1487 = vmatprep.subr.mxu0 0.0
    %1488 = vmatpush1.msra.mxu0 0.0
    %1489 = vmatprep.subr.mxu0 0.0
    %1490 = vmatpush1.msra.mxu0 0.0
    %1491 = vmatprep.subr.mxu0 0.0
    %1492 = vmatpush1.msra.mxu0 0.0
    %1493 = vmatprep.subr.mxu0 0.0
    %1494 = vmatpush1.msra.mxu0 0.0
    %1495 = vmatprep.subr.mxu0 0.0
    %1496 = vmatpush1.msra.mxu0 0.0
    %1497 = vmatprep.subr.mxu0 0.0
    %1498 = vmatpush1.msra.mxu0 0.0
    %1499 = vmatprep.subr.mxu0 0.0
    %1500 = vmatpush1.msra.mxu0 0.0
    %1501 = vmatprep.subr.mxu0 0.0
    %1502 = vmatpush1.msra.mxu0 0.0
    %1503 = vmatprep.subr.mxu0 0.0
    %1504 = vmatpush1.msra.mxu0 0.0
    %1505 = vmatprep.subr.mxu0 0.0
    %1506 = vmatpush1.msra.mxu0 0.0
    %1507 = vmatprep.subr.mxu0 0.0
    %1508 = vmatpush1.msra.mxu0 0.0
    %1509 = vmatprep.subr.mxu0 %v504
    %1510 = vmatpush1.msra.mxu0 %v503
    %1511 = vmatprep.subr.mxu0 %v502
    %1512 = vmatpush1.msra.mxu0 %v501
    %1513 = vmatprep.subr.mxu0 %v500
    %1514 = vmatpush1.msra.mxu0 %v499
    %1515 = vmatprep.subr.mxu0 %v498
    %1516 = vmatpush1.msra.mxu0 %v497
    %1517 = vmatprep.subr.mxu0 0.0
    %1518 = vmatpush2.msra.mxu0 0.0
    %1519 = vmatprep.subr.mxu0 0.0
    %1520 = vmatpush2.msra.mxu0 0.0
    %1521 = vmatprep.subr.mxu0 0.0
    %1522 = vmatpush2.msra.mxu0 0.0
    %1523 = vmatprep.subr.mxu0 0.0
    %1524 = vmatpush2.msra.mxu0 0.0
    %1525 = vmatprep.subr.mxu0 0.0
    %1526 = vmatpush2.msra.mxu0 0.0
    %1527 = vmatprep.subr.mxu0 0.0
    %1528 = vmatpush2.msra.mxu0 0.0
    %1529 = vmatprep.subr.mxu0 0.0
    %1530 = vmatpush2.msra.mxu0 0.0
    %1531 = vmatprep.subr.mxu0 0.0
    %1532 = vmatpush2.msra.mxu0 0.0
    %1533 = vmatprep.subr.mxu0 0.0
    %1534 = vmatpush2.msra.mxu0 0.0
    %1535 = vmatprep.subr.mxu0 0.0
    %1536 = vmatpush2.msra.mxu0 0.0
    %1537 = vmatprep.subr.mxu0 0.0
    %1538 = vmatpush2.msra.mxu0 0.0
    %1539 = vmatprep.subr.mxu0 0.0
    %1540 = vmatpush2.msra.mxu0 0.0
    %1541 = vmatprep.subr.mxu0 0.0
    %1542 = vmatpush2.msra.mxu0 0.0
    %1543 = vmatprep.subr.mxu0 0.0
    %1544 = vmatpush2.msra.mxu0 0.0
    %1545 = vmatprep.subr.mxu0 0.0
    %1546 = vmatpush2.msra.mxu0 0.0
    %1547 = vmatprep.subr.mxu0 0.0
    %1548 = vmatpush2.msra.mxu0 0.0
    %1549 = vmatprep.mubr.f32.mxu0 0.0
    %1550 = vmatmul.mubr.f32.gmra.mxu0 %v725
    %v1551 = vpop.f32.mrf.mxu0
    %v1552 = vadd.f32 0.0, %v1551
    %v1553 = vpop.f32.mrf.mxu0
    %v1554 = vadd.f32 0.0, %v1553
    %1555 = vmatprep.mubr.f32.mxu0 0.0
    %1556 = vmatmul.mubr.f32.gmra.mxu0 %v728
    %v1557 = vpop.f32.mrf.mxu0
    %v1558 = vadd.f32 0.0, %v1557
    %v1559 = vpop.f32.mrf.mxu0
    %v1560 = vadd.f32 0.0, %v1559
    %1561 = vmatprep.mubr.f32.mxu0 0.0
    %1562 = vmatmul.mubr.f32.gmra.mxu0 %v731
    %v1563 = vpop.f32.mrf.mxu0
    %v1564 = vadd.f32 0.0, %v1563
    %v1565 = vpop.f32.mrf.mxu0
    %v1566 = vadd.f32 0.0, %v1565
    %1567 = vmatprep.mubr.f32.mxu0 0.0
    %1568 = vmatmul.mubr.f32.gmra.mxu0 %v734
    %v1569 = vpop.f32.mrf.mxu0
    %v1570 = vadd.f32 0.0, %v1569
    %v1571 = vpop.f32.mrf.mxu0
    %v1572 = vadd.f32 0.0, %v1571
    %1573 = vmatprep.mubr.f32.mxu0 0.0
    %1574 = vmatmul.mubr.f32.gmra.mxu0 %v737
    %v1575 = vpop.f32.mrf.mxu0
    %v1576 = vadd.f32 0.0, %v1575
    %v1577 = vpop.f32.mrf.mxu0
    %v1578 = vadd.f32 0.0, %v1577
    %1579 = vmatprep.mubr.f32.mxu0 0.0
    %1580 = vmatmul.mubr.f32.gmra.mxu0 %v740
    %v1581 = vpop.f32.mrf.mxu0
    %v1582 = vadd.f32 0.0, %v1581
    %v1583 = vpop.f32.mrf.mxu0
    %v1584 = vadd.f32 0.0, %v1583
    %1585 = vmatprep.mubr.f32.mxu0 0.0
    %1586 = vmatmul.mubr.f32.gmra.mxu0 %v743
    %v1587 = vpop.f32.mrf.mxu0
    %v1588 = vadd.f32 0.0, %v1587
    %v1589 = vpop.f32.mrf.mxu0
    %v1590 = vadd.f32 0.0, %v1589
    %1591 = vmatprep.mubr.f32.mxu0 0.0
    %1592 = vmatmul.mubr.f32.gmra.mxu0 %v746
    %v1593 = vpop.f32.mrf.mxu0
    %v1594 = vadd.f32 0.0, %v1593
    %v1595 = vpop.f32.mrf.mxu0
    %v1596 = vadd.f32 0.0, %v1595
    %1597 = vmatprep.mubr.f32.mxu0 0.0
    %1598 = vmatmul.mubr.f32.gmra.mxu0 %v749
    %v1599 = vpop.f32.mrf.mxu0
    %v1600 = vadd.f32 0.0, %v1599
    %v1601 = vpop.f32.mrf.mxu0
    %v1602 = vadd.f32 0.0, %v1601
    %1603 = vmatprep.mubr.f32.mxu0 0.0
    %1604 = vmatmul.mubr.f32.gmra.mxu0 %v752
    %v1605 = vpop.f32.mrf.mxu0
    %v1606 = vadd.f32 0.0, %v1605
    %v1607 = vpop.f32.mrf.mxu0
    %v1608 = vadd.f32 0.0, %v1607
    %1609 = vmatprep.mubr.f32.mxu0 0.0
    %1610 = vmatmul.mubr.f32.gmra.mxu0 %v755
    %v1611 = vpop.f32.mrf.mxu0
    %v1612 = vadd.f32 0.0, %v1611
    %v1613 = vpop.f32.mrf.mxu0
    %v1614 = vadd.f32 0.0, %v1613
    %1615 = vmatprep.mubr.f32.mxu0 0.0
    %1616 = vmatmul.mubr.f32.gmra.mxu0 %v758
    %v1617 = vpop.f32.mrf.mxu0
    %v1618 = vadd.f32 0.0, %v1617
    %v1619 = vpop.f32.mrf.mxu0
    %v1620 = vadd.f32 0.0, %v1619
    %1621 = vdwg.mxu0
    %v1622 = vadd.f32 %v1415, %v1552
    %v1623 = vadd.f32 %v1417, %v1554
    %v1624 = vadd.f32 %v1421, %v1558
    %v1625 = vadd.f32 %v1423, %v1560
    %v1626 = vadd.f32 %v1427, %v1564
    %v1627 = vadd.f32 %v1429, %v1566
    %v1628 = vadd.f32 %v1433, %v1570
    %v1629 = vadd.f32 %v1435, %v1572
    %v1630 = vadd.f32 %v1439, %v1576
    %v1631 = vadd.f32 %v1441, %v1578
    %v1632 = vadd.f32 %v1445, %v1582
    %v1633 = vadd.f32 %v1447, %v1584
    %v1634 = vadd.f32 %v1451, %v1588
    %v1635 = vadd.f32 %v1453, %v1590
    %v1636 = vadd.f32 %v1457, %v1594
    %v1637 = vadd.f32 %v1459, %v1596
    %v1638 = vadd.f32 %v1463, %v1600
    %v1639 = vadd.f32 %v1465, %v1602
    %v1640 = vadd.f32 %v1469, %v1606
    %v1641 = vadd.f32 %v1471, %v1608
    %v1642 = vadd.f32 %v1475, %v1612
    %v1643 = vadd.f32 %v1477, %v1614
    %v1644 = vadd.f32 %v1481, %v1618
    %v1645 = vadd.f32 %v1483, %v1620
    %1646 = vmatprep.subr.mxu0 0.0
    %1647 = vmatpush1.msra.mxu0 0.0
    %1648 = vmatprep.subr.mxu0 0.0
    %1649 = vmatpush1.msra.mxu0 0.0
    %1650 = vmatprep.subr.mxu0 0.0
    %1651 = vmatpush1.msra.mxu0 0.0
    %1652 = vmatprep.subr.mxu0 0.0
    %1653 = vmatpush1.msra.mxu0 0.0
    %1654 = vmatprep.subr.mxu0 0.0
    %1655 = vmatpush1.msra.mxu0 0.0
    %1656 = vmatprep.subr.mxu0 0.0
    %1657 = vmatpush1.msra.mxu0 0.0
    %1658 = vmatprep.subr.mxu0 0.0
    %1659 = vmatpush1.msra.mxu0 0.0
    %1660 = vmatprep.subr.mxu0 0.0
    %1661 = vmatpush1.msra.mxu0 0.0
    %1662 = vmatprep.subr.mxu0 0.0
    %1663 = vmatpush1.msra.mxu0 0.0
    %1664 = vmatprep.subr.mxu0 0.0
    %1665 = vmatpush1.msra.mxu0 0.0
    %1666 = vmatprep.subr.mxu0 0.0
    %1667 = vmatpush1.msra.mxu0 0.0
    %1668 = vmatprep.subr.mxu0 0.0
    %1669 = vmatpush1.msra.mxu0 0.0
    %1670 = vmatprep.subr.mxu0 %v723
    %1671 = vmatpush1.msra.mxu0 %v722
    %1672 = vmatprep.subr.mxu0 %v721
    %1673 = vmatpush1.msra.mxu0 %v720
    %1674 = vmatprep.subr.mxu0 %v719
    %1675 = vmatpush1.msra.mxu0 %v718
    %1676 = vmatprep.subr.mxu0 %v717
    %1677 = vmatpush1.msra.mxu0 %v716
    %1678 = vmatprep.subr.mxu0 0.0
    %1679 = vmatpush2.msra.mxu0 0.0
    %1680 = vmatprep.subr.mxu0 0.0
    %1681 = vmatpush2.msra.mxu0 0.0
    %1682 = vmatprep.subr.mxu0 0.0
    %1683 = vmatpush2.msra.mxu0 0.0
    %1684 = vmatprep.subr.mxu0 0.0
    %1685 = vmatpush2.msra.mxu0 0.0
    %1686 = vmatprep.subr.mxu0 0.0
    %1687 = vmatpush2.msra.mxu0 0.0
    %1688 = vmatprep.subr.mxu0 0.0
    %1689 = vmatpush2.msra.mxu0 0.0
    %1690 = vmatprep.subr.mxu0 0.0
    %1691 = vmatpush2.msra.mxu0 0.0
    %1692 = vmatprep.subr.mxu0 0.0
    %1693 = vmatpush2.msra.mxu0 0.0
    %1694 = vmatprep.subr.mxu0 0.0
    %1695 = vmatpush2.msra.mxu0 0.0
    %1696 = vmatprep.subr.mxu0 0.0
    %1697 = vmatpush2.msra.mxu0 0.0
    %1698 = vmatprep.subr.mxu0 0.0
    %1699 = vmatpush2.msra.mxu0 0.0
    %1700 = vmatprep.subr.mxu0 0.0
    %1701 = vmatpush2.msra.mxu0 0.0
    %1702 = vmatprep.subr.mxu0 0.0
    %1703 = vmatpush2.msra.mxu0 0.0
    %1704 = vmatprep.subr.mxu0 0.0
    %1705 = vmatpush2.msra.mxu0 0.0
    %1706 = vmatprep.subr.mxu0 0.0
    %1707 = vmatpush2.msra.mxu0 0.0
    %1708 = vmatprep.subr.mxu0 0.0
    %1709 = vmatpush2.msra.mxu0 0.0
    %1710 = vmatprep.mubr.f32.mxu0 0.0
    %1711 = vmatmul.mubr.f32.gmra.mxu0 %v944
    %v1712 = vpop.f32.mrf.mxu0
    %v1713 = vadd.f32 0.0, %v1712
    %v1714 = vpop.f32.mrf.mxu0
    %v1715 = vadd.f32 0.0, %v1714
    %1716 = vmatprep.mubr.f32.mxu0 0.0
    %1717 = vmatmul.mubr.f32.gmra.mxu0 %v947
    %v1718 = vpop.f32.mrf.mxu0
    %v1719 = vadd.f32 0.0, %v1718
    %v1720 = vpop.f32.mrf.mxu0
    %v1721 = vadd.f32 0.0, %v1720
    %1722 = vmatprep.mubr.f32.mxu0 0.0
    %1723 = vmatmul.mubr.f32.gmra.mxu0 %v950
    %v1724 = vpop.f32.mrf.mxu0
    %v1725 = vadd.f32 0.0, %v1724
    %v1726 = vpop.f32.mrf.mxu0
    %v1727 = vadd.f32 0.0, %v1726
    %1728 = vmatprep.mubr.f32.mxu0 0.0
    %1729 = vmatmul.mubr.f32.gmra.mxu0 %v953
    %v1730 = vpop.f32.mrf.mxu0
    %v1731 = vadd.f32 0.0, %v1730
    %v1732 = vpop.f32.mrf.mxu0
    %v1733 = vadd.f32 0.0, %v1732
    %1734 = vmatprep.mubr.f32.mxu0 0.0
    %1735 = vmatmul.mubr.f32.gmra.mxu0 %v956
    %v1736 = vpop.f32.mrf.mxu0
    %v1737 = vadd.f32 0.0, %v1736
    %v1738 = vpop.f32.mrf.mxu0
    %v1739 = vadd.f32 0.0, %v1738
    %1740 = vmatprep.mubr.f32.mxu0 0.0
    %1741 = vmatmul.mubr.f32.gmra.mxu0 %v959
    %v1742 = vpop.f32.mrf.mxu0
    %v1743 = vadd.f32 0.0, %v1742
    %v1744 = vpop.f32.mrf.mxu0
    %v1745 = vadd.f32 0.0, %v1744
    %1746 = vmatprep.mubr.f32.mxu0 0.0
    %1747 = vmatmul.mubr.f32.gmra.mxu0 %v962
    %v1748 = vpop.f32.mrf.mxu0
    %v1749 = vadd.f32 0.0, %v1748
    %v1750 = vpop.f32.mrf.mxu0
    %v1751 = vadd.f32 0.0, %v1750
    %1752 = vmatprep.mubr.f32.mxu0 0.0
    %1753 = vmatmul.mubr.f32.gmra.mxu0 %v965
    %v1754 = vpop.f32.mrf.mxu0
    %v1755 = vadd.f32 0.0, %v1754
    %v1756 = vpop.f32.mrf.mxu0
    %v1757 = vadd.f32 0.0, %v1756
    %1758 = vmatprep.mubr.f32.mxu0 0.0
    %1759 = vmatmul.mubr.f32.gmra.mxu0 %v968
    %v1760 = vpop.f32.mrf.mxu0
    %v1761 = vadd.f32 0.0, %v1760
    %v1762 = vpop.f32.mrf.mxu0
    %v1763 = vadd.f32 0.0, %v1762
    %1764 = vmatprep.mubr.f32.mxu0 0.0
    %1765 = vmatmul.mubr.f32.gmra.mxu0 %v971
    %v1766 = vpop.f32.mrf.mxu0
    %v1767 = vadd.f32 0.0, %v1766
    %v1768 = vpop.f32.mrf.mxu0
    %v1769 = vadd.f32 0.0, %v1768
    %1770 = vmatprep.mubr.f32.mxu0 0.0
    %1771 = vmatmul.mubr.f32.gmra.mxu0 %v974
    %v1772 = vpop.f32.mrf.mxu0
    %v1773 = vadd.f32 0.0, %v1772
    %v1774 = vpop.f32.mrf.mxu0
    %v1775 = vadd.f32 0.0, %v1774
    %1776 = vmatprep.mubr.f32.mxu0 0.0
    %1777 = vmatmul.mubr.f32.gmra.mxu0 %v977
    %v1778 = vpop.f32.mrf.mxu0
    %v1779 = vadd.f32 0.0, %v1778
    %v1780 = vpop.f32.mrf.mxu0
    %v1781 = vadd.f32 0.0, %v1780
    %1782 = vdwg.mxu0
    %v1783 = vadd.f32 %v1622, %v1713
    %v1784 = vadd.f32 %v1623, %v1715
    %v1785 = vadd.f32 %v1624, %v1719
    %v1786 = vadd.f32 %v1625, %v1721
    %v1787 = vadd.f32 %v1626, %v1725
    %v1788 = vadd.f32 %v1627, %v1727
    %v1789 = vadd.f32 %v1628, %v1731
    %v1790 = vadd.f32 %v1629, %v1733
    %v1791 = vadd.f32 %v1630, %v1737
    %v1792 = vadd.f32 %v1631, %v1739
    %v1793 = vadd.f32 %v1632, %v1743
    %v1794 = vadd.f32 %v1633, %v1745
    %v1795 = vadd.f32 %v1634, %v1749
    %v1796 = vadd.f32 %v1635, %v1751
    %v1797 = vadd.f32 %v1636, %v1755
    %v1798 = vadd.f32 %v1637, %v1757
    %v1799 = vadd.f32 %v1638, %v1761
    %v1800 = vadd.f32 %v1639, %v1763
    %v1801 = vadd.f32 %v1640, %v1767
    %v1802 = vadd.f32 %v1641, %v1769
    %v1803 = vadd.f32 %v1642, %v1773
    %v1804 = vadd.f32 %v1643, %v1775
    %v1805 = vadd.f32 %v1644, %v1779
    %v1806 = vadd.f32 %v1645, %v1781
    %s1807 = scalar_lea.vmem %s0, 128
    %v1808 = vld [vmem:[%s1807] sm:$0xff]
    %v1809 = vld [vmem:[%s1807 + $0x8] sm:$0xff]
    %v1810 = vld [vmem:[%s1807 + $0x10] sm:$0xff]
    %v1811 = vld [vmem:[%s1807 + $0x18] sm:$0xff]
    %v1812 = vld [vmem:[%s1807 + $0x20] sm:$0xff]
    %v1813 = vld [vmem:[%s1807 + $0x28] sm:$0xff]
    %v1814 = vld [vmem:[%s1807 + $0x30] sm:$0xff]
    %v1815 = vld [vmem:[%s1807 + $0x38] sm:$0xff]
    %v1816 = vld [vmem:[%s1807 + $0x40] sm:$0xff]
    %v1817 = vld [vmem:[%s1807 + $0x48] sm:$0xff]
    %v1818 = vld [vmem:[%s1807 + $0x50] sm:$0xff]
    %v1819 = vld [vmem:[%s1807 + $0x58] sm:$0xff]
    %v1821 = vsel %vm136, %v1808, 0
    %v1824 = vsel %vm136, %v1809, 0
    %v1827 = vsel %vm136, %v1810, 0
    %v1830 = vsel %vm136, %v1811, 0
    %v1833 = vsel %vm136, %v1812, 0
    %v1836 = vsel %vm136, %v1813, 0
    %v1839 = vsel %vm136, %v1814, 0
    %v1842 = vsel %vm136, %v1815, 0
    %v1845 = vsel %vm136, %v1816, 0
    %v1848 = vsel %vm136, %v1817, 0
    %v1851 = vsel %vm136, %v1818, 0
    %v1854 = vsel %vm136, %v1819, 0
    %1856 = vmatprep.subr.mxu0 0.0
    %1857 = vmatpush1.msra.mxu0 0.0
    %1858 = vmatprep.subr.mxu0 0.0
    %1859 = vmatpush1.msra.mxu0 0.0
    %1860 = vmatprep.subr.mxu0 0.0
    %1861 = vmatpush1.msra.mxu0 0.0
    %1862 = vmatprep.subr.mxu0 0.0
    %1863 = vmatpush1.msra.mxu0 0.0
    %1864 = vmatprep.subr.mxu0 0.0
    %1865 = vmatpush1.msra.mxu0 0.0
    %1866 = vmatprep.subr.mxu0 0.0
    %1867 = vmatpush1.msra.mxu0 0.0
    %1868 = vmatprep.subr.mxu0 0.0
    %1869 = vmatpush1.msra.mxu0 0.0
    %1870 = vmatprep.subr.mxu0 0.0
    %1871 = vmatpush1.msra.mxu0 0.0
    %1872 = vmatprep.subr.mxu0 0.0
    %1873 = vmatpush1.msra.mxu0 0.0
    %1874 = vmatprep.subr.mxu0 0.0
    %1875 = vmatpush1.msra.mxu0 0.0
    %1876 = vmatprep.subr.mxu0 0.0
    %1877 = vmatpush1.msra.mxu0 0.0
    %1878 = vmatprep.subr.mxu0 0.0
    %1879 = vmatpush1.msra.mxu0 0.0
    %1880 = vmatprep.subr.mxu0 %v942
    %1881 = vmatpush1.msra.mxu0 %v941
    %1882 = vmatprep.subr.mxu0 %v940
    %1883 = vmatpush1.msra.mxu0 %v939
    %1884 = vmatprep.subr.mxu0 %v938
    %1885 = vmatpush1.msra.mxu0 %v937
    %1886 = vmatprep.subr.mxu0 %v936
    %1887 = vmatpush1.msra.mxu0 %v935
    %1888 = vmatprep.subr.mxu0 0.0
    %1889 = vmatpush2.msra.mxu0 0.0
    %1890 = vmatprep.subr.mxu0 0.0
    %1891 = vmatpush2.msra.mxu0 0.0
    %1892 = vmatprep.subr.mxu0 0.0
    %1893 = vmatpush2.msra.mxu0 0.0
    %1894 = vmatprep.subr.mxu0 0.0
    %1895 = vmatpush2.msra.mxu0 0.0
    %1896 = vmatprep.subr.mxu0 0.0
    %1897 = vmatpush2.msra.mxu0 0.0
    %1898 = vmatprep.subr.mxu0 0.0
    %1899 = vmatpush2.msra.mxu0 0.0
    %1900 = vmatprep.subr.mxu0 0.0
    %1901 = vmatpush2.msra.mxu0 0.0
    %1902 = vmatprep.subr.mxu0 0.0
    %1903 = vmatpush2.msra.mxu0 0.0
    %1904 = vmatprep.subr.mxu0 0.0
    %1905 = vmatpush2.msra.mxu0 0.0
    %1906 = vmatprep.subr.mxu0 0.0
    %1907 = vmatpush2.msra.mxu0 0.0
    %1908 = vmatprep.subr.mxu0 0.0
    %1909 = vmatpush2.msra.mxu0 0.0
    %1910 = vmatprep.subr.mxu0 0.0
    %1911 = vmatpush2.msra.mxu0 0.0
    %1912 = vmatprep.subr.mxu0 0.0
    %1913 = vmatpush2.msra.mxu0 0.0
    %1914 = vmatprep.subr.mxu0 0.0
    %1915 = vmatpush2.msra.mxu0 0.0
    %1916 = vmatprep.subr.mxu0 0.0
    %1917 = vmatpush2.msra.mxu0 0.0
    %1918 = vmatprep.subr.mxu0 0.0
    %1919 = vmatpush2.msra.mxu0 0.0
    %1920 = vmatprep.mubr.f32.mxu0 0.0
    %1921 = vmatmul.mubr.f32.gmra.mxu0 %v1821
    %v1922 = vpop.f32.mrf.mxu0
    %v1923 = vadd.f32 0.0, %v1922
    %v1924 = vpop.f32.mrf.mxu0
    %v1925 = vadd.f32 0.0, %v1924
    %1926 = vmatprep.mubr.f32.mxu0 0.0
    %1927 = vmatmul.mubr.f32.gmra.mxu0 %v1824
    %v1928 = vpop.f32.mrf.mxu0
    %v1929 = vadd.f32 0.0, %v1928
    %v1930 = vpop.f32.mrf.mxu0
    %v1931 = vadd.f32 0.0, %v1930
    %1932 = vmatprep.mubr.f32.mxu0 0.0
    %1933 = vmatmul.mubr.f32.gmra.mxu0 %v1827
    %v1934 = vpop.f32.mrf.mxu0
    %v1935 = vadd.f32 0.0, %v1934
    %v1936 = vpop.f32.mrf.mxu0
    %v1937 = vadd.f32 0.0, %v1936
    %1938 = vmatprep.mubr.f32.mxu0 0.0
    %1939 = vmatmul.mubr.f32.gmra.mxu0 %v1830
    %v1940 = vpop.f32.mrf.mxu0
    %v1941 = vadd.f32 0.0, %v1940
    %v1942 = vpop.f32.mrf.mxu0
    %v1943 = vadd.f32 0.0, %v1942
    %1944 = vmatprep.mubr.f32.mxu0 0.0
    %1945 = vmatmul.mubr.f32.gmra.mxu0 %v1833
    %v1946 = vpop.f32.mrf.mxu0
    %v1947 = vadd.f32 0.0, %v1946
    %v1948 = vpop.f32.mrf.mxu0
    %v1949 = vadd.f32 0.0, %v1948
    %1950 = vmatprep.mubr.f32.mxu0 0.0
    %1951 = vmatmul.mubr.f32.gmra.mxu0 %v1836
    %v1952 = vpop.f32.mrf.mxu0
    %v1953 = vadd.f32 0.0, %v1952
    %v1954 = vpop.f32.mrf.mxu0
    %v1955 = vadd.f32 0.0, %v1954
    %1956 = vmatprep.mubr.f32.mxu0 0.0
    %1957 = vmatmul.mubr.f32.gmra.mxu0 %v1839
    %v1958 = vpop.f32.mrf.mxu0
    %v1959 = vadd.f32 0.0, %v1958
    %v1960 = vpop.f32.mrf.mxu0
    %v1961 = vadd.f32 0.0, %v1960
    %1962 = vmatprep.mubr.f32.mxu0 0.0
    %1963 = vmatmul.mubr.f32.gmra.mxu0 %v1842
    %v1964 = vpop.f32.mrf.mxu0
    %v1965 = vadd.f32 0.0, %v1964
    %v1966 = vpop.f32.mrf.mxu0
    %v1967 = vadd.f32 0.0, %v1966
    %1968 = vmatprep.mubr.f32.mxu0 0.0
    %1969 = vmatmul.mubr.f32.gmra.mxu0 %v1845
    %v1970 = vpop.f32.mrf.mxu0
    %v1971 = vadd.f32 0.0, %v1970
    %v1972 = vpop.f32.mrf.mxu0
    %v1973 = vadd.f32 0.0, %v1972
    %1974 = vmatprep.mubr.f32.mxu0 0.0
    %1975 = vmatmul.mubr.f32.gmra.mxu0 %v1848
    %v1976 = vpop.f32.mrf.mxu0
    %v1977 = vadd.f32 0.0, %v1976
    %v1978 = vpop.f32.mrf.mxu0
    %v1979 = vadd.f32 0.0, %v1978
    %1980 = vmatprep.mubr.f32.mxu0 0.0
    %1981 = vmatmul.mubr.f32.gmra.mxu0 %v1851
    %v1982 = vpop.f32.mrf.mxu0
    %v1983 = vadd.f32 0.0, %v1982
    %v1984 = vpop.f32.mrf.mxu0
    %v1985 = vadd.f32 0.0, %v1984
    %1986 = vmatprep.mubr.f32.mxu0 0.0
    %1987 = vmatmul.mubr.f32.gmra.mxu0 %v1854
    %v1988 = vpop.f32.mrf.mxu0
    %v1989 = vadd.f32 0.0, %v1988
    %v1990 = vpop.f32.mrf.mxu0
    %v1991 = vadd.f32 0.0, %v1990
    %1992 = vdwg.mxu0
    %v1993 = vadd.f32 %v1783, %v1923
    %v1994 = vadd.f32 %v1784, %v1925
    %v1995 = vadd.f32 %v1785, %v1929
    %v1996 = vadd.f32 %v1786, %v1931
    %v1997 = vadd.f32 %v1787, %v1935
    %v1998 = vadd.f32 %v1788, %v1937
    %v1999 = vadd.f32 %v1789, %v1941
    %v2000 = vadd.f32 %v1790, %v1943
    %v2001 = vadd.f32 %v1791, %v1947
    %v2002 = vadd.f32 %v1792, %v1949
    %v2003 = vadd.f32 %v1793, %v1953
    %v2004 = vadd.f32 %v1794, %v1955
    %v2005 = vadd.f32 %v1795, %v1959
    %v2006 = vadd.f32 %v1796, %v1961
    %v2007 = vadd.f32 %v1797, %v1965
    %v2008 = vadd.f32 %v1798, %v1967
    %v2009 = vadd.f32 %v1799, %v1971
    %v2010 = vadd.f32 %v1800, %v1973
    %v2011 = vadd.f32 %v1801, %v1977
    %v2012 = vadd.f32 %v1802, %v1979
    %v2013 = vadd.f32 %v1803, %v1983
    %v2014 = vadd.f32 %v1804, %v1985
    %v2015 = vadd.f32 %v1805, %v1989
    %v2016 = vadd.f32 %v1806, %v1991
    %v2017 = vadd.f32 %v1993, %v1144
    %v2018 = vadd.f32 %v1994, %v1148
    %v2019 = vadd.f32 %v1995, %v1144
    %v2020 = vadd.f32 %v1996, %v1148
    %v2021 = vadd.f32 %v1997, %v1144
    %v2022 = vadd.f32 %v1998, %v1148
    %v2023 = vadd.f32 %v1999, %v1144
    %v2024 = vadd.f32 %v2000, %v1148
    %v2025 = vadd.f32 %v2001, %v1144
    %v2026 = vadd.f32 %v2002, %v1148
    %v2027 = vadd.f32 %v2003, %v1144
    %v2028 = vadd.f32 %v2004, %v1148
    %v2029 = vadd.f32 %v2005, %v1144
    %v2030 = vadd.f32 %v2006, %v1148
    %v2031 = vadd.f32 %v2007, %v1144
    %v2032 = vadd.f32 %v2008, %v1148
    %v2033 = vadd.f32 %v2009, %v1144
    %v2034 = vadd.f32 %v2010, %v1148
    %v2035 = vadd.f32 %v2011, %v1144
    %v2036 = vadd.f32 %v2012, %v1148
    %v2037 = vadd.f32 %v2013, %v1144
    %v2038 = vadd.f32 %v2014, %v1148
    %v2039 = vadd.f32 %v2015, %v1144
    %v2040 = vadd.f32 %v2016, %v1148
    %v2041 = vmax.f32 %v2017, 0.0
    %v2042 = vmax.f32 %v2018, 0.0
    %v2043 = vmax.f32 %v2019, 0.0
    %v2044 = vmax.f32 %v2020, 0.0
    %v2045 = vmax.f32 %v2021, 0.0
    %v2046 = vmax.f32 %v2022, 0.0
    %v2047 = vmax.f32 %v2023, 0.0
    %v2048 = vmax.f32 %v2024, 0.0
    %v2049 = vmax.f32 %v2025, 0.0
    %v2050 = vmax.f32 %v2026, 0.0
    %v2051 = vmax.f32 %v2027, 0.0
    %v2052 = vmax.f32 %v2028, 0.0
    %v2053 = vmax.f32 %v2029, 0.0
    %v2054 = vmax.f32 %v2030, 0.0
    %v2055 = vmax.f32 %v2031, 0.0
    %v2056 = vmax.f32 %v2032, 0.0
    %v2057 = vmax.f32 %v2033, 0.0
    %v2058 = vmax.f32 %v2034, 0.0
    %v2059 = vmax.f32 %v2035, 0.0
    %v2060 = vmax.f32 %v2036, 0.0
    %v2061 = vmax.f32 %v2037, 0.0
    %v2062 = vmax.f32 %v2038, 0.0
    %v2063 = vmax.f32 %v2039, 0.0
    %v2064 = vmax.f32 %v2040, 0.0
    %v2065 = vmax.f32 %v2041, %v2042
    %v2066 = vmax.f32 %v2043, %v2044
    %v2067 = vmax.f32 %v2045, %v2046
    %v2068 = vmax.f32 %v2047, %v2048
    %v2069 = vmax.f32 %v2049, %v2050
    %v2070 = vmax.f32 %v2051, %v2052
    %v2071 = vmax.f32 %v2053, %v2054
    %v2072 = vmax.f32 %v2055, %v2056
    %v2073 = vmax.f32 %v2057, %v2058
    %v2074 = vmax.f32 %v2059, %v2060
    %v2075 = vmax.f32 %v2061, %v2062
    %v2076 = vmax.f32 %v2063, %v2064
    %v2077 = vmax.f32 %v1199, %v2065
    %v2078 = vmax.f32 %v1200, %v2066
    %v2079 = vmax.f32 %v1201, %v2067
    %v2080 = vmax.f32 %v1202, %v2068
    %v2081 = vmax.f32 %v1203, %v2069
    %v2082 = vmax.f32 %v1204, %v2070
    %v2083 = vmax.f32 %v1205, %v2071
    %v2084 = vmax.f32 %v1206, %v2072
    %v2085 = vmax.f32 %v1207, %v2073
    %v2086 = vmax.f32 %v1208, %v2074
    %v2087 = vmax.f32 %v1209, %v2075
    %v2088 = vmax.f32 %v1210, %v2076
    %v2089 = vld [vmem:[#allocation2] sm:$0xff]
    %v2090 = vld [vmem:[#allocation2 + $0x8] sm:$0xff]
    %v2091 = vld [vmem:[#allocation2 + $0x10] sm:$0xff]
    %v2092 = vld [vmem:[#allocation2 + $0x18] sm:$0xff]
    %v2093 = vld [vmem:[#allocation2 + $0x20] sm:$0xff]
    %v2094 = vld [vmem:[#allocation2 + $0x28] sm:$0xff]
    %v2095 = vld [vmem:[#allocation2 + $0x30] sm:$0xff]
    %v2096 = vld [vmem:[#allocation2 + $0x38] sm:$0xff]
    %v2097 = vld [vmem:[#allocation2 + $0x40] sm:$0xff]
    %v2098 = vld [vmem:[#allocation2 + $0x48] sm:$0xff]
    %v2099 = vld [vmem:[#allocation2 + $0x50] sm:$0xff]
    %v2100 = vld [vmem:[#allocation2 + $0x58] sm:$0xff]
    %v2101 = vld [vmem:[#allocation2 + $0x60] sm:$0xff]
    %v2102 = vld [vmem:[#allocation2 + $0x68] sm:$0xff]
    %v2103 = vld [vmem:[#allocation2 + $0x70] sm:$0xff]
    %v2104 = vld [vmem:[#allocation2 + $0x78] sm:$0xff]
    %v2105 = vld [vmem:[#allocation2 + $0x80] sm:$0xff]
    %v2106 = vld [vmem:[#allocation2 + $0x88] sm:$0xff]
    %v2107 = vld [vmem:[#allocation2 + $0x90] sm:$0xff]
    %v2108 = vld [vmem:[#allocation2 + $0x98] sm:$0xff]
    %v2109 = vld [vmem:[#allocation2 + $0xa0] sm:$0xff]
    %v2110 = vld [vmem:[#allocation2 + $0xa8] sm:$0xff]
    %v2111 = vld [vmem:[#allocation2 + $0xb0] sm:$0xff]
    %v2112 = vld [vmem:[#allocation2 + $0xb8] sm:$0xff]
    %v2113 = vld [vmem:[#allocation2 + $0xc0] sm:$0xff]
    %v2114 = vld [vmem:[#allocation2 + $0xc8] sm:$0xff]
    %v2115 = vld [vmem:[#allocation2 + $0xd0] sm:$0xff]
    %v2116 = vld [vmem:[#allocation2 + $0xd8] sm:$0xff]
    %v2117 = vld [vmem:[#allocation2 + $0xe0] sm:$0xff]
    %v2118 = vld [vmem:[#allocation2 + $0xe8] sm:$0xff]
    %v2119 = vld [vmem:[#allocation2 + $0xf0] sm:$0xff]
    %v2120 = vld [vmem:[#allocation2 + $0xf8] sm:$0xff]
    %s2121 = scalar_lea.vmem [#allocation2], 256
    %v2122 = vld [vmem:[%s2121] sm:$0xff]
    %v2123 = vld [vmem:[%s2121 + $0x8] sm:$0xff]
    %v2124 = vld [vmem:[%s2121 + $0x10] sm:$0xff]
    %v2125 = vld [vmem:[%s2121 + $0x18] sm:$0xff]
    %v2126 = vld [vmem:[%s2121 + $0x20] sm:$0xff]
    %v2127 = vld [vmem:[%s2121 + $0x28] sm:$0xff]
    %v2128 = vld [vmem:[%s2121 + $0x30] sm:$0xff]
    %v2129 = vld [vmem:[%s2121 + $0x38] sm:$0xff]
    %v2130 = vld [vmem:[%s2121 + $0x40] sm:$0xff]
    %v2131 = vld [vmem:[%s2121 + $0x48] sm:$0xff]
    %v2132 = vld [vmem:[%s2121 + $0x50] sm:$0xff]
    %v2133 = vld [vmem:[%s2121 + $0x58] sm:$0xff]
    %v2134 = vld [vmem:[%s2121 + $0x60] sm:$0xff]
    %v2135 = vld [vmem:[%s2121 + $0x68] sm:$0xff]
    %v2136 = vld [vmem:[%s2121 + $0x70] sm:$0xff]
    %v2137 = vld [vmem:[%s2121 + $0x78] sm:$0xff]
    %v2138 = vld [vmem:[%s2121 + $0x80] sm:$0xff]
    %v2139 = vld [vmem:[%s2121 + $0x88] sm:$0xff]
    %v2140 = vld [vmem:[%s2121 + $0x90] sm:$0xff]
    %v2141 = vld [vmem:[%s2121 + $0x98] sm:$0xff]
    %v2142 = vld [vmem:[%s2121 + $0xa0] sm:$0xff]
    %v2143 = vld [vmem:[%s2121 + $0xa8] sm:$0xff]
    %v2144 = vld [vmem:[%s2121 + $0xb0] sm:$0xff]
    %v2145 = vld [vmem:[%s2121 + $0xb8] sm:$0xff]
    %v2146 = vld [vmem:[%s2121 + $0xc0] sm:$0xff]
    %v2147 = vld [vmem:[%s2121 + $0xc8] sm:$0xff]
    %v2148 = vld [vmem:[%s2121 + $0xd0] sm:$0xff]
    %v2149 = vld [vmem:[%s2121 + $0xd8] sm:$0xff]
    %v2150 = vld [vmem:[%s2121 + $0xe0] sm:$0xff]
    %v2151 = vld [vmem:[%s2121 + $0xe8] sm:$0xff]
    %v2152 = vld [vmem:[%s2121 + $0xf0] sm:$0xff]
    %v2153 = vld [vmem:[%s2121 + $0xf8] sm:$0xff]
    %2154 = vmatprep.subr.mxu0 %v2153
    %2155 = vmatpush1.msra.mxu0 %v2152
    %2156 = vmatprep.subr.mxu0 %v2151
    %2157 = vmatpush1.msra.mxu0 %v2150
    %2158 = vmatprep.subr.mxu0 %v2149
    %2159 = vmatpush1.msra.mxu0 %v2148
    %2160 = vmatprep.subr.mxu0 %v2147
    %2161 = vmatpush1.msra.mxu0 %v2146
    %2162 = vmatprep.subr.mxu0 %v2145
    %2163 = vmatpush1.msra.mxu0 %v2144
    %2164 = vmatprep.subr.mxu0 %v2143
    %2165 = vmatpush1.msra.mxu0 %v2142
    %2166 = vmatprep.subr.mxu0 %v2141
    %2167 = vmatpush1.msra.mxu0 %v2140
    %2168 = vmatprep.subr.mxu0 %v2139
    %2169 = vmatpush1.msra.mxu0 %v2138
    %2170 = vmatprep.subr.mxu0 %v2137
    %2171 = vmatpush1.msra.mxu0 %v2136
    %2172 = vmatprep.subr.mxu0 %v2135
    %2173 = vmatpush1.msra.mxu0 %v2134
    %2174 = vmatprep.subr.mxu0 %v2133
    %2175 = vmatpush1.msra.mxu0 %v2132
    %2176 = vmatprep.subr.mxu0 %v2131
    %2177 = vmatpush1.msra.mxu0 %v2130
    %2178 = vmatprep.subr.mxu0 %v2129
    %2179 = vmatpush1.msra.mxu0 %v2128
    %2180 = vmatprep.subr.mxu0 %v2127
    %2181 = vmatpush1.msra.mxu0 %v2126
    %2182 = vmatprep.subr.mxu0 %v2125
    %2183 = vmatpush1.msra.mxu0 %v2124
    %2184 = vmatprep.subr.mxu0 %v2123
    %2185 = vmatpush1.msra.mxu0 %v2122
    %2186 = vmatprep.subr.mxu0 0.0
    %2187 = vmatpush2.msra.mxu0 0.0
    %2188 = vmatprep.subr.mxu0 0.0
    %2189 = vmatpush2.msra.mxu0 0.0
    %2190 = vmatprep.subr.mxu0 0.0
    %2191 = vmatpush2.msra.mxu0 0.0
    %2192 = vmatprep.subr.mxu0 0.0
    %2193 = vmatpush2.msra.mxu0 0.0
    %2194 = vmatprep.subr.mxu0 0.0
    %2195 = vmatpush2.msra.mxu0 0.0
    %2196 = vmatprep.subr.mxu0 0.0
    %2197 = vmatpush2.msra.mxu0 0.0
    %2198 = vmatprep.subr.mxu0 0.0
    %2199 = vmatpush2.msra.mxu0 0.0
    %2200 = vmatprep.subr.mxu0 0.0
    %2201 = vmatpush2.msra.mxu0 0.0
    %2202 = vmatprep.subr.mxu0 0.0
    %2203 = vmatpush2.msra.mxu0 0.0
    %2204 = vmatprep.subr.mxu0 0.0
    %2205 = vmatpush2.msra.mxu0 0.0
    %2206 = vmatprep.subr.mxu0 0.0
    %2207 = vmatpush2.msra.mxu0 0.0
    %2208 = vmatprep.subr.mxu0 0.0
    %2209 = vmatpush2.msra.mxu0 0.0
    %2210 = vmatprep.subr.mxu0 0.0
    %2211 = vmatpush2.msra.mxu0 0.0
    %2212 = vmatprep.subr.mxu0 0.0
    %2213 = vmatpush2.msra.mxu0 0.0
    %2214 = vmatprep.subr.mxu0 0.0
    %2215 = vmatpush2.msra.mxu0 0.0
    %2216 = vmatprep.subr.mxu0 0.0
    %2217 = vmatpush2.msra.mxu0 0.0
    %2218 = vmatprep.mubr.f32.mxu0 0.0
    %2219 = vmatmul.mubr.f32.gmra.mxu0 %v2078
    %v2220 = vpop.f32.mrf.mxu0
    %v2221 = vadd.f32 0.0, %v2220
    %v2222 = vpop.f32.mrf.mxu0
    %v2223 = vadd.f32 0.0, %v2222
    %2224 = vmatprep.mubr.f32.mxu0 0.0
    %2225 = vmatmul.mubr.f32.gmra.mxu0 %v2079
    %v2226 = vpop.f32.mrf.mxu0
    %v2227 = vadd.f32 0.0, %v2226
    %v2228 = vpop.f32.mrf.mxu0
    %v2229 = vadd.f32 0.0, %v2228
    %2230 = vmatprep.mubr.f32.mxu0 0.0
    %2231 = vmatmul.mubr.f32.gmra.mxu0 %v2080
    %v2232 = vpop.f32.mrf.mxu0
    %v2233 = vadd.f32 0.0, %v2232
    %v2234 = vpop.f32.mrf.mxu0
    %v2235 = vadd.f32 0.0, %v2234
    %2236 = vmatprep.mubr.f32.mxu0 0.0
    %2237 = vmatmul.mubr.f32.gmra.mxu0 %v2081
    %v2238 = vpop.f32.mrf.mxu0
    %v2239 = vadd.f32 0.0, %v2238
    %v2240 = vpop.f32.mrf.mxu0
    %v2241 = vadd.f32 0.0, %v2240
    %2242 = vmatprep.mubr.f32.mxu0 0.0
    %2243 = vmatmul.mubr.f32.gmra.mxu0 %v2082
    %v2244 = vpop.f32.mrf.mxu0
    %v2245 = vadd.f32 0.0, %v2244
    %v2246 = vpop.f32.mrf.mxu0
    %v2247 = vadd.f32 0.0, %v2246
    %2248 = vmatprep.mubr.f32.mxu0 0.0
    %2249 = vmatmul.mubr.f32.gmra.mxu0 %v2083
    %v2250 = vpop.f32.mrf.mxu0
    %v2251 = vadd.f32 0.0, %v2250
    %v2252 = vpop.f32.mrf.mxu0
    %v2253 = vadd.f32 0.0, %v2252
    %2254 = vmatprep.mubr.f32.mxu0 0.0
    %2255 = vmatmul.mubr.f32.gmra.mxu0 %v2084
    %v2256 = vpop.f32.mrf.mxu0
    %v2257 = vadd.f32 0.0, %v2256
    %v2258 = vpop.f32.mrf.mxu0
    %v2259 = vadd.f32 0.0, %v2258
    %2260 = vmatprep.mubr.f32.mxu0 0.0
    %2261 = vmatmul.mubr.f32.gmra.mxu0 %v2085
    %v2262 = vpop.f32.mrf.mxu0
    %v2263 = vadd.f32 0.0, %v2262
    %v2264 = vpop.f32.mrf.mxu0
    %v2265 = vadd.f32 0.0, %v2264
    %2266 = vdwg.mxu0
    %2267 = vmatprep.subr.mxu0 %v2120
    %2268 = vmatpush1.msra.mxu0 %v2119
    %2269 = vmatprep.subr.mxu0 %v2118
    %2270 = vmatpush1.msra.mxu0 %v2117
    %2271 = vmatprep.subr.mxu0 %v2116
    %2272 = vmatpush1.msra.mxu0 %v2115
    %2273 = vmatprep.subr.mxu0 %v2114
    %2274 = vmatpush1.msra.mxu0 %v2113
    %2275 = vmatprep.subr.mxu0 %v2112
    %2276 = vmatpush1.msra.mxu0 %v2111
    %2277 = vmatprep.subr.mxu0 %v2110
    %2278 = vmatpush1.msra.mxu0 %v2109
    %2279 = vmatprep.subr.mxu0 %v2108
    %2280 = vmatpush1.msra.mxu0 %v2107
    %2281 = vmatprep.subr.mxu0 %v2106
    %2282 = vmatpush1.msra.mxu0 %v2105
    %2283 = vmatprep.subr.mxu0 %v2104
    %2284 = vmatpush1.msra.mxu0 %v2103
    %2285 = vmatprep.subr.mxu0 %v2102
    %2286 = vmatpush1.msra.mxu0 %v2101
    %2287 = vmatprep.subr.mxu0 %v2100
    %2288 = vmatpush1.msra.mxu0 %v2099
    %2289 = vmatprep.subr.mxu0 %v2098
    %2290 = vmatpush1.msra.mxu0 %v2097
    %2291 = vmatprep.subr.mxu0 %v2096
    %2292 = vmatpush1.msra.mxu0 %v2095
    %2293 = vmatprep.subr.mxu0 %v2094
    %2294 = vmatpush1.msra.mxu0 %v2093
    %2295 = vmatprep.subr.mxu0 %v2092
    %2296 = vmatpush1.msra.mxu0 %v2091
    %2297 = vmatprep.subr.mxu0 %v2090
    %2298 = vmatpush1.msra.mxu0 %v2089
    %2299 = vmatprep.subr.mxu0 0.0
    %2300 = vmatpush2.msra.mxu0 0.0
    %2301 = vmatprep.subr.mxu0 0.0
    %2302 = vmatpush2.msra.mxu0 0.0
    %2303 = vmatprep.subr.mxu0 0.0
    %2304 = vmatpush2.msra.mxu0 0.0
    %2305 = vmatprep.subr.mxu0 0.0
    %2306 = vmatpush2.msra.mxu0 0.0
    %2307 = vmatprep.subr.mxu0 0.0
    %2308 = vmatpush2.msra.mxu0 0.0
    %2309 = vmatprep.subr.mxu0 0.0
    %2310 = vmatpush2.msra.mxu0 0.0
    %2311 = vmatprep.subr.mxu0 0.0
    %2312 = vmatpush2.msra.mxu0 0.0
    %2313 = vmatprep.subr.mxu0 0.0
    %2314 = vmatpush2.msra.mxu0 0.0
    %2315 = vmatprep.subr.mxu0 0.0
    %2316 = vmatpush2.msra.mxu0 0.0
    %2317 = vmatprep.subr.mxu0 0.0
    %2318 = vmatpush2.msra.mxu0 0.0
    %2319 = vmatprep.subr.mxu0 0.0
    %2320 = vmatpush2.msra.mxu0 0.0
    %2321 = vmatprep.subr.mxu0 0.0
    %2322 = vmatpush2.msra.mxu0 0.0
    %2323 = vmatprep.subr.mxu0 0.0
    %2324 = vmatpush2.msra.mxu0 0.0
    %2325 = vmatprep.subr.mxu0 0.0
    %2326 = vmatpush2.msra.mxu0 0.0
    %2327 = vmatprep.subr.mxu0 0.0
    %2328 = vmatpush2.msra.mxu0 0.0
    %2329 = vmatprep.subr.mxu0 0.0
    %2330 = vmatpush2.msra.mxu0 0.0
    %2331 = vmatprep.mubr.f32.mxu0 0.0
    %2332 = vmatmul.mubr.f32.gmra.mxu0 %v2077
    %v2333 = vpop.f32.mrf.mxu0
    %v2334 = vadd.f32 %v2221, %v2333
    %v2335 = vpop.f32.mrf.mxu0
    %v2336 = vadd.f32 %v2223, %v2335
    %2337 = vmatprep.mubr.f32.mxu0 0.0
    %2338 = vmatmul.mubr.f32.gmra.mxu0 %v2078
    %v2339 = vpop.f32.mrf.mxu0
    %v2340 = vadd.f32 %v2227, %v2339
    %v2341 = vpop.f32.mrf.mxu0
    %v2342 = vadd.f32 %v2229, %v2341
    %2343 = vmatprep.mubr.f32.mxu0 0.0
    %2344 = vmatmul.mubr.f32.gmra.mxu0 %v2079
    %v2345 = vpop.f32.mrf.mxu0
    %v2346 = vadd.f32 %v2233, %v2345
    %v2347 = vpop.f32.mrf.mxu0
    %v2348 = vadd.f32 %v2235, %v2347
    %2349 = vmatprep.mubr.f32.mxu0 0.0
    %2350 = vmatmul.mubr.f32.gmra.mxu0 %v2080
    %v2351 = vpop.f32.mrf.mxu0
    %v2352 = vadd.f32 %v2239, %v2351
    %v2353 = vpop.f32.mrf.mxu0
    %v2354 = vadd.f32 %v2241, %v2353
    %2355 = vmatprep.mubr.f32.mxu0 0.0
    %2356 = vmatmul.mubr.f32.gmra.mxu0 %v2081
    %v2357 = vpop.f32.mrf.mxu0
    %v2358 = vadd.f32 %v2245, %v2357
    %v2359 = vpop.f32.mrf.mxu0
    %v2360 = vadd.f32 %v2247, %v2359
    %2361 = vmatprep.mubr.f32.mxu0 0.0
    %2362 = vmatmul.mubr.f32.gmra.mxu0 %v2082
    %v2363 = vpop.f32.mrf.mxu0
    %v2364 = vadd.f32 %v2251, %v2363
    %v2365 = vpop.f32.mrf.mxu0
    %v2366 = vadd.f32 %v2253, %v2365
    %2367 = vmatprep.mubr.f32.mxu0 0.0
    %2368 = vmatmul.mubr.f32.gmra.mxu0 %v2083
    %v2369 = vpop.f32.mrf.mxu0
    %v2370 = vadd.f32 %v2257, %v2369
    %v2371 = vpop.f32.mrf.mxu0
    %v2372 = vadd.f32 %v2259, %v2371
    %2373 = vmatprep.mubr.f32.mxu0 0.0
    %2374 = vmatmul.mubr.f32.gmra.mxu0 %v2084
    %v2375 = vpop.f32.mrf.mxu0
    %v2376 = vadd.f32 %v2263, %v2375
    %v2377 = vpop.f32.mrf.mxu0
    %v2378 = vadd.f32 %v2265, %v2377
    %2379 = vdwg.mxu0
    %s2380 = scalar_lea.vmem [#allocation2], 512
    %v2381 = vld [vmem:[%s2380] sm:$0xff]
    %v2382 = vld [vmem:[%s2380 + $0x8] sm:$0xff]
    %v2383 = vld [vmem:[%s2380 + $0x10] sm:$0xff]
    %v2384 = vld [vmem:[%s2380 + $0x18] sm:$0xff]
    %v2385 = vld [vmem:[%s2380 + $0x20] sm:$0xff]
    %v2386 = vld [vmem:[%s2380 + $0x28] sm:$0xff]
    %v2387 = vld [vmem:[%s2380 + $0x30] sm:$0xff]
    %v2388 = vld [vmem:[%s2380 + $0x38] sm:$0xff]
    %v2389 = vld [vmem:[%s2380 + $0x40] sm:$0xff]
    %v2390 = vld [vmem:[%s2380 + $0x48] sm:$0xff]
    %v2391 = vld [vmem:[%s2380 + $0x50] sm:$0xff]
    %v2392 = vld [vmem:[%s2380 + $0x58] sm:$0xff]
    %v2393 = vld [vmem:[%s2380 + $0x60] sm:$0xff]
    %v2394 = vld [vmem:[%s2380 + $0x68] sm:$0xff]
    %v2395 = vld [vmem:[%s2380 + $0x70] sm:$0xff]
    %v2396 = vld [vmem:[%s2380 + $0x78] sm:$0xff]
    %v2397 = vld [vmem:[%s2380 + $0x80] sm:$0xff]
    %v2398 = vld [vmem:[%s2380 + $0x88] sm:$0xff]
    %v2399 = vld [vmem:[%s2380 + $0x90] sm:$0xff]
    %v2400 = vld [vmem:[%s2380 + $0x98] sm:$0xff]
    %v2401 = vld [vmem:[%s2380 + $0xa0] sm:$0xff]
    %v2402 = vld [vmem:[%s2380 + $0xa8] sm:$0xff]
    %v2403 = vld [vmem:[%s2380 + $0xb0] sm:$0xff]
    %v2404 = vld [vmem:[%s2380 + $0xb8] sm:$0xff]
    %v2405 = vld [vmem:[%s2380 + $0xc0] sm:$0xff]
    %v2406 = vld [vmem:[%s2380 + $0xc8] sm:$0xff]
    %v2407 = vld [vmem:[%s2380 + $0xd0] sm:$0xff]
    %v2408 = vld [vmem:[%s2380 + $0xd8] sm:$0xff]
    %v2409 = vld [vmem:[%s2380 + $0xe0] sm:$0xff]
    %v2410 = vld [vmem:[%s2380 + $0xe8] sm:$0xff]
    %v2411 = vld [vmem:[%s2380 + $0xf0] sm:$0xff]
    %v2412 = vld [vmem:[%s2380 + $0xf8] sm:$0xff]
    %2413 = vmatprep.subr.mxu0 %v2412
    %2414 = vmatpush1.msra.mxu0 %v2411
    %2415 = vmatprep.subr.mxu0 %v2410
    %2416 = vmatpush1.msra.mxu0 %v2409
    %2417 = vmatprep.subr.mxu0 %v2408
    %2418 = vmatpush1.msra.mxu0 %v2407
    %2419 = vmatprep.subr.mxu0 %v2406
    %2420 = vmatpush1.msra.mxu0 %v2405
    %2421 = vmatprep.subr.mxu0 %v2404
    %2422 = vmatpush1.msra.mxu0 %v2403
    %2423 = vmatprep.subr.mxu0 %v2402
    %2424 = vmatpush1.msra.mxu0 %v2401
    %2425 = vmatprep.subr.mxu0 %v2400
    %2426 = vmatpush1.msra.mxu0 %v2399
    %2427 = vmatprep.subr.mxu0 %v2398
    %2428 = vmatpush1.msra.mxu0 %v2397
    %2429 = vmatprep.subr.mxu0 %v2396
    %2430 = vmatpush1.msra.mxu0 %v2395
    %2431 = vmatprep.subr.mxu0 %v2394
    %2432 = vmatpush1.msra.mxu0 %v2393
    %2433 = vmatprep.subr.mxu0 %v2392
    %2434 = vmatpush1.msra.mxu0 %v2391
    %2435 = vmatprep.subr.mxu0 %v2390
    %2436 = vmatpush1.msra.mxu0 %v2389
    %2437 = vmatprep.subr.mxu0 %v2388
    %2438 = vmatpush1.msra.mxu0 %v2387
    %2439 = vmatprep.subr.mxu0 %v2386
    %2440 = vmatpush1.msra.mxu0 %v2385
    %2441 = vmatprep.subr.mxu0 %v2384
    %2442 = vmatpush1.msra.mxu0 %v2383
    %2443 = vmatprep.subr.mxu0 %v2382
    %2444 = vmatpush1.msra.mxu0 %v2381
    %2445 = vmatprep.subr.mxu0 0.0
    %2446 = vmatpush2.msra.mxu0 0.0
    %2447 = vmatprep.subr.mxu0 0.0
    %2448 = vmatpush2.msra.mxu0 0.0
    %2449 = vmatprep.subr.mxu0 0.0
    %2450 = vmatpush2.msra.mxu0 0.0
    %2451 = vmatprep.subr.mxu0 0.0
    %2452 = vmatpush2.msra.mxu0 0.0
    %2453 = vmatprep.subr.mxu0 0.0
    %2454 = vmatpush2.msra.mxu0 0.0
    %2455 = vmatprep.subr.mxu0 0.0
    %2456 = vmatpush2.msra.mxu0 0.0
    %2457 = vmatprep.subr.mxu0 0.0
    %2458 = vmatpush2.msra.mxu0 0.0
    %2459 = vmatprep.subr.mxu0 0.0
    %2460 = vmatpush2.msra.mxu0 0.0
    %2461 = vmatprep.subr.mxu0 0.0
    %2462 = vmatpush2.msra.mxu0 0.0
    %2463 = vmatprep.subr.mxu0 0.0
    %2464 = vmatpush2.msra.mxu0 0.0
    %2465 = vmatprep.subr.mxu0 0.0
    %2466 = vmatpush2.msra.mxu0 0.0
    %2467 = vmatprep.subr.mxu0 0.0
    %2468 = vmatpush2.msra.mxu0 0.0
    %2469 = vmatprep.subr.mxu0 0.0
    %2470 = vmatpush2.msra.mxu0 0.0
    %2471 = vmatprep.subr.mxu0 0.0
    %2472 = vmatpush2.msra.mxu0 0.0
    %2473 = vmatprep.subr.mxu0 0.0
    %2474 = vmatpush2.msra.mxu0 0.0
    %2475 = vmatprep.subr.mxu0 0.0
    %2476 = vmatpush2.msra.mxu0 0.0
    %2477 = vmatprep.mubr.f32.mxu0 0.0
    %2478 = vmatmul.mubr.f32.gmra.mxu0 %v2079
    %v2479 = vpop.f32.mrf.mxu0
    %v2480 = vadd.f32 0.0, %v2479
    %v2481 = vpop.f32.mrf.mxu0
    %v2482 = vadd.f32 0.0, %v2481
    %2483 = vmatprep.mubr.f32.mxu0 0.0
    %2484 = vmatmul.mubr.f32.gmra.mxu0 %v2080
    %v2485 = vpop.f32.mrf.mxu0
    %v2486 = vadd.f32 0.0, %v2485
    %v2487 = vpop.f32.mrf.mxu0
    %v2488 = vadd.f32 0.0, %v2487
    %2489 = vmatprep.mubr.f32.mxu0 0.0
    %2490 = vmatmul.mubr.f32.gmra.mxu0 %v2081
    %v2491 = vpop.f32.mrf.mxu0
    %v2492 = vadd.f32 0.0, %v2491
    %v2493 = vpop.f32.mrf.mxu0
    %v2494 = vadd.f32 0.0, %v2493
    %2495 = vmatprep.mubr.f32.mxu0 0.0
    %2496 = vmatmul.mubr.f32.gmra.mxu0 %v2082
    %v2497 = vpop.f32.mrf.mxu0
    %v2498 = vadd.f32 0.0, %v2497
    %v2499 = vpop.f32.mrf.mxu0
    %v2500 = vadd.f32 0.0, %v2499
    %2501 = vmatprep.mubr.f32.mxu0 0.0
    %2502 = vmatmul.mubr.f32.gmra.mxu0 %v2083
    %v2503 = vpop.f32.mrf.mxu0
    %v2504 = vadd.f32 0.0, %v2503
    %v2505 = vpop.f32.mrf.mxu0
    %v2506 = vadd.f32 0.0, %v2505
    %2507 = vmatprep.mubr.f32.mxu0 0.0
    %2508 = vmatmul.mubr.f32.gmra.mxu0 %v2084
    %v2509 = vpop.f32.mrf.mxu0
    %v2510 = vadd.f32 0.0, %v2509
    %v2511 = vpop.f32.mrf.mxu0
    %v2512 = vadd.f32 0.0, %v2511
    %2513 = vmatprep.mubr.f32.mxu0 0.0
    %2514 = vmatmul.mubr.f32.gmra.mxu0 %v2085
    %v2515 = vpop.f32.mrf.mxu0
    %v2516 = vadd.f32 0.0, %v2515
    %v2517 = vpop.f32.mrf.mxu0
    %v2518 = vadd.f32 0.0, %v2517
    %2519 = vmatprep.mubr.f32.mxu0 0.0
    %2520 = vmatmul.mubr.f32.gmra.mxu0 %v2086
    %v2521 = vpop.f32.mrf.mxu0
    %v2522 = vadd.f32 0.0, %v2521
    %v2523 = vpop.f32.mrf.mxu0
    %v2524 = vadd.f32 0.0, %v2523
    %2525 = vdwg.mxu0
    %v2526 = vadd.f32 %v2334, %v2480
    %v2527 = vadd.f32 %v2336, %v2482
    %v2528 = vadd.f32 %v2340, %v2486
    %v2529 = vadd.f32 %v2342, %v2488
    %v2530 = vadd.f32 %v2346, %v2492
    %v2531 = vadd.f32 %v2348, %v2494
    %v2532 = vadd.f32 %v2352, %v2498
    %v2533 = vadd.f32 %v2354, %v2500
    %v2534 = vadd.f32 %v2358, %v2504
    %v2535 = vadd.f32 %v2360, %v2506
    %v2536 = vadd.f32 %v2364, %v2510
    %v2537 = vadd.f32 %v2366, %v2512
    %v2538 = vadd.f32 %v2370, %v2516
    %v2539 = vadd.f32 %v2372, %v2518
    %v2540 = vadd.f32 %v2376, %v2522
    %v2541 = vadd.f32 %v2378, %v2524
    %s2542 = scalar_lea.vmem [#allocation2], 768
    %v2543 = vld [vmem:[%s2542] sm:$0xff]
    %v2544 = vld [vmem:[%s2542 + $0x8] sm:$0xff]
    %v2545 = vld [vmem:[%s2542 + $0x10] sm:$0xff]
    %v2546 = vld [vmem:[%s2542 + $0x18] sm:$0xff]
    %v2547 = vld [vmem:[%s2542 + $0x20] sm:$0xff]
    %v2548 = vld [vmem:[%s2542 + $0x28] sm:$0xff]
    %v2549 = vld [vmem:[%s2542 + $0x30] sm:$0xff]
    %v2550 = vld [vmem:[%s2542 + $0x38] sm:$0xff]
    %v2551 = vld [vmem:[%s2542 + $0x40] sm:$0xff]
    %v2552 = vld [vmem:[%s2542 + $0x48] sm:$0xff]
    %v2553 = vld [vmem:[%s2542 + $0x50] sm:$0xff]
    %v2554 = vld [vmem:[%s2542 + $0x58] sm:$0xff]
    %v2555 = vld [vmem:[%s2542 + $0x60] sm:$0xff]
    %v2556 = vld [vmem:[%s2542 + $0x68] sm:$0xff]
    %v2557 = vld [vmem:[%s2542 + $0x70] sm:$0xff]
    %v2558 = vld [vmem:[%s2542 + $0x78] sm:$0xff]
    %v2559 = vld [vmem:[%s2542 + $0x80] sm:$0xff]
    %v2560 = vld [vmem:[%s2542 + $0x88] sm:$0xff]
    %v2561 = vld [vmem:[%s2542 + $0x90] sm:$0xff]
    %v2562 = vld [vmem:[%s2542 + $0x98] sm:$0xff]
    %v2563 = vld [vmem:[%s2542 + $0xa0] sm:$0xff]
    %v2564 = vld [vmem:[%s2542 + $0xa8] sm:$0xff]
    %v2565 = vld [vmem:[%s2542 + $0xb0] sm:$0xff]
    %v2566 = vld [vmem:[%s2542 + $0xb8] sm:$0xff]
    %v2567 = vld [vmem:[%s2542 + $0xc0] sm:$0xff]
    %v2568 = vld [vmem:[%s2542 + $0xc8] sm:$0xff]
    %v2569 = vld [vmem:[%s2542 + $0xd0] sm:$0xff]
    %v2570 = vld [vmem:[%s2542 + $0xd8] sm:$0xff]
    %v2571 = vld [vmem:[%s2542 + $0xe0] sm:$0xff]
    %v2572 = vld [vmem:[%s2542 + $0xe8] sm:$0xff]
    %v2573 = vld [vmem:[%s2542 + $0xf0] sm:$0xff]
    %v2574 = vld [vmem:[%s2542 + $0xf8] sm:$0xff]
    %2575 = vmatprep.subr.mxu0 %v2574
    %2576 = vmatpush1.msra.mxu0 %v2573
    %2577 = vmatprep.subr.mxu0 %v2572
    %2578 = vmatpush1.msra.mxu0 %v2571
    %2579 = vmatprep.subr.mxu0 %v2570
    %2580 = vmatpush1.msra.mxu0 %v2569
    %2581 = vmatprep.subr.mxu0 %v2568
    %2582 = vmatpush1.msra.mxu0 %v2567
    %2583 = vmatprep.subr.mxu0 %v2566
    %2584 = vmatpush1.msra.mxu0 %v2565
    %2585 = vmatprep.subr.mxu0 %v2564
    %2586 = vmatpush1.msra.mxu0 %v2563
    %2587 = vmatprep.subr.mxu0 %v2562
    %2588 = vmatpush1.msra.mxu0 %v2561
    %2589 = vmatprep.subr.mxu0 %v2560
    %2590 = vmatpush1.msra.mxu0 %v2559
    %2591 = vmatprep.subr.mxu0 %v2558
    %2592 = vmatpush1.msra.mxu0 %v2557
    %2593 = vmatprep.subr.mxu0 %v2556
    %2594 = vmatpush1.msra.mxu0 %v2555
    %2595 = vmatprep.subr.mxu0 %v2554
    %2596 = vmatpush1.msra.mxu0 %v2553
    %2597 = vmatprep.subr.mxu0 %v2552
    %2598 = vmatpush1.msra.mxu0 %v2551
    %2599 = vmatprep.subr.mxu0 %v2550
    %2600 = vmatpush1.msra.mxu0 %v2549
    %2601 = vmatprep.subr.mxu0 %v2548
    %2602 = vmatpush1.msra.mxu0 %v2547
    %2603 = vmatprep.subr.mxu0 %v2546
    %2604 = vmatpush1.msra.mxu0 %v2545
    %2605 = vmatprep.subr.mxu0 %v2544
    %2606 = vmatpush1.msra.mxu0 %v2543
    %2607 = vmatprep.subr.mxu0 0.0
    %2608 = vmatpush2.msra.mxu0 0.0
    %2609 = vmatprep.subr.mxu0 0.0
    %2610 = vmatpush2.msra.mxu0 0.0
    %2611 = vmatprep.subr.mxu0 0.0
    %2612 = vmatpush2.msra.mxu0 0.0
    %2613 = vmatprep.subr.mxu0 0.0
    %2614 = vmatpush2.msra.mxu0 0.0
    %2615 = vmatprep.subr.mxu0 0.0
    %2616 = vmatpush2.msra.mxu0 0.0
    %2617 = vmatprep.subr.mxu0 0.0
    %2618 = vmatpush2.msra.mxu0 0.0
    %2619 = vmatprep.subr.mxu0 0.0
    %2620 = vmatpush2.msra.mxu0 0.0
    %2621 = vmatprep.subr.mxu0 0.0
    %2622 = vmatpush2.msra.mxu0 0.0
    %2623 = vmatprep.subr.mxu0 0.0
    %2624 = vmatpush2.msra.mxu0 0.0
    %2625 = vmatprep.subr.mxu0 0.0
    %2626 = vmatpush2.msra.mxu0 0.0
    %2627 = vmatprep.subr.mxu0 0.0
    %2628 = vmatpush2.msra.mxu0 0.0
    %2629 = vmatprep.subr.mxu0 0.0
    %2630 = vmatpush2.msra.mxu0 0.0
    %2631 = vmatprep.subr.mxu0 0.0
    %2632 = vmatpush2.msra.mxu0 0.0
    %2633 = vmatprep.subr.mxu0 0.0
    %2634 = vmatpush2.msra.mxu0 0.0
    %2635 = vmatprep.subr.mxu0 0.0
    %2636 = vmatpush2.msra.mxu0 0.0
    %2637 = vmatprep.subr.mxu0 0.0
    %2638 = vmatpush2.msra.mxu0 0.0
    %2639 = vmatprep.mubr.f32.mxu0 0.0
    %2640 = vmatmul.mubr.f32.gmra.mxu0 %v2080
    %v2641 = vpop.f32.mrf.mxu0
    %v2642 = vadd.f32 0.0, %v2641
    %v2643 = vpop.f32.mrf.mxu0
    %v2644 = vadd.f32 0.0, %v2643
    %2645 = vmatprep.mubr.f32.mxu0 0.0
    %2646 = vmatmul.mubr.f32.gmra.mxu0 %v2081
    %v2647 = vpop.f32.mrf.mxu0
    %v2648 = vadd.f32 0.0, %v2647
    %v2649 = vpop.f32.mrf.mxu0
    %v2650 = vadd.f32 0.0, %v2649
    %2651 = vmatprep.mubr.f32.mxu0 0.0
    %2652 = vmatmul.mubr.f32.gmra.mxu0 %v2082
    %v2653 = vpop.f32.mrf.mxu0
    %v2654 = vadd.f32 0.0, %v2653
    %v2655 = vpop.f32.mrf.mxu0
    %v2656 = vadd.f32 0.0, %v2655
    %2657 = vmatprep.mubr.f32.mxu0 0.0
    %2658 = vmatmul.mubr.f32.gmra.mxu0 %v2083
    %v2659 = vpop.f32.mrf.mxu0
    %v2660 = vadd.f32 0.0, %v2659
    %v2661 = vpop.f32.mrf.mxu0
    %v2662 = vadd.f32 0.0, %v2661
    %2663 = vmatprep.mubr.f32.mxu0 0.0
    %2664 = vmatmul.mubr.f32.gmra.mxu0 %v2084
    %v2665 = vpop.f32.mrf.mxu0
    %v2666 = vadd.f32 0.0, %v2665
    %v2667 = vpop.f32.mrf.mxu0
    %v2668 = vadd.f32 0.0, %v2667
    %2669 = vmatprep.mubr.f32.mxu0 0.0
    %2670 = vmatmul.mubr.f32.gmra.mxu0 %v2085
    %v2671 = vpop.f32.mrf.mxu0
    %v2672 = vadd.f32 0.0, %v2671
    %v2673 = vpop.f32.mrf.mxu0
    %v2674 = vadd.f32 0.0, %v2673
    %2675 = vmatprep.mubr.f32.mxu0 0.0
    %2676 = vmatmul.mubr.f32.gmra.mxu0 %v2086
    %v2677 = vpop.f32.mrf.mxu0
    %v2678 = vadd.f32 0.0, %v2677
    %v2679 = vpop.f32.mrf.mxu0
    %v2680 = vadd.f32 0.0, %v2679
    %2681 = vmatprep.mubr.f32.mxu0 0.0
    %2682 = vmatmul.mubr.f32.gmra.mxu0 %v2087
    %v2683 = vpop.f32.mrf.mxu0
    %v2684 = vadd.f32 0.0, %v2683
    %v2685 = vpop.f32.mrf.mxu0
    %v2686 = vadd.f32 0.0, %v2685
    %2687 = vdwg.mxu0
    %v2688 = vadd.f32 %v2526, %v2642
    %v2689 = vadd.f32 %v2527, %v2644
    %v2690 = vadd.f32 %v2528, %v2648
    %v2691 = vadd.f32 %v2529, %v2650
    %v2692 = vadd.f32 %v2530, %v2654
    %v2693 = vadd.f32 %v2531, %v2656
    %v2694 = vadd.f32 %v2532, %v2660
    %v2695 = vadd.f32 %v2533, %v2662
    %v2696 = vadd.f32 %v2534, %v2666
    %v2697 = vadd.f32 %v2535, %v2668
    %v2698 = vadd.f32 %v2536, %v2672
    %v2699 = vadd.f32 %v2537, %v2674
    %v2700 = vadd.f32 %v2538, %v2678
    %v2701 = vadd.f32 %v2539, %v2680
    %v2702 = vadd.f32 %v2540, %v2684
    %v2703 = vadd.f32 %v2541, %v2686
    %s2704 = scalar_lea.vmem [#allocation2], 1024
    %v2705 = vld [vmem:[%s2704] sm:$0xff]
    %v2706 = vld [vmem:[%s2704 + $0x8] sm:$0xff]
    %v2707 = vld [vmem:[%s2704 + $0x10] sm:$0xff]
    %v2708 = vld [vmem:[%s2704 + $0x18] sm:$0xff]
    %v2709 = vld [vmem:[%s2704 + $0x20] sm:$0xff]
    %v2710 = vld [vmem:[%s2704 + $0x28] sm:$0xff]
    %v2711 = vld [vmem:[%s2704 + $0x30] sm:$0xff]
    %v2712 = vld [vmem:[%s2704 + $0x38] sm:$0xff]
    %v2713 = vld [vmem:[%s2704 + $0x40] sm:$0xff]
    %v2714 = vld [vmem:[%s2704 + $0x48] sm:$0xff]
    %v2715 = vld [vmem:[%s2704 + $0x50] sm:$0xff]
    %v2716 = vld [vmem:[%s2704 + $0x58] sm:$0xff]
    %v2717 = vld [vmem:[%s2704 + $0x60] sm:$0xff]
    %v2718 = vld [vmem:[%s2704 + $0x68] sm:$0xff]
    %v2719 = vld [vmem:[%s2704 + $0x70] sm:$0xff]
    %v2720 = vld [vmem:[%s2704 + $0x78] sm:$0xff]
    %v2721 = vld [vmem:[%s2704 + $0x80] sm:$0xff]
    %v2722 = vld [vmem:[%s2704 + $0x88] sm:$0xff]
    %v2723 = vld [vmem:[%s2704 + $0x90] sm:$0xff]
    %v2724 = vld [vmem:[%s2704 + $0x98] sm:$0xff]
    %v2725 = vld [vmem:[%s2704 + $0xa0] sm:$0xff]
    %v2726 = vld [vmem:[%s2704 + $0xa8] sm:$0xff]
    %v2727 = vld [vmem:[%s2704 + $0xb0] sm:$0xff]
    %v2728 = vld [vmem:[%s2704 + $0xb8] sm:$0xff]
    %v2729 = vld [vmem:[%s2704 + $0xc0] sm:$0xff]
    %v2730 = vld [vmem:[%s2704 + $0xc8] sm:$0xff]
    %v2731 = vld [vmem:[%s2704 + $0xd0] sm:$0xff]
    %v2732 = vld [vmem:[%s2704 + $0xd8] sm:$0xff]
    %v2733 = vld [vmem:[%s2704 + $0xe0] sm:$0xff]
    %v2734 = vld [vmem:[%s2704 + $0xe8] sm:$0xff]
    %v2735 = vld [vmem:[%s2704 + $0xf0] sm:$0xff]
    %v2736 = vld [vmem:[%s2704 + $0xf8] sm:$0xff]
    %2737 = vmatprep.subr.mxu0 %v2736
    %2738 = vmatpush1.msra.mxu0 %v2735
    %2739 = vmatprep.subr.mxu0 %v2734
    %2740 = vmatpush1.msra.mxu0 %v2733
    %2741 = vmatprep.subr.mxu0 %v2732
    %2742 = vmatpush1.msra.mxu0 %v2731
    %2743 = vmatprep.subr.mxu0 %v2730
    %2744 = vmatpush1.msra.mxu0 %v2729
    %2745 = vmatprep.subr.mxu0 %v2728
    %2746 = vmatpush1.msra.mxu0 %v2727
    %2747 = vmatprep.subr.mxu0 %v2726
    %2748 = vmatpush1.msra.mxu0 %v2725
    %2749 = vmatprep.subr.mxu0 %v2724
    %2750 = vmatpush1.msra.mxu0 %v2723
    %2751 = vmatprep.subr.mxu0 %v2722
    %2752 = vmatpush1.msra.mxu0 %v2721
    %2753 = vmatprep.subr.mxu0 %v2720
    %2754 = vmatpush1.msra.mxu0 %v2719
    %2755 = vmatprep.subr.mxu0 %v2718
    %2756 = vmatpush1.msra.mxu0 %v2717
    %2757 = vmatprep.subr.mxu0 %v2716
    %2758 = vmatpush1.msra.mxu0 %v2715
    %2759 = vmatprep.subr.mxu0 %v2714
    %2760 = vmatpush1.msra.mxu0 %v2713
    %2761 = vmatprep.subr.mxu0 %v2712
    %2762 = vmatpush1.msra.mxu0 %v2711
    %2763 = vmatprep.subr.mxu0 %v2710
    %2764 = vmatpush1.msra.mxu0 %v2709
    %2765 = vmatprep.subr.mxu0 %v2708
    %2766 = vmatpush1.msra.mxu0 %v2707
    %2767 = vmatprep.subr.mxu0 %v2706
    %2768 = vmatpush1.msra.mxu0 %v2705
    %2769 = vmatprep.subr.mxu0 0.0
    %2770 = vmatpush2.msra.mxu0 0.0
    %2771 = vmatprep.subr.mxu0 0.0
    %2772 = vmatpush2.msra.mxu0 0.0
    %2773 = vmatprep.subr.mxu0 0.0
    %2774 = vmatpush2.msra.mxu0 0.0
    %2775 = vmatprep.subr.mxu0 0.0
    %2776 = vmatpush2.msra.mxu0 0.0
    %2777 = vmatprep.subr.mxu0 0.0
    %2778 = vmatpush2.msra.mxu0 0.0
    %2779 = vmatprep.subr.mxu0 0.0
    %2780 = vmatpush2.msra.mxu0 0.0
    %2781 = vmatprep.subr.mxu0 0.0
    %2782 = vmatpush2.msra.mxu0 0.0
    %2783 = vmatprep.subr.mxu0 0.0
    %2784 = vmatpush2.msra.mxu0 0.0
    %2785 = vmatprep.subr.mxu0 0.0
    %2786 = vmatpush2.msra.mxu0 0.0
    %2787 = vmatprep.subr.mxu0 0.0
    %2788 = vmatpush2.msra.mxu0 0.0
    %2789 = vmatprep.subr.mxu0 0.0
    %2790 = vmatpush2.msra.mxu0 0.0
    %2791 = vmatprep.subr.mxu0 0.0
    %2792 = vmatpush2.msra.mxu0 0.0
    %2793 = vmatprep.subr.mxu0 0.0
    %2794 = vmatpush2.msra.mxu0 0.0
    %2795 = vmatprep.subr.mxu0 0.0
    %2796 = vmatpush2.msra.mxu0 0.0
    %2797 = vmatprep.subr.mxu0 0.0
    %2798 = vmatpush2.msra.mxu0 0.0
    %2799 = vmatprep.subr.mxu0 0.0
    %2800 = vmatpush2.msra.mxu0 0.0
    %2801 = vmatprep.mubr.f32.mxu0 0.0
    %2802 = vmatmul.mubr.f32.gmra.mxu0 %v2081
    %v2803 = vpop.f32.mrf.mxu0
    %v2804 = vadd.f32 0.0, %v2803
    %v2805 = vpop.f32.mrf.mxu0
    %v2806 = vadd.f32 0.0, %v2805
    %2807 = vmatprep.mubr.f32.mxu0 0.0
    %2808 = vmatmul.mubr.f32.gmra.mxu0 %v2082
    %v2809 = vpop.f32.mrf.mxu0
    %v2810 = vadd.f32 0.0, %v2809
    %v2811 = vpop.f32.mrf.mxu0
    %v2812 = vadd.f32 0.0, %v2811
    %2813 = vmatprep.mubr.f32.mxu0 0.0
    %2814 = vmatmul.mubr.f32.gmra.mxu0 %v2083
    %v2815 = vpop.f32.mrf.mxu0
    %v2816 = vadd.f32 0.0, %v2815
    %v2817 = vpop.f32.mrf.mxu0
    %v2818 = vadd.f32 0.0, %v2817
    %2819 = vmatprep.mubr.f32.mxu0 0.0
    %2820 = vmatmul.mubr.f32.gmra.mxu0 %v2084
    %v2821 = vpop.f32.mrf.mxu0
    %v2822 = vadd.f32 0.0, %v2821
    %v2823 = vpop.f32.mrf.mxu0
    %v2824 = vadd.f32 0.0, %v2823
    %2825 = vmatprep.mubr.f32.mxu0 0.0
    %2826 = vmatmul.mubr.f32.gmra.mxu0 %v2085
    %v2827 = vpop.f32.mrf.mxu0
    %v2828 = vadd.f32 0.0, %v2827
    %v2829 = vpop.f32.mrf.mxu0
    %v2830 = vadd.f32 0.0, %v2829
    %2831 = vmatprep.mubr.f32.mxu0 0.0
    %2832 = vmatmul.mubr.f32.gmra.mxu0 %v2086
    %v2833 = vpop.f32.mrf.mxu0
    %v2834 = vadd.f32 0.0, %v2833
    %v2835 = vpop.f32.mrf.mxu0
    %v2836 = vadd.f32 0.0, %v2835
    %2837 = vmatprep.mubr.f32.mxu0 0.0
    %2838 = vmatmul.mubr.f32.gmra.mxu0 %v2087
    %v2839 = vpop.f32.mrf.mxu0
    %v2840 = vadd.f32 0.0, %v2839
    %v2841 = vpop.f32.mrf.mxu0
    %v2842 = vadd.f32 0.0, %v2841
    %2843 = vmatprep.mubr.f32.mxu0 0.0
    %2844 = vmatmul.mubr.f32.gmra.mxu0 %v2088
    %v2845 = vpop.f32.mrf.mxu0
    %v2846 = vadd.f32 0.0, %v2845
    %v2847 = vpop.f32.mrf.mxu0
    %v2848 = vadd.f32 0.0, %v2847
    %2849 = vdwg.mxu0
    %v2850 = vadd.f32 %v2688, %v2804
    %v2851 = vadd.f32 %v2689, %v2806
    %v2852 = vadd.f32 %v2690, %v2810
    %v2853 = vadd.f32 %v2691, %v2812
    %v2854 = vadd.f32 %v2692, %v2816
    %v2855 = vadd.f32 %v2693, %v2818
    %v2856 = vadd.f32 %v2694, %v2822
    %v2857 = vadd.f32 %v2695, %v2824
    %v2858 = vadd.f32 %v2696, %v2828
    %v2859 = vadd.f32 %v2697, %v2830
    %v2860 = vadd.f32 %v2698, %v2834
    %v2861 = vadd.f32 %v2699, %v2836
    %v2862 = vadd.f32 %v2700, %v2840
    %v2863 = vadd.f32 %v2701, %v2842
    %v2864 = vadd.f32 %v2702, %v2846
    %v2865 = vadd.f32 %v2703, %v2848
    %v2866 = vld [vmem:[%s4] sm:$0x3]
    %v2868 = vlaneseq
    %v2869 = vshrl.u32 %v2868, 7
    %v2870 = vsub.s32 0, %v2869
    %v2871 = vrot.slane %v2866, %v2870
    %v2872 = vlaneseq
    %v2873 = vshrl.u32 %v2872, 7
    %v2874 = vsub.s32 1, %v2873
    %v2875 = vrot.slane %v2866, %v2874
    %v2878 = vadd.f32 %v2850, %v2871
    %v2879 = vadd.f32 %v2851, %v2875
    %v2880 = vadd.f32 %v2852, %v2871
    %v2881 = vadd.f32 %v2853, %v2875
    %v2882 = vadd.f32 %v2854, %v2871
    %v2883 = vadd.f32 %v2855, %v2875
    %v2884 = vadd.f32 %v2856, %v2871
    %v2885 = vadd.f32 %v2857, %v2875
    %v2886 = vadd.f32 %v2858, %v2871
    %v2887 = vadd.f32 %v2859, %v2875
    %v2888 = vadd.f32 %v2860, %v2871
    %v2889 = vadd.f32 %v2861, %v2875
    %v2890 = vadd.f32 %v2862, %v2871
    %v2891 = vadd.f32 %v2863, %v2875
    %v2892 = vadd.f32 %v2864, %v2871
    %v2893 = vadd.f32 %v2865, %v2875
    %v2894 = vmax.f32 %v2878, 0.0
    %v2895 = vmax.f32 %v2879, 0.0
    %v2896 = vmax.f32 %v2880, 0.0
    %v2897 = vmax.f32 %v2881, 0.0
    %v2898 = vmax.f32 %v2882, 0.0
    %v2899 = vmax.f32 %v2883, 0.0
    %v2900 = vmax.f32 %v2884, 0.0
    %v2901 = vmax.f32 %v2885, 0.0
    %v2902 = vmax.f32 %v2886, 0.0
    %v2903 = vmax.f32 %v2887, 0.0
    %v2904 = vmax.f32 %v2888, 0.0
    %v2905 = vmax.f32 %v2889, 0.0
    %v2906 = vmax.f32 %v2890, 0.0
    %v2907 = vmax.f32 %v2891, 0.0
    %v2908 = vmax.f32 %v2892, 0.0
    %v2909 = vmax.f32 %v2893, 0.0
    %v2910 = vmax.f32 %v2894, %v2895
    %v2911 = vmax.f32 %v2896, %v2897
    %v2912 = vmax.f32 %v2898, %v2899
    %v2913 = vmax.f32 %v2900, %v2901
    %v2914 = vmax.f32 %v2902, %v2903
    %v2915 = vmax.f32 %v2904, %v2905
    %v2916 = vmax.f32 %v2906, %v2907
    %v2917 = vmax.f32 %v2908, %v2909
    %v2918 = vmax.f32 %v2910, %v2911
    %v2919 = vld [vmem:[#allocation4] sm:$0xff]
    %v2920 = vld [vmem:[#allocation4 + $0x8] sm:$0xff]
    %v2921 = vld [vmem:[#allocation4 + $0x10] sm:$0xff]
    %v2922 = vld [vmem:[#allocation4 + $0x18] sm:$0xff]
    %v2923 = vld [vmem:[#allocation4 + $0x20] sm:$0xff]
    %v2924 = vld [vmem:[#allocation4 + $0x28] sm:$0xff]
    %v2925 = vld [vmem:[#allocation4 + $0x30] sm:$0xff]
    %v2926 = vld [vmem:[#allocation4 + $0x38] sm:$0xff]
    %v2927 = vld [vmem:[#allocation4 + $0x40] sm:$0xff]
    %v2928 = vld [vmem:[#allocation4 + $0x48] sm:$0xff]
    %v2929 = vld [vmem:[#allocation4 + $0x50] sm:$0xff]
    %v2930 = vld [vmem:[#allocation4 + $0x58] sm:$0xff]
    %v2931 = vld [vmem:[#allocation4 + $0x60] sm:$0xff]
    %v2932 = vld [vmem:[#allocation4 + $0x68] sm:$0xff]
    %v2933 = vld [vmem:[#allocation4 + $0x70] sm:$0xff]
    %v2934 = vld [vmem:[#allocation4 + $0x78] sm:$0xff]
    %v2935 = vmax.f32 %v2912, %v2913
    %s2936 = scalar_lea.vmem [#allocation4], 128
    %v2937 = vld [vmem:[%s2936] sm:$0xff]
    %v2938 = vld [vmem:[%s2936 + $0x8] sm:$0xff]
    %v2939 = vld [vmem:[%s2936 + $0x10] sm:$0xff]
    %v2940 = vld [vmem:[%s2936 + $0x18] sm:$0xff]
    %v2941 = vld [vmem:[%s2936 + $0x20] sm:$0xff]
    %v2942 = vld [vmem:[%s2936 + $0x28] sm:$0xff]
    %v2943 = vld [vmem:[%s2936 + $0x30] sm:$0xff]
    %v2944 = vld [vmem:[%s2936 + $0x38] sm:$0xff]
    %v2945 = vld [vmem:[%s2936 + $0x40] sm:$0xff]
    %v2946 = vld [vmem:[%s2936 + $0x48] sm:$0xff]
    %v2947 = vld [vmem:[%s2936 + $0x50] sm:$0xff]
    %v2948 = vld [vmem:[%s2936 + $0x58] sm:$0xff]
    %v2949 = vld [vmem:[%s2936 + $0x60] sm:$0xff]
    %v2950 = vld [vmem:[%s2936 + $0x68] sm:$0xff]
    %v2951 = vld [vmem:[%s2936 + $0x70] sm:$0xff]
    %v2952 = vld [vmem:[%s2936 + $0x78] sm:$0xff]
    %2953 = vmatprep.subr.mxu0 0.0
    %2954 = vmatpush1.msra.mxu0 %v2952
    %2955 = vmatprep.subr.mxu0 0.0
    %2956 = vmatpush1.msra.mxu0 %v2951
    %2957 = vmatprep.subr.mxu0 0.0
    %2958 = vmatpush1.msra.mxu0 %v2950
    %2959 = vmatprep.subr.mxu0 0.0
    %2960 = vmatpush1.msra.mxu0 %v2949
    %2961 = vmatprep.subr.mxu0 0.0
    %2962 = vmatpush1.msra.mxu0 %v2948
    %2963 = vmatprep.subr.mxu0 0.0
    %2964 = vmatpush1.msra.mxu0 %v2947
    %2965 = vmatprep.subr.mxu0 0.0
    %2966 = vmatpush1.msra.mxu0 %v2946
    %2967 = vmatprep.subr.mxu0 0.0
    %2968 = vmatpush1.msra.mxu0 %v2945
    %2969 = vmatprep.subr.mxu0 0.0
    %2970 = vmatpush1.msra.mxu0 %v2944
    %2971 = vmatprep.subr.mxu0 0.0
    %2972 = vmatpush1.msra.mxu0 %v2943
    %2973 = vmatprep.subr.mxu0 0.0
    %2974 = vmatpush1.msra.mxu0 %v2942
    %2975 = vmatprep.subr.mxu0 0.0
    %2976 = vmatpush1.msra.mxu0 %v2941
    %2977 = vmatprep.subr.mxu0 0.0
    %2978 = vmatpush1.msra.mxu0 %v2940
    %2979 = vmatprep.subr.mxu0 0.0
    %2980 = vmatpush1.msra.mxu0 %v2939
    %2981 = vmatprep.subr.mxu0 0.0
    %2982 = vmatpush1.msra.mxu0 %v2938
    %2983 = vmatprep.subr.mxu0 0.0
    %2984 = vmatpush1.msra.mxu0 %v2937
    %2985 = vmatprep.subr.mxu0 0.0
    %2986 = vmatpush2.msra.mxu0 0.0
    %2987 = vmatprep.subr.mxu0 0.0
    %2988 = vmatpush2.msra.mxu0 0.0
    %2989 = vmatprep.subr.mxu0 0.0
    %2990 = vmatpush2.msra.mxu0 0.0
    %2991 = vmatprep.subr.mxu0 0.0
    %2992 = vmatpush2.msra.mxu0 0.0
    %2993 = vmatprep.subr.mxu0 0.0
    %2994 = vmatpush2.msra.mxu0 0.0
    %2995 = vmatprep.subr.mxu0 0.0
    %2996 = vmatpush2.msra.mxu0 0.0
    %2997 = vmatprep.subr.mxu0 0.0
    %2998 = vmatpush2.msra.mxu0 0.0
    %2999 = vmatprep.subr.mxu0 0.0
    %3000 = vmatpush2.msra.mxu0 0.0
    %3001 = vmatprep.subr.mxu0 0.0
    %3002 = vmatpush2.msra.mxu0 0.0
    %3003 = vmatprep.subr.mxu0 0.0
    %3004 = vmatpush2.msra.mxu0 0.0
    %3005 = vmatprep.subr.mxu0 0.0
    %3006 = vmatpush2.msra.mxu0 0.0
    %3007 = vmatprep.subr.mxu0 0.0
    %3008 = vmatpush2.msra.mxu0 0.0
    %3009 = vmatprep.subr.mxu0 0.0
    %3010 = vmatpush2.msra.mxu0 0.0
    %3011 = vmatprep.subr.mxu0 0.0
    %3012 = vmatpush2.msra.mxu0 0.0
    %3013 = vmatprep.subr.mxu0 0.0
    %3014 = vmatpush2.msra.mxu0 0.0
    %3015 = vmatprep.subr.mxu0 0.0
    %3016 = vmatpush2.msra.mxu0 0.0
    %3017 = vmatprep.mubr.f32.mxu0 0.0
    %3018 = vmatmul.mubr.f32.gmra.mxu0 %v2935
    %v3019 = vpop.f32.mrf.mxu0
    %v3020 = vadd.f32 0.0, %v3019
    %v3021 = vpop.f32.mrf.mxu0
    %3022 = vdwg.mxu0
    %3023 = vmatprep.subr.mxu0 0.0
    %3024 = vmatpush1.msra.mxu0 %v2934
    %3025 = vmatprep.subr.mxu0 0.0
    %3026 = vmatpush1.msra.mxu0 %v2933
    %3027 = vmatprep.subr.mxu0 0.0
    %3028 = vmatpush1.msra.mxu0 %v2932
    %3029 = vmatprep.subr.mxu0 0.0
    %3030 = vmatpush1.msra.mxu0 %v2931
    %3031 = vmatprep.subr.mxu0 0.0
    %3032 = vmatpush1.msra.mxu0 %v2930
    %3033 = vmatprep.subr.mxu0 0.0
    %3034 = vmatpush1.msra.mxu0 %v2929
    %3035 = vmatprep.subr.mxu0 0.0
    %3036 = vmatpush1.msra.mxu0 %v2928
    %3037 = vmatprep.subr.mxu0 0.0
    %3038 = vmatpush1.msra.mxu0 %v2927
    %3039 = vmatprep.subr.mxu0 0.0
    %3040 = vmatpush1.msra.mxu0 %v2926
    %3041 = vmatprep.subr.mxu0 0.0
    %3042 = vmatpush1.msra.mxu0 %v2925
    %3043 = vmatprep.subr.mxu0 0.0
    %3044 = vmatpush1.msra.mxu0 %v2924
    %3045 = vmatprep.subr.mxu0 0.0
    %3046 = vmatpush1.msra.mxu0 %v2923
    %3047 = vmatprep.subr.mxu0 0.0
    %3048 = vmatpush1.msra.mxu0 %v2922
    %3049 = vmatprep.subr.mxu0 0.0
    %3050 = vmatpush1.msra.mxu0 %v2921
    %3051 = vmatprep.subr.mxu0 0.0
    %3052 = vmatpush1.msra.mxu0 %v2920
    %3053 = vmatprep.subr.mxu0 0.0
    %3054 = vmatpush1.msra.mxu0 %v2919
    %3055 = vmatprep.subr.mxu0 0.0
    %3056 = vmatpush2.msra.mxu0 0.0
    %3057 = vmatprep.subr.mxu0 0.0
    %3058 = vmatpush2.msra.mxu0 0.0
    %3059 = vmatprep.subr.mxu0 0.0
    %3060 = vmatpush2.msra.mxu0 0.0
    %3061 = vmatprep.subr.mxu0 0.0
    %3062 = vmatpush2.msra.mxu0 0.0
    %3063 = vmatprep.subr.mxu0 0.0
    %3064 = vmatpush2.msra.mxu0 0.0
    %3065 = vmatprep.subr.mxu0 0.0
    %3066 = vmatpush2.msra.mxu0 0.0
    %3067 = vmatprep.subr.mxu0 0.0
    %3068 = vmatpush2.msra.mxu0 0.0
    %3069 = vmatprep.subr.mxu0 0.0
    %3070 = vmatpush2.msra.mxu0 0.0
    %3071 = vmatprep.subr.mxu0 0.0
    %3072 = vmatpush2.msra.mxu0 0.0
    %3073 = vmatprep.subr.mxu0 0.0
    %3074 = vmatpush2.msra.mxu0 0.0
    %3075 = vmatprep.subr.mxu0 0.0
    %3076 = vmatpush2.msra.mxu0 0.0
    %3077 = vmatprep.subr.mxu0 0.0
    %3078 = vmatpush2.msra.mxu0 0.0
    %3079 = vmatprep.subr.mxu0 0.0
    %3080 = vmatpush2.msra.mxu0 0.0
    %3081 = vmatprep.subr.mxu0 0.0
    %3082 = vmatpush2.msra.mxu0 0.0
    %3083 = vmatprep.subr.mxu0 0.0
    %3084 = vmatpush2.msra.mxu0 0.0
    %3085 = vmatprep.subr.mxu0 0.0
    %3086 = vmatpush2.msra.mxu0 0.0
    %3087 = vmatprep.mubr.f32.mxu0 0.0
    %3088 = vmatmul.mubr.f32.gmra.mxu0 %v2918
    %v3089 = vpop.f32.mrf.mxu0
    %v3090 = vadd.f32 %v3020, %v3089
    %v3091 = vpop.f32.mrf.mxu0
    %3092 = vdwg.mxu0
    %v3093 = vmax.f32 %v2914, %v2915
    %s3094 = scalar_lea.vmem [#allocation4], 256
    %v3095 = vld [vmem:[%s3094] sm:$0xff]
    %v3096 = vld [vmem:[%s3094 + $0x8] sm:$0xff]
    %v3097 = vld [vmem:[%s3094 + $0x10] sm:$0xff]
    %v3098 = vld [vmem:[%s3094 + $0x18] sm:$0xff]
    %v3099 = vld [vmem:[%s3094 + $0x20] sm:$0xff]
    %v3100 = vld [vmem:[%s3094 + $0x28] sm:$0xff]
    %v3101 = vld [vmem:[%s3094 + $0x30] sm:$0xff]
    %v3102 = vld [vmem:[%s3094 + $0x38] sm:$0xff]
    %v3103 = vld [vmem:[%s3094 + $0x40] sm:$0xff]
    %v3104 = vld [vmem:[%s3094 + $0x48] sm:$0xff]
    %v3105 = vld [vmem:[%s3094 + $0x50] sm:$0xff]
    %v3106 = vld [vmem:[%s3094 + $0x58] sm:$0xff]
    %v3107 = vld [vmem:[%s3094 + $0x60] sm:$0xff]
    %v3108 = vld [vmem:[%s3094 + $0x68] sm:$0xff]
    %v3109 = vld [vmem:[%s3094 + $0x70] sm:$0xff]
    %v3110 = vld [vmem:[%s3094 + $0x78] sm:$0xff]
    %3111 = vmatprep.subr.mxu0 0.0
    %3112 = vmatpush1.msra.mxu0 %v3110
    %3113 = vmatprep.subr.mxu0 0.0
    %3114 = vmatpush1.msra.mxu0 %v3109
    %3115 = vmatprep.subr.mxu0 0.0
    %3116 = vmatpush1.msra.mxu0 %v3108
    %3117 = vmatprep.subr.mxu0 0.0
    %3118 = vmatpush1.msra.mxu0 %v3107
    %3119 = vmatprep.subr.mxu0 0.0
    %3120 = vmatpush1.msra.mxu0 %v3106
    %3121 = vmatprep.subr.mxu0 0.0
    %3122 = vmatpush1.msra.mxu0 %v3105
    %3123 = vmatprep.subr.mxu0 0.0
    %3124 = vmatpush1.msra.mxu0 %v3104
    %3125 = vmatprep.subr.mxu0 0.0
    %3126 = vmatpush1.msra.mxu0 %v3103
    %3127 = vmatprep.subr.mxu0 0.0
    %3128 = vmatpush1.msra.mxu0 %v3102
    %3129 = vmatprep.subr.mxu0 0.0
    %3130 = vmatpush1.msra.mxu0 %v3101
    %3131 = vmatprep.subr.mxu0 0.0
    %3132 = vmatpush1.msra.mxu0 %v3100
    %3133 = vmatprep.subr.mxu0 0.0
    %3134 = vmatpush1.msra.mxu0 %v3099
    %3135 = vmatprep.subr.mxu0 0.0
    %3136 = vmatpush1.msra.mxu0 %v3098
    %3137 = vmatprep.subr.mxu0 0.0
    %3138 = vmatpush1.msra.mxu0 %v3097
    %3139 = vmatprep.subr.mxu0 0.0
    %3140 = vmatpush1.msra.mxu0 %v3096
    %3141 = vmatprep.subr.mxu0 0.0
    %3142 = vmatpush1.msra.mxu0 %v3095
    %3143 = vmatprep.subr.mxu0 0.0
    %3144 = vmatpush2.msra.mxu0 0.0
    %3145 = vmatprep.subr.mxu0 0.0
    %3146 = vmatpush2.msra.mxu0 0.0
    %3147 = vmatprep.subr.mxu0 0.0
    %3148 = vmatpush2.msra.mxu0 0.0
    %3149 = vmatprep.subr.mxu0 0.0
    %3150 = vmatpush2.msra.mxu0 0.0
    %3151 = vmatprep.subr.mxu0 0.0
    %3152 = vmatpush2.msra.mxu0 0.0
    %3153 = vmatprep.subr.mxu0 0.0
    %3154 = vmatpush2.msra.mxu0 0.0
    %3155 = vmatprep.subr.mxu0 0.0
    %3156 = vmatpush2.msra.mxu0 0.0
    %3157 = vmatprep.subr.mxu0 0.0
    %3158 = vmatpush2.msra.mxu0 0.0
    %3159 = vmatprep.subr.mxu0 0.0
    %3160 = vmatpush2.msra.mxu0 0.0
    %3161 = vmatprep.subr.mxu0 0.0
    %3162 = vmatpush2.msra.mxu0 0.0
    %3163 = vmatprep.subr.mxu0 0.0
    %3164 = vmatpush2.msra.mxu0 0.0
    %3165 = vmatprep.subr.mxu0 0.0
    %3166 = vmatpush2.msra.mxu0 0.0
    %3167 = vmatprep.subr.mxu0 0.0
    %3168 = vmatpush2.msra.mxu0 0.0
    %3169 = vmatprep.subr.mxu0 0.0
    %3170 = vmatpush2.msra.mxu0 0.0
    %3171 = vmatprep.subr.mxu0 0.0
    %3172 = vmatpush2.msra.mxu0 0.0
    %3173 = vmatprep.subr.mxu0 0.0
    %3174 = vmatpush2.msra.mxu0 0.0
    %3175 = vmatprep.mubr.f32.mxu0 0.0
    %3176 = vmatmul.mubr.f32.gmra.mxu0 %v3093
    %v3177 = vpop.f32.mrf.mxu0
    %v3178 = vadd.f32 0.0, %v3177
    %v3179 = vpop.f32.mrf.mxu0
    %3180 = vdwg.mxu0
    %v3181 = vadd.f32 %v3090, %v3178
    %v3182 = vmax.f32 %v2916, %v2917
    %s3183 = scalar_lea.vmem [#allocation4], 384
    %v3184 = vld [vmem:[%s3183] sm:$0xff]
    %v3185 = vld [vmem:[%s3183 + $0x8] sm:$0xff]
    %v3186 = vld [vmem:[%s3183 + $0x10] sm:$0xff]
    %v3187 = vld [vmem:[%s3183 + $0x18] sm:$0xff]
    %v3188 = vld [vmem:[%s3183 + $0x20] sm:$0xff]
    %v3189 = vld [vmem:[%s3183 + $0x28] sm:$0xff]
    %v3190 = vld [vmem:[%s3183 + $0x30] sm:$0xff]
    %v3191 = vld [vmem:[%s3183 + $0x38] sm:$0xff]
    %v3192 = vld [vmem:[%s3183 + $0x40] sm:$0xff]
    %v3193 = vld [vmem:[%s3183 + $0x48] sm:$0xff]
    %v3194 = vld [vmem:[%s3183 + $0x50] sm:$0xff]
    %v3195 = vld [vmem:[%s3183 + $0x58] sm:$0xff]
    %v3196 = vld [vmem:[%s3183 + $0x60] sm:$0xff]
    %v3197 = vld [vmem:[%s3183 + $0x68] sm:$0xff]
    %v3198 = vld [vmem:[%s3183 + $0x70] sm:$0xff]
    %v3199 = vld [vmem:[%s3183 + $0x78] sm:$0xff]
    %3200 = vmatprep.subr.mxu0 0.0
    %3201 = vmatpush1.msra.mxu0 %v3199
    %3202 = vmatprep.subr.mxu0 0.0
    %3203 = vmatpush1.msra.mxu0 %v3198
    %3204 = vmatprep.subr.mxu0 0.0
    %3205 = vmatpush1.msra.mxu0 %v3197
    %3206 = vmatprep.subr.mxu0 0.0
    %3207 = vmatpush1.msra.mxu0 %v3196
    %3208 = vmatprep.subr.mxu0 0.0
    %3209 = vmatpush1.msra.mxu0 %v3195
    %3210 = vmatprep.subr.mxu0 0.0
    %3211 = vmatpush1.msra.mxu0 %v3194
    %3212 = vmatprep.subr.mxu0 0.0
    %3213 = vmatpush1.msra.mxu0 %v3193
    %3214 = vmatprep.subr.mxu0 0.0
    %3215 = vmatpush1.msra.mxu0 %v3192
    %3216 = vmatprep.subr.mxu0 0.0
    %3217 = vmatpush1.msra.mxu0 %v3191
    %3218 = vmatprep.subr.mxu0 0.0
    %3219 = vmatpush1.msra.mxu0 %v3190
    %3220 = vmatprep.subr.mxu0 0.0
    %3221 = vmatpush1.msra.mxu0 %v3189
    %3222 = vmatprep.subr.mxu0 0.0
    %3223 = vmatpush1.msra.mxu0 %v3188
    %3224 = vmatprep.subr.mxu0 0.0
    %3225 = vmatpush1.msra.mxu0 %v3187
    %3226 = vmatprep.subr.mxu0 0.0
    %3227 = vmatpush1.msra.mxu0 %v3186
    %3228 = vmatprep.subr.mxu0 0.0
    %3229 = vmatpush1.msra.mxu0 %v3185
    %3230 = vmatprep.subr.mxu0 0.0
    %3231 = vmatpush1.msra.mxu0 %v3184
    %3232 = vmatprep.subr.mxu0 0.0
    %3233 = vmatpush2.msra.mxu0 0.0
    %3234 = vmatprep.subr.mxu0 0.0
    %3235 = vmatpush2.msra.mxu0 0.0
    %3236 = vmatprep.subr.mxu0 0.0
    %3237 = vmatpush2.msra.mxu0 0.0
    %3238 = vmatprep.subr.mxu0 0.0
    %3239 = vmatpush2.msra.mxu0 0.0
    %3240 = vmatprep.subr.mxu0 0.0
    %3241 = vmatpush2.msra.mxu0 0.0
    %3242 = vmatprep.subr.mxu0 0.0
    %3243 = vmatpush2.msra.mxu0 0.0
    %3244 = vmatprep.subr.mxu0 0.0
    %3245 = vmatpush2.msra.mxu0 0.0
    %3246 = vmatprep.subr.mxu0 0.0
    %3247 = vmatpush2.msra.mxu0 0.0
    %3248 = vmatprep.subr.mxu0 0.0
    %3249 = vmatpush2.msra.mxu0 0.0
    %3250 = vmatprep.subr.mxu0 0.0
    %3251 = vmatpush2.msra.mxu0 0.0
    %3252 = vmatprep.subr.mxu0 0.0
    %3253 = vmatpush2.msra.mxu0 0.0
    %3254 = vmatprep.subr.mxu0 0.0
    %3255 = vmatpush2.msra.mxu0 0.0
    %3256 = vmatprep.subr.mxu0 0.0
    %3257 = vmatpush2.msra.mxu0 0.0
    %3258 = vmatprep.subr.mxu0 0.0
    %3259 = vmatpush2.msra.mxu0 0.0
    %3260 = vmatprep.subr.mxu0 0.0
    %3261 = vmatpush2.msra.mxu0 0.0
    %3262 = vmatprep.subr.mxu0 0.0
    %3263 = vmatpush2.msra.mxu0 0.0
    %3264 = vmatprep.mubr.f32.mxu0 0.0
    %3265 = vmatmul.mubr.f32.gmra.mxu0 %v3182
    %v3266 = vpop.f32.mrf.mxu0
    %v3267 = vadd.f32 0.0, %v3266
    %v3268 = vpop.f32.mrf.mxu0
    %3269 = vdwg.mxu0
    %v3270 = vadd.f32 %v3181, %v3267
    %v3271 = vld [vmem:[%s6] sm:$0x1]
    %v3273 = vlaneseq
    %v3274 = vshrl.u32 %v3273, 7
    %v3275 = vsub.s32 0, %v3274
    %v3276 = vrot.slane %v3271, %v3275
    %v3278 = vadd.f32 %v3270, %v3276
    %v3279 = vmax.f32 %v3278, 0.0
    %v3280 = vld [vmem:[#allocation6] sm:$0xff]
    %v3281 = vld [vmem:[#allocation6 + $0x8] sm:$0xff]
    %v3282 = vld [vmem:[#allocation6 + $0x10] sm:$0xff]
    %v3283 = vld [vmem:[#allocation6 + $0x18] sm:$0xff]
    %v3284 = vld [vmem:[#allocation6 + $0x20] sm:$0xff]
    %v3285 = vld [vmem:[#allocation6 + $0x28] sm:$0xff]
    %v3286 = vld [vmem:[#allocation6 + $0x30] sm:$0xff]
    %v3287 = vld [vmem:[#allocation6 + $0x38] sm:$0xff]
    %v3288 = vld [vmem:[#allocation6 + $0x40] sm:$0xff]
    %v3289 = vld [vmem:[#allocation6 + $0x48] sm:$0xff]
    %v3290 = vld [vmem:[#allocation6 + $0x50] sm:$0xff]
    %v3291 = vld [vmem:[#allocation6 + $0x58] sm:$0xff]
    %v3292 = vld [vmem:[#allocation6 + $0x60] sm:$0xff]
    %v3293 = vld [vmem:[#allocation6 + $0x68] sm:$0xff]
    %v3294 = vld [vmem:[#allocation6 + $0x70] sm:$0xff]
    %v3295 = vld [vmem:[#allocation6 + $0x78] sm:$0xff]
    %v3296 = vld [vmem:[%s8] sm:$0x1]
    %v3298 = vlaneseq
    %v3299 = vshrl.u32 %v3298, 7
    %v3300 = vsub.s32 0, %v3299
    %v3301 = vrot.slane %v3296, %v3300
    %3303 = vmatprep.subr.mxu0 0.0
    %3304 = vmatpush1.msra.mxu0 %v3295
    %3305 = vmatprep.subr.mxu0 0.0
    %3306 = vmatpush1.msra.mxu0 %v3294
    %3307 = vmatprep.subr.mxu0 0.0
    %3308 = vmatpush1.msra.mxu0 %v3293
    %3309 = vmatprep.subr.mxu0 0.0
    %3310 = vmatpush1.msra.mxu0 %v3292
    %3311 = vmatprep.subr.mxu0 0.0
    %3312 = vmatpush1.msra.mxu0 %v3291
    %3313 = vmatprep.subr.mxu0 0.0
    %3314 = vmatpush1.msra.mxu0 %v3290
    %3315 = vmatprep.subr.mxu0 0.0
    %3316 = vmatpush1.msra.mxu0 %v3289
    %3317 = vmatprep.subr.mxu0 0.0
    %3318 = vmatpush1.msra.mxu0 %v3288
    %3319 = vmatprep.subr.mxu0 0.0
    %3320 = vmatpush1.msra.mxu0 %v3287
    %3321 = vmatprep.subr.mxu0 0.0
    %3322 = vmatpush1.msra.mxu0 %v3286
    %3323 = vmatprep.subr.mxu0 0.0
    %3324 = vmatpush1.msra.mxu0 %v3285
    %3325 = vmatprep.subr.mxu0 0.0
    %3326 = vmatpush1.msra.mxu0 %v3284
    %3327 = vmatprep.subr.mxu0 0.0
    %3328 = vmatpush1.msra.mxu0 %v3283
    %3329 = vmatprep.subr.mxu0 0.0
    %3330 = vmatpush1.msra.mxu0 %v3282
    %3331 = vmatprep.subr.mxu0 0.0
    %3332 = vmatpush1.msra.mxu0 %v3281
    %3333 = vmatprep.subr.mxu0 0.0
    %3334 = vmatpush1.msra.mxu0 %v3280
    %3335 = vmatprep.subr.mxu0 0.0
    %3336 = vmatpush2.msra.mxu0 0.0
    %3337 = vmatprep.subr.mxu0 0.0
    %3338 = vmatpush2.msra.mxu0 0.0
    %3339 = vmatprep.subr.mxu0 0.0
    %3340 = vmatpush2.msra.mxu0 0.0
    %3341 = vmatprep.subr.mxu0 0.0
    %3342 = vmatpush2.msra.mxu0 0.0
    %3343 = vmatprep.subr.mxu0 0.0
    %3344 = vmatpush2.msra.mxu0 0.0
    %3345 = vmatprep.subr.mxu0 0.0
    %3346 = vmatpush2.msra.mxu0 0.0
    %3347 = vmatprep.subr.mxu0 0.0
    %3348 = vmatpush2.msra.mxu0 0.0
    %3349 = vmatprep.subr.mxu0 0.0
    %3350 = vmatpush2.msra.mxu0 0.0
    %3351 = vmatprep.subr.mxu0 0.0
    %3352 = vmatpush2.msra.mxu0 0.0
    %3353 = vmatprep.subr.mxu0 0.0
    %3354 = vmatpush2.msra.mxu0 0.0
    %3355 = vmatprep.subr.mxu0 0.0
    %3356 = vmatpush2.msra.mxu0 0.0
    %3357 = vmatprep.subr.mxu0 0.0
    %3358 = vmatpush2.msra.mxu0 0.0
    %3359 = vmatprep.subr.mxu0 0.0
    %3360 = vmatpush2.msra.mxu0 0.0
    %3361 = vmatprep.subr.mxu0 0.0
    %3362 = vmatpush2.msra.mxu0 0.0
    %3363 = vmatprep.subr.mxu0 0.0
    %3364 = vmatpush2.msra.mxu0 0.0
    %3365 = vmatprep.subr.mxu0 0.0
    %3366 = vmatpush2.msra.mxu0 0.0
    %3367 = vmatprep.mubr.f32.mxu0 0.0
    %3368 = vmatmul.mubr.f32.gmra.mxu0 %v3279
    %v3369 = vpop.f32.mrf.mxu0
    %v3370 = vadd.f32 %v3301, %v3369
    %v3371 = vpop.f32.mrf.mxu0
    %3372 = vdwg.mxu0
    %v3373 = vmax.f32 %v3370, 0.0
    %v3374 = vld [vmem:[#allocation7] sm:$0xff]
    %v3375 = vld [vmem:[#allocation7 + $0x8] sm:$0xff]
    %v3376 = vld [vmem:[#allocation7 + $0x10] sm:$0xff]
    %v3377 = vld [vmem:[#allocation7 + $0x18] sm:$0xff]
    %v3378 = vld [vmem:[#allocation7 + $0x20] sm:$0xff]
    %v3379 = vld [vmem:[#allocation7 + $0x28] sm:$0xff]
    %v3380 = vld [vmem:[#allocation7 + $0x30] sm:$0xff]
    %v3381 = vld [vmem:[#allocation7 + $0x38] sm:$0xff]
    %v3382 = vld [vmem:[#allocation7 + $0x40] sm:$0xff]
    %v3383 = vld [vmem:[#allocation7 + $0x48] sm:$0xff]
    %v3384 = vld [vmem:[#allocation7 + $0x50] sm:$0xff]
    %v3385 = vld [vmem:[#allocation7 + $0x58] sm:$0xff]
    %v3386 = vld [vmem:[#allocation7 + $0x60] sm:$0xff]
    %v3387 = vld [vmem:[#allocation7 + $0x68] sm:$0xff]
    %v3388 = vld [vmem:[#allocation7 + $0x70] sm:$0xff]
    %v3389 = vld [vmem:[#allocation7 + $0x78] sm:$0xff]
    %v3390 = vld [vmem:[%s10] sm:$0x1]
    %v3392 = vlaneseq
    %v3393 = vshrl.u32 %v3392, 7
    %v3394 = vsub.s32 0, %v3393
    %v3395 = vrot.slane %v3390, %v3394
    %3397 = vmatprep.subr.mxu0 0.0
    %3398 = vmatpush1.msra.mxu0 %v3389
    %3399 = vmatprep.subr.mxu0 0.0
    %3400 = vmatpush1.msra.mxu0 %v3388
    %3401 = vmatprep.subr.mxu0 0.0
    %3402 = vmatpush1.msra.mxu0 %v3387
    %3403 = vmatprep.subr.mxu0 0.0
    %3404 = vmatpush1.msra.mxu0 %v3386
    %3405 = vmatprep.subr.mxu0 0.0
    %3406 = vmatpush1.msra.mxu0 %v3385
    %3407 = vmatprep.subr.mxu0 0.0
    %3408 = vmatpush1.msra.mxu0 %v3384
    %3409 = vmatprep.subr.mxu0 0.0
    %3410 = vmatpush1.msra.mxu0 %v3383
    %3411 = vmatprep.subr.mxu0 0.0
    %3412 = vmatpush1.msra.mxu0 %v3382
    %3413 = vmatprep.subr.mxu0 0.0
    %3414 = vmatpush1.msra.mxu0 %v3381
    %3415 = vmatprep.subr.mxu0 0.0
    %3416 = vmatpush1.msra.mxu0 %v3380
    %3417 = vmatprep.subr.mxu0 0.0
    %3418 = vmatpush1.msra.mxu0 %v3379
    %3419 = vmatprep.subr.mxu0 0.0
    %3420 = vmatpush1.msra.mxu0 %v3378
    %3421 = vmatprep.subr.mxu0 0.0
    %3422 = vmatpush1.msra.mxu0 %v3377
    %3423 = vmatprep.subr.mxu0 0.0
    %3424 = vmatpush1.msra.mxu0 %v3376
    %3425 = vmatprep.subr.mxu0 0.0
    %3426 = vmatpush1.msra.mxu0 %v3375
    %3427 = vmatprep.subr.mxu0 0.0
    %3428 = vmatpush1.msra.mxu0 %v3374
    %3429 = vmatprep.subr.mxu0 0.0
    %3430 = vmatpush2.msra.mxu0 0.0
    %3431 = vmatprep.subr.mxu0 0.0
    %3432 = vmatpush2.msra.mxu0 0.0
    %3433 = vmatprep.subr.mxu0 0.0
    %3434 = vmatpush2.msra.mxu0 0.0
    %3435 = vmatprep.subr.mxu0 0.0
    %3436 = vmatpush2.msra.mxu0 0.0
    %3437 = vmatprep.subr.mxu0 0.0
    %3438 = vmatpush2.msra.mxu0 0.0
    %3439 = vmatprep.subr.mxu0 0.0
    %3440 = vmatpush2.msra.mxu0 0.0
    %3441 = vmatprep.subr.mxu0 0.0
    %3442 = vmatpush2.msra.mxu0 0.0
    %3443 = vmatprep.subr.mxu0 0.0
    %3444 = vmatpush2.msra.mxu0 0.0
    %3445 = vmatprep.subr.mxu0 0.0
    %3446 = vmatpush2.msra.mxu0 0.0
    %3447 = vmatprep.subr.mxu0 0.0
    %3448 = vmatpush2.msra.mxu0 0.0
    %3449 = vmatprep.subr.mxu0 0.0
    %3450 = vmatpush2.msra.mxu0 0.0
    %3451 = vmatprep.subr.mxu0 0.0
    %3452 = vmatpush2.msra.mxu0 0.0
    %3453 = vmatprep.subr.mxu0 0.0
    %3454 = vmatpush2.msra.mxu0 0.0
    %3455 = vmatprep.subr.mxu0 0.0
    %3456 = vmatpush2.msra.mxu0 0.0
    %3457 = vmatprep.subr.mxu0 0.0
    %3458 = vmatpush2.msra.mxu0 0.0
    %3459 = vmatprep.subr.mxu0 0.0
    %3460 = vmatpush2.msra.mxu0 0.0
    %3461 = vmatprep.mubr.f32.mxu0 0.0
    %3462 = vmatmul.mubr.f32.gmra.mxu0 %v3373
    %v3463 = vpop.f32.mrf.mxu0
    %v3464 = vadd.f32 %v3395, %v3463
    %v3465 = vpop.f32.mrf.mxu0
    %3466 = vdwg.mxu0
    %3467 = vst [vmem:[%s11] sm:$0xff] %v3464
    // Predicated region
    $region62: #{mnistnet_forward.1} parent=1 // pred_check
      _
    $region63: #{mnistnet_forward.1} parent=1 // pred_check_branch
      %3469 = sbr.rel (0) target = $region65
    $region64: #{mnistnet_forward.1} parent=1 // pred_region
      _
    $region65: #{mnistnet_forward.1} parent=1 // pred_fallthru
      _
    // Predicated region
    $region66: #{mnistnet_forward.1} parent=1 // pred_check
      _
    $region67: #{mnistnet_forward.1} parent=1 // pred_check_branch
      %3471 = sbr.rel (0) target = $region69
    $region68: #{mnistnet_forward.1} parent=1 // pred_region
      _
    $region69: #{mnistnet_forward.1} parent=1 // pred_fallthru
      _
    %3472 = vsyncpa [#allocation3], 1
    %3473 = vsyncpa [#allocation5], 1
    %3474 = vsyncpa [#allocation8], 1

</llo_original>
